<compile_context>
chip_gen: v6e
topology: v6e:2x2x1
jax: 0.10.0
libtpu: 0.0.40
codegen_flags: <defaults>
</compile_context>

<pallas_src>
import functools

import jax
import jax.numpy as jnp
import numpy as np
from jax import lax
from jax.experimental import pallas as pl
from jax.experimental.pallas import tpu as pltpu

BN_EPS = 1e-5


def _scoped_vmem(step_bytes):
    """Scoped-VMEM limit: None (compiler default) for small tiles, explicit
    raise for large ones (v5e default is only 16 MiB), hard error past the
    v7x 64 MiB physical budget."""
    need = 2 * step_bytes + (4 << 20)              # double-buffering + headroom
    if need <= (12 << 20):
        return None
    if need > (56 << 20):                          # v7x: 64 MiB physical VMEM
        raise ValueError(
            f"tile working set (~{need >> 20} MiB) exceeds the v7x VMEM "
            "budget; reduce tm")
    return int(need)


# -----------------------------------------------------------------------------
# Kernel A: conv1 + BN1(closed-form stats) + ReLU + conv2 + BN2 stats partials.
# -----------------------------------------------------------------------------
def _fold_head_kernel(g_ref, wg_ref, cb_ref, scale1_ref, shift1_ref, w2_ref,
                      y2_ref, stats_ref, *, valid_m, mask_rows):
    g = g_ref[0]                                                  # (tm, Kg) f32
    # conv1: tiny-K contraction on the (otherwise idle) MXU + codeword row.
    y1 = jnp.dot(g, wg_ref[...], preferred_element_type=jnp.float32) + cb_ref[0]
    # BN1 (training-mode batch stats, precomputed in closed form) + ReLU.
    x1 = jnp.maximum(y1 * scale1_ref[...] + shift1_ref[...], 0.0)
    # conv2 (hidden -> hidden) on the MXU with f32 accumulation.
    z = jnp.dot(x1.astype(w2_ref.dtype), w2_ref[...],
                preferred_element_type=jnp.float32)
    y2_ref[0] = z.astype(y2_ref.dtype)
    # BN2 batch-statistic partials for this tile.  Written (not accumulated)
    # so both grid axes stay "parallel" (v7x megacore with any batch size).
    if mask_rows:                              # only when tm does not divide M
        tm = y2_ref.shape[1]
        row = pl.program_id(1) * tm + lax.broadcasted_iota(jnp.int32, (tm, 1), 0)
        z = jnp.where(row < valid_m, z, 0.0)
    stats_ref[0, 0, 0:1, :] = jnp.sum(z, axis=0, keepdims=True)
    stats_ref[0, 0, 1:2, :] = jnp.sum(z * z, axis=0, keepdims=True)


def fold_head(g, wg, cb, scale1, shift1, w2, *, batch, tm, out_dtype):
    Bg, M, Kg = g.shape
    H = w2.shape[1]
    nt = pl.cdiv(M, tm)
    mask_rows = (M % tm) != 0
    # Fold 1 passes the shared grid with a leading dim of 1; the index_map
    # simply ignores the batch index (no (B, M, 2) broadcast in HBM).
    g_map = (lambda bi, mi: (0, mi, 0)) if Bg == 1 else (lambda bi, mi: (bi, mi, 0))
    out_isz = jnp.dtype(out_dtype).itemsize
    w_isz = w2.dtype.itemsize
    step_bytes = tm * H * (out_isz + 12) + tm * Kg * 4 + H * H * w_isz
    flops = 2 * batch * M * H * (Kg + H)
    bytes_acc = (batch * M * Kg * 4 + batch * M * H * out_isz
                 + H * H * w_isz + batch * nt * 2 * H * 4)
    return pl.pallas_call(
        functools.partial(_fold_head_kernel, valid_m=M, mask_rows=mask_rows),
        out_shape=(jax.ShapeDtypeStruct((batch, M, H), out_dtype),
                   jax.ShapeDtypeStruct((batch, nt, 2, H), jnp.float32)),
        grid_spec=pltpu.PrefetchScalarGridSpec(
            num_scalar_prefetch=0,
            grid=(batch, nt),
            in_specs=[
                pl.BlockSpec((1, tm, Kg), g_map),
                pl.BlockSpec((Kg, H), lambda bi, mi: (0, 0)),
                pl.BlockSpec((1, 1, H), lambda bi, mi: (bi, 0, 0)),
                pl.BlockSpec((1, H), lambda bi, mi: (0, 0)),
                pl.BlockSpec((1, H), lambda bi, mi: (0, 0)),
                pl.BlockSpec((H, H), lambda bi, mi: (0, 0)),
            ],
            out_specs=(
                pl.BlockSpec((1, tm, H), lambda bi, mi: (bi, mi, 0)),
                pl.BlockSpec((1, 1, 2, H), lambda bi, mi: (bi, mi, 0, 0)),
            )),
        compiler_params=pltpu.CompilerParams(
            dimension_semantics=("parallel", "parallel"),
            vmem_limit_bytes=_scoped_vmem(step_bytes)),
        cost_estimate=pl.CostEstimate(flops=flops, transcendentals=0,
                                      bytes_accessed=bytes_acc),
    )(g, wg, cb.reshape(batch, 1, H), scale1.reshape(1, H),
      shift1.reshape(1, H), w2)


# -----------------------------------------------------------------------------
# Kernel B: BN2-apply + ReLU + final hidden->3 conv (+bias).
# -----------------------------------------------------------------------------
def _fold_tail_kernel(y_ref, scale_ref, shift_ref, w_ref, b_ref, o_ref):
    x = jnp.maximum(y_ref[0].astype(jnp.float32) * scale_ref[...]
                    + shift_ref[...], 0.0)
    # The tiny H->3 matmul stays in f32 (negligible cost, better final output).
    z = jnp.dot(x, w_ref[...], preferred_element_type=jnp.float32)
    o_ref[0] = (z + b_ref[...]).astype(o_ref.dtype)


def fold_tail(y, scale, shift, w3, b3, *, tm):
    B, M, H = y.shape
    Co = w3.shape[1]
    nt = pl.cdiv(M, tm)
    in_isz = y.dtype.itemsize
    step_bytes = tm * H * (in_isz + 8) + tm * Co * 8
    flops = 2 * B * M * H * Co
    bytes_acc = B * M * H * in_isz + B * M * Co * 4 + H * Co * 4
    return pl.pallas_call(
        _fold_tail_kernel,
        out_shape=jax.ShapeDtypeStruct((B, M, Co), jnp.float32),
        grid_spec=pltpu.PrefetchScalarGridSpec(
            num_scalar_prefetch=0,
            grid=(B, nt),
            in_specs=[
                pl.BlockSpec((1, tm, H), lambda bi, mi: (bi, mi, 0)),
                pl.BlockSpec((1, H), lambda bi, mi: (0, 0)),
                pl.BlockSpec((1, H), lambda bi, mi: (0, 0)),
                pl.BlockSpec((H, Co), lambda bi, mi: (0, 0)),
                pl.BlockSpec((1, Co), lambda bi, mi: (0, 0)),
            ],
            out_specs=pl.BlockSpec((1, tm, Co), lambda bi, mi: (bi, mi, 0))),
        compiler_params=pltpu.CompilerParams(
            dimension_semantics=("parallel", "parallel"),
            vmem_limit_bytes=_scoped_vmem(step_bytes)),
        cost_estimate=pl.CostEstimate(flops=flops, transcendentals=0,
                                      bytes_accessed=bytes_acc),
    )(y, scale.reshape(1, H), shift.reshape(1, H),
      w3.astype(jnp.float32), b3.reshape(1, Co).astype(jnp.float32))


# -----------------------------------------------------------------------------
# FoldingLayer: [Conv1d(1)+BN+ReLU] x2 + Conv1d(1), fused into TWO kernels.
# -----------------------------------------------------------------------------
def folding_layer(g, codeword, params, *, tm, compute_dtype):
    """g: (1 or B, M, Kg) channels-last grid / intermediate reconstruction;
    codeword: (B, C).  Returns (B, M, 3)."""
    (w1, _b1, gamma1, beta1), (w2, _b2, gamma2, beta2), (w3, b3) = params
    Bg, M, Kg = g.shape
    B = codeword.shape[0]
    n = float(B * M)
    tm = min(tm, M)
    assert tm == M or tm % 8 == 0, "tm must be a multiple of 8 (or equal M)"

    g = g.astype(jnp.float32)
    wg = w1[:Kg].astype(jnp.float32)                               # (Kg, H)
    # Codeword contribution of conv1: one tiny (B,C)x(C,H) matmul reused for
    # every point.  b1/b2 are dropped: training-mode BN cancels them exactly.
    cb = jnp.dot(codeword.astype(jnp.float32), w1[Kg:].astype(jnp.float32))

    # ---- Layer-1 BN batch statistics in closed form (no extra pass over M):
    #   y1[b,m,c] = g[b,m,:] . wg[:,c] + cb[b,c]
    #   sum_m y1   = s_b @ wg + M*cb
    #   sum_m y1^2 = w_c^T G_b w_c + 2 cb (s_b @ wg)_c + M cb^2
    # with s_b = sum_m g[b,m,:] (Kg,) and G_b = sum_m g g^T (Kg,Kg).
    s = jnp.sum(g, axis=1)                                         # (Bg, Kg)
    G = jnp.einsum('bmk,bml->bkl', g, g)                           # (Bg, Kg, Kg)
    sw = s @ wg                                                    # (Bg, H)
    quad = jnp.einsum('bkl,kc,lc->bc', G, wg, wg)                  # (Bg, H)
    sum1 = sw + M * cb                                             # (B, H)
    sumsq1 = quad + 2.0 * cb * sw + M * cb * cb                    # (B, H)
    mean1 = jnp.sum(sum1, axis=0) / n
    var1 = jnp.sum(sumsq1, axis=0) / n - mean1 * mean1             # biased var
    scale1 = gamma1 * lax.rsqrt(var1 + BN_EPS)
    shift1 = beta1 - mean1 * scale1

    # ---- Fused conv1 + BN1 + ReLU + conv2, emitting BN2 partial statistics.
    y2, stats2 = fold_head(g, wg, cb, scale1, shift1,
                           w2.astype(compute_dtype),
                           batch=B, tm=tm, out_dtype=compute_dtype)
    s2 = jnp.sum(stats2, axis=(0, 1))                              # (2, H)
    mean2 = s2[0] / n
    var2 = s2[1] / n - mean2 * mean2
    scale2 = gamma2 * lax.rsqrt(var2 + BN_EPS)
    shift2 = beta2 - mean2 * scale2

    # ---- Fused BN2 + ReLU + conv3 (+bias) -> (B, M, 3) reconstruction.
    return fold_tail(y2, scale2, shift2, w3, b3, tm=tm)


@functools.partial(jax.jit, static_argnames=("tm", "compute_dtype"))
def decoder_forward(codeword, grid_pts, fold1_params, fold2_params, *,
                    tm=2000, compute_dtype=jnp.bfloat16):
    """codeword: (B, C); grid_pts: (M, 2).  Returns (B, 3, M) like PyTorch."""
    M = grid_pts.shape[0]
    # Fold 1 consumes the shared (M, 2) grid directly; the per-batch broadcast
    # is handled by the BlockSpec index_map (never materialized in HBM).
    recon1 = folding_layer(grid_pts.reshape(1, M, 2), codeword, fold1_params,
                           tm=tm, compute_dtype=compute_dtype)      # (B, M, 3)
    recon2 = folding_layer(recon1, codeword, fold2_params,
                           tm=tm, compute_dtype=compute_dtype)      # (B, M, 3)
    # Final NCL transpose stays in XLA: the (B, M, 3) tensor is ~1% of the
    # hidden-activation traffic; kernel stores stay lane-dense over H.
    return jnp.transpose(recon2, (0, 2, 1))


# -----------------------------------------------------------------------------
# Parameter init (deterministic; shapes follow FoldingLayer.__init__)
# -----------------------------------------------------------------------------
def init_fold_params(key, in_ch, hidden, out_ch):
    k = jax.random.split(key, 6)
    w1 = jax.random.normal(k[0], (in_ch, hidden), jnp.float32) * 0.05
    b1 = jax.random.normal(k[1], (hidden,), jnp.float32) * 0.01
    w2 = jax.random.normal(k[2], (hidden, hidden), jnp.float32) * 0.05
    b2 = jax.random.normal(k[3], (hidden,), jnp.float32) * 0.01
    w3 = jax.random.normal(k[4], (hidden, out_ch), jnp.float32) * 0.05
    b3 = jax.random.normal(k[5], (out_ch,), jnp.float32) * 0.01
    ones = jnp.ones((hidden,), jnp.float32)
    zeros = jnp.zeros((hidden,), jnp.float32)   # PyTorch BN default gamma/beta
    return ((w1, b1, ones, zeros), (w2, b2, ones, zeros), (w3, b3))


def make_grid(res):
    xx = np.linspace(-0.5, 0.5, res, dtype=np.float32)
    yy = np.linspace(-0.5, 0.5, res, dtype=np.float32)
    X, Y = np.meshgrid(xx, yy)                   # matches np.meshgrid in spec
    return jnp.asarray(np.stack([X.ravel(), Y.ravel()], axis=-1))   # (M, 2)


# -----------------------------------------------------------------------------
# Pure-JAX reference (channels-last, full PyTorch semantics incl. conv biases).
# -----------------------------------------------------------------------------
def _ref_fold(x, params):
    (w1, b1, g1, be1), (w2, b2, g2, be2), (w3, b3) = params
    for (w, bb, g, be) in ((w1, b1, g1, be1), (w2, b2, g2, be2)):
        y = x @ w + bb
        mean = y.mean(axis=(0, 1))
        var = ((y - mean) ** 2).mean(axis=(0, 1))
        x = jnp.maximum((y - mean) / jnp.sqrt(var + BN_EPS) * g + be, 0.0)
    return x @ w3 + b3


def _ref_decoder(x, grid_pts, p1, p2):
    B, C = x.shape
    M = grid_pts.shape[0]
    cw = jnp.broadcast_to(x[:, None, :], (B, M, C))
    g = jnp.broadcast_to(grid_pts[None], (B, M, 2))
    r1 = _ref_fold(jnp.concatenate([g, cw], axis=-1), p1)
    r2 = _ref_fold(jnp.concatenate([r1, cw], axis=-1), p2)
    return jnp.transpose(r2, (0, 2, 1))


if __name__ == "__main__":
    # Small shapes (real module: in_channel=512, hidden=512, grid 100x100).
    B = 2
    IN_CHANNEL = 64
    HIDDEN = 128
    TM = 128

    key = jax.random.PRNGKey(0)
    kx, k1, k2 = jax.random.split(key, 3)
    x = jax.random.normal(kx, (B, IN_CHANNEL), jnp.float32)
    fold1_params = init_fold_params(k1, IN_CHANNEL + 2, HIDDEN, 3)
    fold2_params = init_fold_params(k2, IN_CHANNEL + 3, HIDDEN, 3)

    # 1) f32, M not a multiple of TM -> exercises the masked-stats path.
    grid_a = make_grid(18)                                # M = 324
    ref_a = _ref_decoder(x, grid_a, fold1_params, fold2_params)
    out_a = jax.block_until_ready(
        decoder_forward(x, grid_a, fold1_params, fold2_params,
                        tm=TM, compute_dtype=jnp.float32))
    assert out_a.shape == (B, 3, 324)
    np.testing.assert_allclose(np.asarray(out_a), np.asarray(ref_a),
                               rtol=5e-3, atol=5e-3)

    # 2) f32, M a multiple of TM -> unmasked fast path (the real-shape config,
    #    e.g. tm=2000 dividing M=10000).
    grid_b = make_grid(16)                                # M = 256
    ref_b = _ref_decoder(x, grid_b, fold1_params, fold2_params)
    out_b = jax.block_until_ready(
        decoder_forward(x, grid_b, fold1_params, fold2_params,
                        tm=TM, compute_dtype=jnp.float32))
    np.testing.assert_allclose(np.asarray(out_b), np.asarray(ref_b),
                               rtol=5e-3, atol=5e-3)

    # 3) bf16 MXU fast path (f32 accumulation, f32 BN statistics).  Training-
    #    mode BatchNorm divides by small per-channel batch std, which amplifies
    #    bf16 storage rounding at these toy shapes, so validate with a
    #    relative-RMS criterion rather than elementwise allclose.
    out_c = jax.block_until_ready(
        decoder_forward(x, grid_b, fold1_params, fold2_params,
                        tm=TM, compute_dtype=jnp.bfloat16))
    assert np.isfinite(np.asarray(out_c)).all()
    ref64 = np.asarray(ref_b, np.float64)
    err = np.asarray(out_c, np.float64) - ref64
    rel_rms = float(np.sqrt(np.mean(err ** 2)) / np.sqrt(np.mean(ref64 ** 2)))
    assert rel_rms < 5e-2, f"bf16 rel-RMS error too large: {rel_rms}"

    print("KERNEL_OK")
</pallas_src>

<mosaic_0001>
module attributes {stable_mosaic.version = 11 : i64} {
  func.func @_fold_head_kernel(%arg0: i32, %arg1: i32, %arg2: memref<1x128x2xf32, #tpu.memory_space<vmem>>, %arg3: memref<2x128xf32, #tpu.memory_space<vmem>>, %arg4: memref<1x1x128xf32, #tpu.memory_space<vmem>>, %arg5: memref<1x128xf32, #tpu.memory_space<vmem>>, %arg6: memref<1x128xf32, #tpu.memory_space<vmem>>, %arg7: memref<128x128xf32, #tpu.memory_space<vmem>>, %arg8: memref<1x128x128xf32, #tpu.memory_space<vmem>>, %arg9: memref<1x1x2x128xf32, #tpu.memory_space<vmem>>) attributes {dimension_semantics = [#tpu.dimension_semantics<parallel>, #tpu.dimension_semantics<parallel>], iteration_bounds = array<i64: 2, 3>, scalar_prefetch = 0 : i64, scratch_operands = 0 : i64, tpu.core_type = #tpu.core_type<tc>, window_params = [{transform_indices = @transform_0, window_bounds = array<i64: 1, 128, 2>}, {pipeline_mode = #tpu.pipeline_mode<synchronous>, transform_indices = @transform_1, window_bounds = array<i64: 2, 128>}, {transform_indices = @transform_2, window_bounds = array<i64: 1, 1, 128>}, {pipeline_mode = #tpu.pipeline_mode<synchronous>, transform_indices = @transform_3, window_bounds = array<i64: 1, 128>}, {pipeline_mode = #tpu.pipeline_mode<synchronous>, transform_indices = @transform_4, window_bounds = array<i64: 1, 128>}, {pipeline_mode = #tpu.pipeline_mode<synchronous>, transform_indices = @transform_5, window_bounds = array<i64: 128, 128>}, {transform_indices = @transform_6, window_bounds = array<i64: 1, 128, 128>}, {transform_indices = @transform_7, window_bounds = array<i64: 1, 1, 2, 128>}]} {
    %c0 = arith.constant 0 : index
    %c0_0 = arith.constant 0 : index
    %c0_1 = arith.constant 0 : index
    %0 = vector.load %arg2[%c0, %c0_0, %c0_1] : memref<1x128x2xf32, #tpu.memory_space<vmem>>, vector<1x128x2xf32>
    %1 = vector.shape_cast %0 : vector<1x128x2xf32> to vector<128x2xf32>
    %c0_2 = arith.constant 0 : index
    %c0_3 = arith.constant 0 : index
    %2 = vector.load %arg3[%c0_2, %c0_3] : memref<2x128xf32, #tpu.memory_space<vmem>>, vector<2x128xf32>
    %cst = arith.constant dense<0.000000e+00> : vector<128x128xf32>
    %3 = tpu.matmul %1, %2, %cst {dimension_numbers = #tpu.dot_dimension_numbers<[1], [0], [0], [1], [0, 0, 1, 1], [], []>} : vector<128x2xf32>, vector<2x128xf32>, vector<128x128xf32> -> vector<128x128xf32>
    %c0_4 = arith.constant 0 : index
    %c0_5 = arith.constant 0 : index
    %c0_6 = arith.constant 0 : index
    %4 = vector.load %arg4[%c0_4, %c0_5, %c0_6] : memref<1x1x128xf32, #tpu.memory_space<vmem>>, vector<1x1x128xf32>
    %5 = vector.shape_cast %4 : vector<1x1x128xf32> to vector<1x128xf32>
    %6 = vector.broadcast %5 : vector<1x128xf32> to vector<128x128xf32>
    %7 = arith.addf %3, %6 : vector<128x128xf32>
    %c0_7 = arith.constant 0 : index
    %c0_8 = arith.constant 0 : index
    %8 = vector.load %arg5[%c0_7, %c0_8] : memref<1x128xf32, #tpu.memory_space<vmem>>, vector<1x128xf32>
    %9 = vector.broadcast %8 : vector<1x128xf32> to vector<128x128xf32>
    %10 = arith.mulf %7, %9 : vector<128x128xf32>
    %c0_9 = arith.constant 0 : index
    %c0_10 = arith.constant 0 : index
    %11 = vector.load %arg6[%c0_9, %c0_10] : memref<1x128xf32, #tpu.memory_space<vmem>>, vector<1x128xf32>
    %12 = vector.broadcast %11 : vector<1x128xf32> to vector<128x128xf32>
    %13 = arith.addf %10, %12 : vector<128x128xf32>
    %cst_11 = arith.constant 0.000000e+00 : f32
    %14 = vector.broadcast %cst_11 : f32 to vector<128x128xf32>
    %15 = arith.maximumf %13, %14 : vector<128x128xf32>
    %c0_12 = arith.constant 0 : index
    %c0_13 = arith.constant 0 : index
    %16 = vector.load %arg7[%c0_12, %c0_13] : memref<128x128xf32, #tpu.memory_space<vmem>>, vector<128x128xf32>
    %cst_14 = arith.constant dense<0.000000e+00> : vector<128x128xf32>
    %17 = tpu.matmul %15, %16, %cst_14 {dimension_numbers = #tpu.dot_dimension_numbers<[1], [0], [0], [1], [0, 0, 1, 1], [], []>} : vector<128x128xf32>, vector<128x128xf32>, vector<128x128xf32> -> vector<128x128xf32>
    %c0_15 = arith.constant 0 : index
    %c0_16 = arith.constant 0 : index
    %c0_17 = arith.constant 0 : index
    %18 = vector.load %arg8[%c0_15, %c0_16, %c0_17] : memref<1x128x128xf32, #tpu.memory_space<vmem>>, vector<1x128x128xf32>
    %19 = vector.shape_cast %18 : vector<1x128x128xf32> to vector<128x128xf32>
    %20 = vector.shape_cast %17 : vector<128x128xf32> to vector<1x128x128xf32>
    tpu.vector_store %arg8[%c0_15, %c0_16, %c0_17], %20 {strides = array<i32>} : memref<1x128x128xf32, #tpu.memory_space<vmem>>, vector<1x128x128xf32>,
    %c128_i32 = arith.constant 128 : i32
    %21 = arith.muli %arg1, %c128_i32 : i32
    %22 = tpu.iota {dimensions = array<i32: 0>} : vector<128x1xi32>
    %23 = vector.broadcast %21 : i32 to vector<128x1xi32>
    %24 = arith.addi %23, %22 : vector<128x1xi32>
    %c324_i32 = arith.constant 324 : i32
    %25 = vector.broadcast %c324_i32 : i32 to vector<128x1xi32>
    %26 = arith.cmpi slt, %24, %25 : vector<128x1xi32>
    %cst_18 = arith.constant 0.000000e+00 : f32
    %27 = vector.shape_cast %26 : vector<128x1xi1> to vector<128x1xi1>
    %28 = vector.broadcast %27 : vector<128x1xi1> to vector<128x128xi1>
    %29 = vector.broadcast %cst_18 : f32 to vector<128x128xf32>
    %30 = arith.select %28, %17, %29 : vector<128x128xi1>, vector<128x128xf32>
    %cst_19 = arith.constant dense<0.000000e+00> : vector<128xf32>
    %31 = vector.multi_reduction <add>, %30, %cst_19 [0] : vector<128x128xf32> to vector<128xf32>
    %32 = vector.shape_cast %31 : vector<128xf32> to vector<1x128xf32>
    %c0_20 = arith.constant 0 : index
    %c0_21 = arith.constant 0 : index
    %c0_22 = arith.constant 0 : index
    %c0_23 = arith.constant 0 : index
    %33 = vector.load %arg9[%c0_20, %c0_21, %c0_22, %c0_23] : memref<1x1x2x128xf32, #tpu.memory_space<vmem>>, vector<1x1x1x128xf32>
    %34 = vector.shape_cast %33 : vector<1x1x1x128xf32> to vector<1x128xf32>
    %35 = vector.shape_cast %32 : vector<1x128xf32> to vector<1x1x1x128xf32>
    tpu.vector_store %arg9[%c0_20, %c0_21, %c0_22, %c0_23], %35 {strides = array<i32>} : memref<1x1x2x128xf32, #tpu.memory_space<vmem>>, vector<1x1x1x128xf32>,
    %36 = arith.mulf %30, %30 : vector<128x128xf32>
    %cst_24 = arith.constant dense<0.000000e+00> : vector<128xf32>
    %37 = vector.multi_reduction <add>, %36, %cst_24 [0] : vector<128x128xf32> to vector<128xf32>
    %38 = vector.shape_cast %37 : vector<128xf32> to vector<1x128xf32>
    %c0_25 = arith.constant 0 : index
    %c0_26 = arith.constant 0 : index
    %c1 = arith.constant 1 : index
    %c0_27 = arith.constant 0 : index
    %39 = vector.load %arg9[%c0_25, %c0_26, %c1, %c0_27] : memref<1x1x2x128xf32, #tpu.memory_space<vmem>>, vector<1x1x1x128xf32>
    %40 = vector.shape_cast %39 : vector<1x1x1x128xf32> to vector<1x128xf32>
    %41 = vector.shape_cast %38 : vector<1x128xf32> to vector<1x1x1x128xf32>
    tpu.vector_store %arg9[%c0_25, %c0_26, %c1, %c0_27], %41 {strides = array<i32>} : memref<1x1x2x128xf32, #tpu.memory_space<vmem>>, vector<1x1x1x128xf32>,
    return
  }
  func.func @transform_0(%arg0: i32, %arg1: i32) -> (i32, i32, i32) {
    %c0_i32 = arith.constant 0 : i32
    %c0_i32_0 = arith.constant 0 : i32
    %c0_i32_1 = arith.constant 0 : i32
    return %c0_i32, %arg1, %c0_i32_0 : i32, i32, i32
  }
  func.func @transform_1(%arg0: i32, %arg1: i32) -> (i32, i32) {
    %c0_i32 = arith.constant 0 : i32
    %c0_i32_0 = arith.constant 0 : i32
    %c0_i32_1 = arith.constant 0 : i32
    return %c0_i32, %c0_i32_0 : i32, i32
  }
  func.func @transform_2(%arg0: i32, %arg1: i32) -> (i32, i32, i32) {
    %c0_i32 = arith.constant 0 : i32
    %c0_i32_0 = arith.constant 0 : i32
    %c0_i32_1 = arith.constant 0 : i32
    return %arg0, %c0_i32, %c0_i32_0 : i32, i32, i32
  }
  func.func @transform_3(%arg0: i32, %arg1: i32) -> (i32, i32) {
    %c0_i32 = arith.constant 0 : i32
    %c0_i32_0 = arith.constant 0 : i32
    %c0_i32_1 = arith.constant 0 : i32
    return %c0_i32, %c0_i32_0 : i32, i32
  }
  func.func @transform_4(%arg0: i32, %arg1: i32) -> (i32, i32) {
    %c0_i32 = arith.constant 0 : i32
    %c0_i32_0 = arith.constant 0 : i32
    %c0_i32_1 = arith.constant 0 : i32
    return %c0_i32, %c0_i32_0 : i32, i32
  }
  func.func @transform_5(%arg0: i32, %arg1: i32) -> (i32, i32) {
    %c0_i32 = arith.constant 0 : i32
    %c0_i32_0 = arith.constant 0 : i32
    %c0_i32_1 = arith.constant 0 : i32
    return %c0_i32, %c0_i32_0 : i32, i32
  }
  func.func @transform_6(%arg0: i32, %arg1: i32) -> (i32, i32, i32) {
    %c0_i32 = arith.constant 0 : i32
    %c0_i32_0 = arith.constant 0 : i32
    return %arg0, %arg1, %c0_i32 : i32, i32, i32
  }
  func.func @transform_7(%arg0: i32, %arg1: i32) -> (i32, i32, i32, i32) {
    %c0_i32 = arith.constant 0 : i32
    %c0_i32_0 = arith.constant 0 : i32
    %c0_i32_1 = arith.constant 0 : i32
    return %arg0, %arg1, %c0_i32, %c0_i32_0 : i32, i32, i32, i32
  }
}

module attributes {stable_mosaic.version = 11 : i64} {
  func.func @_fold_tail_kernel(%arg0: i32, %arg1: i32, %arg2: memref<1x128x128xf32, #tpu.memory_space<vmem>>, %arg3: memref<1x128xf32, #tpu.memory_space<vmem>>, %arg4: memref<1x128xf32, #tpu.memory_space<vmem>>, %arg5: memref<128x3xf32, #tpu.memory_space<vmem>>, %arg6: memref<1x3xf32, #tpu.memory_space<vmem>>, %arg7: memref<1x128x3xf32, #tpu.memory_space<vmem>>) attributes {dimension_semantics = [#tpu.dimension_semantics<parallel>, #tpu.dimension_semantics<parallel>], iteration_bounds = array<i64: 2, 3>, scalar_prefetch = 0 : i64, scratch_operands = 0 : i64, tpu.core_type = #tpu.core_type<tc>, window_params = [{transform_indices = @transform_0, window_bounds = array<i64: 1, 128, 128>}, {pipeline_mode = #tpu.pipeline_mode<synchronous>, transform_indices = @transform_1, window_bounds = array<i64: 1, 128>}, {pipeline_mode = #tpu.pipeline_mode<synchronous>, transform_indices = @transform_2, window_bounds = array<i64: 1, 128>}, {pipeline_mode = #tpu.pipeline_mode<synchronous>, transform_indices = @transform_3, window_bounds = array<i64: 128, 3>}, {pipeline_mode = #tpu.pipeline_mode<synchronous>, transform_indices = @transform_4, window_bounds = array<i64: 1, 3>}, {transform_indices = @transform_5, window_bounds = array<i64: 1, 128, 3>}]} {
    %c0 = arith.constant 0 : index
    %c0_0 = arith.constant 0 : index
    %c0_1 = arith.constant 0 : index
    %0 = vector.load %arg2[%c0, %c0_0, %c0_1] : memref<1x128x128xf32, #tpu.memory_space<vmem>>, vector<1x128x128xf32>
    %1 = vector.shape_cast %0 : vector<1x128x128xf32> to vector<128x128xf32>
    %c0_2 = arith.constant 0 : index
    %c0_3 = arith.constant 0 : index
    %2 = vector.load %arg3[%c0_2, %c0_3] : memref<1x128xf32, #tpu.memory_space<vmem>>, vector<1x128xf32>
    %3 = vector.broadcast %2 : vector<1x128xf32> to vector<128x128xf32>
    %4 = arith.mulf %1, %3 : vector<128x128xf32>
    %c0_4 = arith.constant 0 : index
    %c0_5 = arith.constant 0 : index
    %5 = vector.load %arg4[%c0_4, %c0_5] : memref<1x128xf32, #tpu.memory_space<vmem>>, vector<1x128xf32>
    %6 = vector.broadcast %5 : vector<1x128xf32> to vector<128x128xf32>
    %7 = arith.addf %4, %6 : vector<128x128xf32>
    %cst = arith.constant 0.000000e+00 : f32
    %8 = vector.broadcast %cst : f32 to vector<128x128xf32>
    %9 = arith.maximumf %7, %8 : vector<128x128xf32>
    %c0_6 = arith.constant 0 : index
    %c0_7 = arith.constant 0 : index
    %10 = vector.load %arg5[%c0_6, %c0_7] : memref<128x3xf32, #tpu.memory_space<vmem>>, vector<128x3xf32>
    %cst_8 = arith.constant dense<0.000000e+00> : vector<128x3xf32>
    %11 = tpu.matmul %9, %10, %cst_8 {dimension_numbers = #tpu.dot_dimension_numbers<[1], [0], [0], [1], [0, 0, 1, 1], [], []>} : vector<128x128xf32>, vector<128x3xf32>, vector<128x3xf32> -> vector<128x3xf32>
    %c0_9 = arith.constant 0 : index
    %c0_10 = arith.constant 0 : index
    %12 = vector.load %arg6[%c0_9, %c0_10] : memref<1x3xf32, #tpu.memory_space<vmem>>, vector<1x3xf32>
    %13 = vector.broadcast %12 : vector<1x3xf32> to vector<128x3xf32>
    %14 = arith.addf %11, %13 : vector<128x3xf32>
    %c0_11 = arith.constant 0 : index
    %c0_12 = arith.constant 0 : index
    %c0_13 = arith.constant 0 : index
    %15 = vector.load %arg7[%c0_11, %c0_12, %c0_13] : memref<1x128x3xf32, #tpu.memory_space<vmem>>, vector<1x128x3xf32>
    %16 = vector.shape_cast %15 : vector<1x128x3xf32> to vector<128x3xf32>
    %17 = vector.shape_cast %14 : vector<128x3xf32> to vector<1x128x3xf32>
    tpu.vector_store %arg7[%c0_11, %c0_12, %c0_13], %17 {strides = array<i32>} : memref<1x128x3xf32, #tpu.memory_space<vmem>>, vector<1x128x3xf32>,
    return
  }
  func.func @transform_0(%arg0: i32, %arg1: i32) -> (i32, i32, i32) {
    %c0_i32 = arith.constant 0 : i32
    %c0_i32_0 = arith.constant 0 : i32
    return %arg0, %arg1, %c0_i32 : i32, i32, i32
  }
  func.func @transform_1(%arg0: i32, %arg1: i32) -> (i32, i32) {
    %c0_i32 = arith.constant 0 : i32
    %c0_i32_0 = arith.constant 0 : i32
    %c0_i32_1 = arith.constant 0 : i32
    return %c0_i32, %c0_i32_0 : i32, i32
  }
  func.func @transform_2(%arg0: i32, %arg1: i32) -> (i32, i32) {
    %c0_i32 = arith.constant 0 : i32
    %c0_i32_0 = arith.constant 0 : i32
    %c0_i32_1 = arith.constant 0 : i32
    return %c0_i32, %c0_i32_0 : i32, i32
  }
  func.func @transform_3(%arg0: i32, %arg1: i32) -> (i32, i32) {
    %c0_i32 = arith.constant 0 : i32
    %c0_i32_0 = arith.constant 0 : i32
    %c0_i32_1 = arith.constant 0 : i32
    return %c0_i32, %c0_i32_0 : i32, i32
  }
  func.func @transform_4(%arg0: i32, %arg1: i32) -> (i32, i32) {
    %c0_i32 = arith.constant 0 : i32
    %c0_i32_0 = arith.constant 0 : i32
    %c0_i32_1 = arith.constant 0 : i32
    return %c0_i32, %c0_i32_0 : i32, i32
  }
  func.func @transform_5(%arg0: i32, %arg1: i32) -> (i32, i32, i32) {
    %c0_i32 = arith.constant 0 : i32
    %c0_i32_0 = arith.constant 0 : i32
    return %arg0, %arg1, %c0_i32 : i32, i32, i32
  }
}

module attributes {stable_mosaic.version = 11 : i64} {
  func.func @_fold_head_kernel(%arg0: i32, %arg1: i32, %arg2: memref<1x128x3xf32, #tpu.memory_space<vmem>>, %arg3: memref<3x128xf32, #tpu.memory_space<vmem>>, %arg4: memref<1x1x128xf32, #tpu.memory_space<vmem>>, %arg5: memref<1x128xf32, #tpu.memory_space<vmem>>, %arg6: memref<1x128xf32, #tpu.memory_space<vmem>>, %arg7: memref<128x128xf32, #tpu.memory_space<vmem>>, %arg8: memref<1x128x128xf32, #tpu.memory_space<vmem>>, %arg9: memref<1x1x2x128xf32, #tpu.memory_space<vmem>>) attributes {dimension_semantics = [#tpu.dimension_semantics<parallel>, #tpu.dimension_semantics<parallel>], iteration_bounds = array<i64: 2, 3>, scalar_prefetch = 0 : i64, scratch_operands = 0 : i64, tpu.core_type = #tpu.core_type<tc>, window_params = [{transform_indices = @transform_0, window_bounds = array<i64: 1, 128, 3>}, {pipeline_mode = #tpu.pipeline_mode<synchronous>, transform_indices = @transform_1, window_bounds = array<i64: 3, 128>}, {transform_indices = @transform_2, window_bounds = array<i64: 1, 1, 128>}, {pipeline_mode = #tpu.pipeline_mode<synchronous>, transform_indices = @transform_3, window_bounds = array<i64: 1, 128>}, {pipeline_mode = #tpu.pipeline_mode<synchronous>, transform_indices = @transform_4, window_bounds = array<i64: 1, 128>}, {pipeline_mode = #tpu.pipeline_mode<synchronous>, transform_indices = @transform_5, window_bounds = array<i64: 128, 128>}, {transform_indices = @transform_6, window_bounds = array<i64: 1, 128, 128>}, {transform_indices = @transform_7, window_bounds = array<i64: 1, 1, 2, 128>}]} {
    %c0 = arith.constant 0 : index
    %c0_0 = arith.constant 0 : index
    %c0_1 = arith.constant 0 : index
    %0 = vector.load %arg2[%c0, %c0_0, %c0_1] : memref<1x128x3xf32, #tpu.memory_space<vmem>>, vector<1x128x3xf32>
    %1 = vector.shape_cast %0 : vector<1x128x3xf32> to vector<128x3xf32>
    %c0_2 = arith.constant 0 : index
    %c0_3 = arith.constant 0 : index
    %2 = vector.load %arg3[%c0_2, %c0_3] : memref<3x128xf32, #tpu.memory_space<vmem>>, vector<3x128xf32>
    %cst = arith.constant dense<0.000000e+00> : vector<128x128xf32>
    %3 = tpu.matmul %1, %2, %cst {dimension_numbers = #tpu.dot_dimension_numbers<[1], [0], [0], [1], [0, 0, 1, 1], [], []>} : vector<128x3xf32>, vector<3x128xf32>, vector<128x128xf32> -> vector<128x128xf32>
    %c0_4 = arith.constant 0 : index
    %c0_5 = arith.constant 0 : index
    %c0_6 = arith.constant 0 : index
    %4 = vector.load %arg4[%c0_4, %c0_5, %c0_6] : memref<1x1x128xf32, #tpu.memory_space<vmem>>, vector<1x1x128xf32>
    %5 = vector.shape_cast %4 : vector<1x1x128xf32> to vector<1x128xf32>
    %6 = vector.broadcast %5 : vector<1x128xf32> to vector<128x128xf32>
    %7 = arith.addf %3, %6 : vector<128x128xf32>
    %c0_7 = arith.constant 0 : index
    %c0_8 = arith.constant 0 : index
    %8 = vector.load %arg5[%c0_7, %c0_8] : memref<1x128xf32, #tpu.memory_space<vmem>>, vector<1x128xf32>
    %9 = vector.broadcast %8 : vector<1x128xf32> to vector<128x128xf32>
    %10 = arith.mulf %7, %9 : vector<128x128xf32>
    %c0_9 = arith.constant 0 : index
    %c0_10 = arith.constant 0 : index
    %11 = vector.load %arg6[%c0_9, %c0_10] : memref<1x128xf32, #tpu.memory_space<vmem>>, vector<1x128xf32>
    %12 = vector.broadcast %11 : vector<1x128xf32> to vector<128x128xf32>
    %13 = arith.addf %10, %12 : vector<128x128xf32>
    %cst_11 = arith.constant 0.000000e+00 : f32
    %14 = vector.broadcast %cst_11 : f32 to vector<128x128xf32>
    %15 = arith.maximumf %13, %14 : vector<128x128xf32>
    %c0_12 = arith.constant 0 : index
    %c0_13 = arith.constant 0 : index
    %16 = vector.load %arg7[%c0_12, %c0_13] : memref<128x128xf32, #tpu.memory_space<vmem>>, vector<128x128xf32>
    %cst_14 = arith.constant dense<0.000000e+00> : vector<128x128xf32>
    %17 = tpu.matmul %15, %16, %cst_14 {dimension_numbers = #tpu.dot_dimension_numbers<[1], [0], [0], [1], [0, 0, 1, 1], [], []>} : vector<128x128xf32>, vector<128x128xf32>, vector<128x128xf32> -> vector<128x128xf32>
    %c0_15 = arith.constant 0 : index
    %c0_16 = arith.constant 0 : index
    %c0_17 = arith.constant 0 : index
    %18 = vector.load %arg8[%c0_15, %c0_16, %c0_17] : memref<1x128x128xf32, #tpu.memory_space<vmem>>, vector<1x128x128xf32>
    %19 = vector.shape_cast %18 : vector<1x128x128xf32> to vector<128x128xf32>
    %20 = vector.shape_cast %17 : vector<128x128xf32> to vector<1x128x128xf32>
    tpu.vector_store %arg8[%c0_15, %c0_16, %c0_17], %20 {strides = array<i32>} : memref<1x128x128xf32, #tpu.memory_space<vmem>>, vector<1x128x128xf32>,
    %c128_i32 = arith.constant 128 : i32
    %21 = arith.muli %arg1, %c128_i32 : i32
    %22 = tpu.iota {dimensions = array<i32: 0>} : vector<128x1xi32>
    %23 = vector.broadcast %21 : i32 to vector<128x1xi32>
    %24 = arith.addi %23, %22 : vector<128x1xi32>
    %c324_i32 = arith.constant 324 : i32
    %25 = vector.broadcast %c324_i32 : i32 to vector<128x1xi32>
    %26 = arith.cmpi slt, %24, %25 : vector<128x1xi32>
    %cst_18 = arith.constant 0.000000e+00 : f32
    %27 = vector.shape_cast %26 : vector<128x1xi1> to vector<128x1xi1>
    %28 = vector.broadcast %27 : vector<128x1xi1> to vector<128x128xi1>
    %29 = vector.broadcast %cst_18 : f32 to vector<128x128xf32>
    %30 = arith.select %28, %17, %29 : vector<128x128xi1>, vector<128x128xf32>
    %cst_19 = arith.constant dense<0.000000e+00> : vector<128xf32>
    %31 = vector.multi_reduction <add>, %30, %cst_19 [0] : vector<128x128xf32> to vector<128xf32>
    %32 = vector.shape_cast %31 : vector<128xf32> to vector<1x128xf32>
    %c0_20 = arith.constant 0 : index
    %c0_21 = arith.constant 0 : index
    %c0_22 = arith.constant 0 : index
    %c0_23 = arith.constant 0 : index
    %33 = vector.load %arg9[%c0_20, %c0_21, %c0_22, %c0_23] : memref<1x1x2x128xf32, #tpu.memory_space<vmem>>, vector<1x1x1x128xf32>
    %34 = vector.shape_cast %33 : vector<1x1x1x128xf32> to vector<1x128xf32>
    %35 = vector.shape_cast %32 : vector<1x128xf32> to vector<1x1x1x128xf32>
    tpu.vector_store %arg9[%c0_20, %c0_21, %c0_22, %c0_23], %35 {strides = array<i32>} : memref<1x1x2x128xf32, #tpu.memory_space<vmem>>, vector<1x1x1x128xf32>,
    %36 = arith.mulf %30, %30 : vector<128x128xf32>
    %cst_24 = arith.constant dense<0.000000e+00> : vector<128xf32>
    %37 = vector.multi_reduction <add>, %36, %cst_24 [0] : vector<128x128xf32> to vector<128xf32>
    %38 = vector.shape_cast %37 : vector<128xf32> to vector<1x128xf32>
    %c0_25 = arith.constant 0 : index
    %c0_26 = arith.constant 0 : index
    %c1 = arith.constant 1 : index
    %c0_27 = arith.constant 0 : index
    %39 = vector.load %arg9[%c0_25, %c0_26, %c1, %c0_27] : memref<1x1x2x128xf32, #tpu.memory_space<vmem>>, vector<1x1x1x128xf32>
    %40 = vector.shape_cast %39 : vector<1x1x1x128xf32> to vector<1x128xf32>
    %41 = vector.shape_cast %38 : vector<1x128xf32> to vector<1x1x1x128xf32>
    tpu.vector_store %arg9[%c0_25, %c0_26, %c1, %c0_27], %41 {strides = array<i32>} : memref<1x1x2x128xf32, #tpu.memory_space<vmem>>, vector<1x1x1x128xf32>,
    return
  }
  func.func @transform_0(%arg0: i32, %arg1: i32) -> (i32, i32, i32) {
    %c0_i32 = arith.constant 0 : i32
    %c0_i32_0 = arith.constant 0 : i32
    return %arg0, %arg1, %c0_i32 : i32, i32, i32
  }
  func.func @transform_1(%arg0: i32, %arg1: i32) -> (i32, i32) {
    %c0_i32 = arith.constant 0 : i32
    %c0_i32_0 = arith.constant 0 : i32
    %c0_i32_1 = arith.constant 0 : i32
    return %c0_i32, %c0_i32_0 : i32, i32
  }
  func.func @transform_2(%arg0: i32, %arg1: i32) -> (i32, i32, i32) {
    %c0_i32 = arith.constant 0 : i32
    %c0_i32_0 = arith.constant 0 : i32
    %c0_i32_1 = arith.constant 0 : i32
    return %arg0, %c0_i32, %c0_i32_0 : i32, i32, i32
  }
  func.func @transform_3(%arg0: i32, %arg1: i32) -> (i32, i32) {
    %c0_i32 = arith.constant 0 : i32
    %c0_i32_0 = arith.constant 0 : i32
    %c0_i32_1 = arith.constant 0 : i32
    return %c0_i32, %c0_i32_0 : i32, i32
  }
  func.func @transform_4(%arg0: i32, %arg1: i32) -> (i32, i32) {
    %c0_i32 = arith.constant 0 : i32
    %c0_i32_0 = arith.constant 0 : i32
    %c0_i32_1 = arith.constant 0 : i32
    return %c0_i32, %c0_i32_0 : i32, i32
  }
  func.func @transform_5(%arg0: i32, %arg1: i32) -> (i32, i32) {
    %c0_i32 = arith.constant 0 : i32
    %c0_i32_0 = arith.constant 0 : i32
    %c0_i32_1 = arith.constant 0 : i32
    return %c0_i32, %c0_i32_0 : i32, i32
  }
  func.func @transform_6(%arg0: i32, %arg1: i32) -> (i32, i32, i32) {
    %c0_i32 = arith.constant 0 : i32
    %c0_i32_0 = arith.constant 0 : i32
    return %arg0, %arg1, %c0_i32 : i32, i32, i32
  }
  func.func @transform_7(%arg0: i32, %arg1: i32) -> (i32, i32, i32, i32) {
    %c0_i32 = arith.constant 0 : i32
    %c0_i32_0 = arith.constant 0 : i32
    %c0_i32_1 = arith.constant 0 : i32
    return %arg0, %arg1, %c0_i32, %c0_i32_0 : i32, i32, i32, i32
  }
}

</mosaic_0001>

<llo_original>
// kernel: decoder_forward.5
$region0: #{decoder_forward.5}
  #allocation0 [shape = 'u32[]', space=smem, size = 0x4, offset = 0x4, fixed_abs, tag = 'smem constant byte address 0x4 - core index']
  #allocation1 [shape = 'u32[144,128]{1,0:T(1,128)}', space=vmem, size = 0x12000, scoped, tag = 'internal scratch']
  %s0 = inlined_call_operand.vmem [shape: f32[2,324,128], index: 0, kind: input, shape index: {}]
  %s1 = inlined_call_operand.vmem [shape: f32[1,128], index: 1, kind: input, shape index: {}]
  %s2 = inlined_call_operand.vmem [shape: f32[1,128], index: 2, kind: input, shape index: {}]
  %s3 = inlined_call_operand.vmem [shape: f32[128,3], index: 3, kind: input, shape index: {}]
  %s4 = inlined_call_operand.vmem [shape: f32[1,3], index: 4, kind: input, shape index: {}]
  %s5 = inlined_call_operand.vmem [shape: f32[2,324,3], index: 5, kind: output, shape index: {}]
  %s6 = sld [smem:[#allocation0]]
  $region101: #{decoder_forward.5} parent=0
    _
  %s8 = ssub.s32 1, %s6
  %s9 = scalar_select 0, %s8, %s6
  $region1: #{decoder_forward.5} parent=0
    #allocation2 [shape = 'u8[131072]{0}', space=vmem, size = 0x20000, scoped, tag = 'output window, operand 0']
    loop: start=0, step=1, limit=8
    $region2: #{decoder_forward.5} parent=1 // loop_pre_header
      _
    $region3: #{decoder_forward.5} parent=1 // loop_header
      %s11 = sphi 0, %s15
      %p12 = scmp.ge.s32.totalorder %s11, 8
      %s18 = sphi 0, %s30
      %s19 = sphi 0, %s26
      %s20 = sphi 0, %s18
      %s21 = sphi 0, %s19
      %s22 = sphi 0, %s20
      %s23 = sphi 0, %s21
      %s35 = sphi 0, %s37
      %s38 = sphi 0, %s35
      %s39 = sphi 0, %s38
      %s55 = sphi 0, %s39
      %s59 = sphi 0, %s59
      %s61 = sphi 0, %s59
      %s62 = sphi 0, %s61
      %s76 = sphi 0, %s62
      %s80 = sphi 0, %s80
      %s82 = sphi 0, %s80
      %s83 = sphi 0, %s82
      %s97 = sphi 0, %s83
      %s101 = sphi 0, %s101
      %s103 = sphi 0, %s101
      %s104 = sphi 0, %s103
      %s118 = sphi 0, %s104
      %s122 = sphi 0, %s122
      %s124 = sphi 0, %s122
      %s125 = sphi 0, %s124
      %s139 = sphi 0, %s125
      %s147 = sphi 0, %s149
      %s150 = sphi 0, %s147
      %s151 = sphi 0, %s150
      %s167 = sphi 0, %s151
    $region4: #{decoder_forward.5} parent=1 // loop_header_branch
      %14 = sbr.rel (%p12) target = $region8
    $region5: #{decoder_forward.5} parent=1 // loop_body
      %s16 = ssub.s32 %s11, 1
      %s17 = ssub.s32 %s11, 2
      %s24 = sadd.s32 1, %s19
      %p25 = scmp.ge.s32.totalorder %s24, 3
      %s26 = scalar_select %p25, 0, %s24
      %s27 = sadd.s32 1, %s18
      %s28 = scalar_select %p25, %s27, %s18
      %p29 = scmp.ge.s32.totalorder %s28, 2
      %s30 = scalar_select %p29, 0, %s28
      %s31 = ssub.s32 %s18, %s30
      %s32 = ssub.s32 %s19, %s26
      %s33 = sor.u32 %s31, %s32
      %p34 = scmp.eq.s32.totalorder %s33, 0
      %s36 = sadd.s32 %s35, 1
      %s37 = scalar_select %p34, %s35, %s36
      %p40 = pneg %p34
      %p41 = scmp.eq.s32.totalorder %s11, 5
      %p42 = por %p40, %p41
      %p43 = scmp.ne.s32.totalorder %s35, %s38
      %p44 = scmp.eq.s32.totalorder %s11, 0
      %p45 = por %p43, %p44
      %p46 = scmp.ne.s32.totalorder %s35, %s38
      %p47 = scmp.eq.s32.totalorder %s16, 5
      %p48 = por %p46, %p47
      %p49 = scmp.ne.s32.totalorder %s38, %s39
      %p50 = scmp.eq.s32.totalorder %s16, 0
      %p51 = por %p49, %p50
      %p52 = scmp.ne.s32.totalorder %s38, %s39
      %p53 = scmp.eq.s32.totalorder %s17, 5
      %p54 = por %p52, %p53
      %p56 = scmp.ne.s32.totalorder %s39, %s55
      %p57 = scmp.eq.s32.totalorder %s17, 0
      %p58 = por %p56, %p57
      %s60 = sadd.s32 %s59, 1
      %p63 = scmp.eq.s32.totalorder %s11, 5
      %p64 = scmp.ne.s32.totalorder %s59, %s61
      %p65 = scmp.eq.s32.totalorder %s11, 0
      %p66 = por %p64, %p65
      %p67 = scmp.ne.s32.totalorder %s59, %s61
      %p68 = scmp.eq.s32.totalorder %s16, 5
      %p69 = por %p67, %p68
      %p70 = scmp.ne.s32.totalorder %s61, %s62
      %p71 = scmp.eq.s32.totalorder %s16, 0
      %p72 = por %p70, %p71
      %p73 = scmp.ne.s32.totalorder %s61, %s62
      %p74 = scmp.eq.s32.totalorder %s17, 5
      %p75 = por %p73, %p74
      %p77 = scmp.ne.s32.totalorder %s62, %s76
      %p78 = scmp.eq.s32.totalorder %s17, 0
      %p79 = por %p77, %p78
      %s81 = sadd.s32 %s80, 1
      %p84 = scmp.eq.s32.totalorder %s11, 5
      %p85 = scmp.ne.s32.totalorder %s80, %s82
      %p86 = scmp.eq.s32.totalorder %s11, 0
      %p87 = por %p85, %p86
      %p88 = scmp.ne.s32.totalorder %s80, %s82
      %p89 = scmp.eq.s32.totalorder %s16, 5
      %p90 = por %p88, %p89
      %p91 = scmp.ne.s32.totalorder %s82, %s83
      %p92 = scmp.eq.s32.totalorder %s16, 0
      %p93 = por %p91, %p92
      %p94 = scmp.ne.s32.totalorder %s82, %s83
      %p95 = scmp.eq.s32.totalorder %s17, 5
      %p96 = por %p94, %p95
      %p98 = scmp.ne.s32.totalorder %s83, %s97
      %p99 = scmp.eq.s32.totalorder %s17, 0
      %p100 = por %p98, %p99
      %s102 = sadd.s32 %s101, 1
      %p105 = scmp.eq.s32.totalorder %s11, 5
      %p106 = scmp.ne.s32.totalorder %s101, %s103
      %p107 = scmp.eq.s32.totalorder %s11, 0
      %p108 = por %p106, %p107
      %p109 = scmp.ne.s32.totalorder %s101, %s103
      %p110 = scmp.eq.s32.totalorder %s16, 5
      %p111 = por %p109, %p110
      %p112 = scmp.ne.s32.totalorder %s103, %s104
      %p113 = scmp.eq.s32.totalorder %s16, 0
      %p114 = por %p112, %p113
      %p115 = scmp.ne.s32.totalorder %s103, %s104
      %p116 = scmp.eq.s32.totalorder %s17, 5
      %p117 = por %p115, %p116
      %p119 = scmp.ne.s32.totalorder %s104, %s118
      %p120 = scmp.eq.s32.totalorder %s17, 0
      %p121 = por %p119, %p120
      %s123 = sadd.s32 %s122, 1
      %p126 = scmp.eq.s32.totalorder %s11, 5
      %p127 = scmp.ne.s32.totalorder %s122, %s124
      %p128 = scmp.eq.s32.totalorder %s11, 0
      %p129 = por %p127, %p128
      %p130 = scmp.ne.s32.totalorder %s122, %s124
      %p131 = scmp.eq.s32.totalorder %s16, 5
      %p132 = por %p130, %p131
      %p133 = scmp.ne.s32.totalorder %s124, %s125
      %p134 = scmp.eq.s32.totalorder %s16, 0
      %p135 = por %p133, %p134
      %p136 = scmp.ne.s32.totalorder %s124, %s125
      %p137 = scmp.eq.s32.totalorder %s17, 5
      %p138 = por %p136, %p137
      %p140 = scmp.ne.s32.totalorder %s125, %s139
      %p141 = scmp.eq.s32.totalorder %s17, 0
      %p142 = por %p140, %p141
      %s143 = ssub.s32 %s18, %s30
      %s144 = ssub.s32 %s19, %s26
      %s145 = sor.u32 %s143, %s144
      %p146 = scmp.eq.s32.totalorder %s145, 0
      %s148 = sadd.s32 %s147, 1
      %s149 = scalar_select %p146, %s147, %s148
      %p152 = pneg %p146
      %p153 = scmp.eq.s32.totalorder %s11, 5
      %p154 = por %p152, %p153
      %p155 = scmp.ne.s32.totalorder %s147, %s150
      %p156 = scmp.eq.s32.totalorder %s11, 0
      %p157 = por %p155, %p156
      %p158 = scmp.ne.s32.totalorder %s147, %s150
      %p159 = scmp.eq.s32.totalorder %s16, 5
      %p160 = por %p158, %p159
      %p161 = scmp.ne.s32.totalorder %s150, %s151
      %p162 = scmp.eq.s32.totalorder %s16, 0
      %p163 = por %p161, %p162
      %p164 = scmp.ne.s32.totalorder %s150, %s151
      %p165 = scmp.eq.s32.totalorder %s17, 5
      %p166 = por %p164, %p165
      %p168 = scmp.ne.s32.totalorder %s151, %s167
      %p169 = scmp.eq.s32.totalorder %s17, 0
      %p170 = por %p168, %p169
      %p171 = scmp.le.s32.totalorder 1, %s11
      %p172 = scmp.lt.s32.totalorder %s11, 7
      %p173 = pnand %p171, %p172
      %p174 = pneg %p173
      // Predicated region
      $region9: #{decoder_forward.5} parent=5 // pred_check
        _
      $region10: #{decoder_forward.5} parent=5 // pred_check_branch
        %176 = sbr.rel (%p173) target = $region12
      $region11: #{decoder_forward.5} parent=5 // pred_region
        %s177 = ssub.s32 %s11, 1
        // Predicated region
        $region13: #{decoder_forward.5} parent=11 // pred_check
          %p178 = pneg %p72
        $region14: #{decoder_forward.5} parent=11 // pred_check_branch
          %180 = sbr.rel (%p178) target = $region16
        $region15: #{decoder_forward.5} parent=11 // pred_region
          _
        $region16: #{decoder_forward.5} parent=11 // pred_fallthru
          _
        // Predicated region
        $region17: #{decoder_forward.5} parent=11 // pred_check
          %p181 = pneg %p93
        $region18: #{decoder_forward.5} parent=11 // pred_check_branch
          %183 = sbr.rel (%p181) target = $region20
        $region19: #{decoder_forward.5} parent=11 // pred_region
          _
        $region20: #{decoder_forward.5} parent=11 // pred_fallthru
          _
        // Predicated region
        $region21: #{decoder_forward.5} parent=11 // pred_check
          %p184 = pneg %p114
        $region22: #{decoder_forward.5} parent=11 // pred_check_branch
          %186 = sbr.rel (%p184) target = $region24
        $region23: #{decoder_forward.5} parent=11 // pred_region
          _
        $region24: #{decoder_forward.5} parent=11 // pred_fallthru
          _
        // Predicated region
        $region25: #{decoder_forward.5} parent=11 // pred_check
          %p187 = pneg %p135
        $region26: #{decoder_forward.5} parent=11 // pred_check_branch
          %189 = sbr.rel (%p187) target = $region28
        $region27: #{decoder_forward.5} parent=11 // pred_region
          _
        $region28: #{decoder_forward.5} parent=11 // pred_fallthru
          _
      $region12: #{decoder_forward.5} parent=5 // pred_fallthru
        _
      %p190 = scmp.lt.s32.totalorder %s11, 6
      // Predicated region
      $region29: #{decoder_forward.5} parent=5 // pred_check
        %p191 = pneg %p190
      $region30: #{decoder_forward.5} parent=5 // pred_check_branch
        %193 = sbr.rel (%p191) target = $region32
      $region31: #{decoder_forward.5} parent=5 // pred_region
        // Predicated region
        $region33: #{decoder_forward.5} parent=31 // pred_check
          %p194 = pneg %p45
        $region34: #{decoder_forward.5} parent=31 // pred_check_branch
          %196 = sbr.rel (%p194) target = $region36
        $region35: #{decoder_forward.5} parent=31 // pred_region
          %s197 = smul.u32 16, %s19
          %s198 = ssub.s32 41, %s197
          %p199 = scmp.lt.s32.totalorder %s198, 16
          %s200 = scalar_select %p199, %s198, 16
          %s201 = smul.u32 128, %s200
          %p202 = scmp.lt.s32.totalorder %s18, 1
          %s203 = scalar_select %p202, %s18, 1
          %p204 = scmp.lt.s32.totalorder %s197, 40
          %s205 = scalar_select %p204, %s197, 40
          %s206 = smul.addr %s203, 41
          %s207 = sadd.s32 %s205, %s206
          %s208 = smul.addr %s207, 8
          %s209 = scalar_lea.vmem %s0, %s208
          %s210 = smul.u32 16, %s19
          %s211 = ssub.s32 41, %s210
          %p212 = scmp.lt.s32.totalorder %s211, 16
          %s213 = scalar_select %p212, %s211, 16
          %s214 = smul.u32 128, %s213
        $region36: #{decoder_forward.5} parent=31 // pred_fallthru
          _
      $region32: #{decoder_forward.5} parent=5 // pred_fallthru
        _
      %p215 = scmp.le.s32.totalorder 1, %s11
      %p216 = scmp.lt.s32.totalorder %s11, 7
      %p217 = pnand %p215, %p216
      %p218 = pneg %p217
      // Predicated region
      $region37: #{decoder_forward.5} parent=5 // pred_check
        _
      $region38: #{decoder_forward.5} parent=5 // pred_check_branch
        %220 = sbr.rel (%p217) target = $region40
      $region39: #{decoder_forward.5} parent=5 // pred_region
        %s221 = ssub.s32 %s11, 1
        %s222 = smul.u32 16, %s21
        %s223 = ssub.s32 41, %s222
        %p224 = scmp.lt.s32.totalorder %s223, 16
        %s225 = scalar_select %p224, %s223, 16
        %s226 = smul.u32 128, %s225
        %p227 = scmp.lt.s32.totalorder %s20, 1
        %s228 = scalar_select %p227, %s20, 1
        %p229 = scmp.lt.s32.totalorder %s222, 40
        %s230 = scalar_select %p229, %s222, 40
        %s231 = smul.addr %s228, 41
        %s232 = sadd.s32 %s230, %s231
        %s233 = smul.addr %s232, 8
        %s234 = scalar_lea.vmem %s0, %s233
        %p235 = pneg %p51
        %p236 = pneg %p48
        %p237 = pneg %p72
        %p238 = pneg %p69
        %p239 = pneg %p93
        %p240 = pneg %p90
        %p241 = pneg %p114
        %p242 = pneg %p111
        %p243 = pneg %p135
        %p244 = pneg %p132
        %p245 = pneg %p163
        %p246 = pneg %p160
        %s247 = sand.u32 %s150, 1
        %s248 = sand.u32 %s150, 1
        %s249 = smul.addr %s248, 128
        %s250 = scalar_lea.vmem [#allocation2], %s249
        %s251 = smul.u32 16, %s21
        %s252 = ssub.s32 41, %s251
        %p253 = scmp.lt.s32.totalorder %s252, 16
        %s254 = scalar_select %p253, %s252, 16
        %s255 = smul.u32 128, %s254
        %p256 = scmp.lt.s32.totalorder %s20, 1
        %s257 = scalar_select %p256, %s20, 1
        %p258 = scmp.lt.s32.totalorder %s251, 40
        %s259 = scalar_select %p258, %s251, 40
        %s260 = smul.addr %s257, 41
        %s261 = sadd.s32 %s259, %s260
        %s262 = smul.addr %s261, 8
        %s263 = scalar_lea.vmem %s0, %s262
        %s264 = smul.u32 16, %s21
        %s265 = ssub.s32 41, %s264
        %p266 = scmp.lt.s32.totalorder %s265, 16
        %s267 = scalar_select %p266, %s265, 16
        %s268 = smul.u32 128, %s267
        %s269 = smul.u32 16, %s21
        %s270 = ssub.s32 41, %s269
        %p271 = scmp.lt.s32.totalorder %s270, 16
        %s272 = scalar_select %p271, %s270, 16
        %s273 = smul.u32 128, %s272
        %v274 = vld [vmem:[%s263] sm:$0xff]
        %v275 = vld [vmem:[%s263 + $0x8] sm:$0xff]
        %v276 = vld [vmem:[%s263 + $0x10] sm:$0xff]
        %v277 = vld [vmem:[%s263 + $0x18] sm:$0xff]
        %v278 = vld [vmem:[%s263 + $0x20] sm:$0xff]
        %v279 = vld [vmem:[%s263 + $0x28] sm:$0xff]
        %v280 = vld [vmem:[%s263 + $0x30] sm:$0xff]
        %v281 = vld [vmem:[%s263 + $0x38] sm:$0xff]
        %v282 = vld [vmem:[%s263 + $0x40] sm:$0xff]
        %v283 = vld [vmem:[%s263 + $0x48] sm:$0xff]
        %v284 = vld [vmem:[%s263 + $0x50] sm:$0xff]
        %v285 = vld [vmem:[%s263 + $0x58] sm:$0xff]
        %v286 = vld [vmem:[%s263 + $0x60] sm:$0xff]
        %v287 = vld [vmem:[%s263 + $0x68] sm:$0xff]
        %v288 = vld [vmem:[%s263 + $0x70] sm:$0xff]
        %v289 = vld [vmem:[%s263 + $0x78] sm:$0xff]
        %v290 = vld [vmem:[%s1] sm:$0x1]
        %v292 = vlaneseq
        %v293 = vshrl.u32 %v292, 7
        %v294 = vsub.s32 0, %v293
        %v295 = vrot.slane %v290, %v294
        %v297 = vmul.f32 %v274, %v295
        %v298 = vmul.f32 %v275, %v295
        %v299 = vmul.f32 %v276, %v295
        %v300 = vmul.f32 %v277, %v295
        %v301 = vmul.f32 %v278, %v295
        %v302 = vmul.f32 %v279, %v295
        %v303 = vmul.f32 %v280, %v295
        %v304 = vmul.f32 %v281, %v295
        %v305 = vmul.f32 %v282, %v295
        %v306 = vmul.f32 %v283, %v295
        %v307 = vmul.f32 %v284, %v295
        %v308 = vmul.f32 %v285, %v295
        %v309 = vmul.f32 %v286, %v295
        %v310 = vmul.f32 %v287, %v295
        %v311 = vmul.f32 %v288, %v295
        %v312 = vmul.f32 %v289, %v295
        %v313 = vld [vmem:[%s2] sm:$0x1]
        %v315 = vlaneseq
        %v316 = vshrl.u32 %v315, 7
        %v317 = vsub.s32 0, %v316
        %v318 = vrot.slane %v313, %v317
        %v320 = vadd.f32 %v297, %v318
        %v321 = vadd.f32 %v298, %v318
        %v322 = vadd.f32 %v299, %v318
        %v323 = vadd.f32 %v300, %v318
        %v324 = vadd.f32 %v301, %v318
        %v325 = vadd.f32 %v302, %v318
        %v326 = vadd.f32 %v303, %v318
        %v327 = vadd.f32 %v304, %v318
        %v328 = vadd.f32 %v305, %v318
        %v329 = vadd.f32 %v306, %v318
        %v330 = vadd.f32 %v307, %v318
        %v331 = vadd.f32 %v308, %v318
        %v332 = vadd.f32 %v309, %v318
        %v333 = vadd.f32 %v310, %v318
        %v334 = vadd.f32 %v311, %v318
        %v335 = vadd.f32 %v312, %v318
        %v336 = vmax.f32 %v320, 0.0
        %v337 = vmax.f32 %v321, 0.0
        %v338 = vmax.f32 %v322, 0.0
        %v339 = vmax.f32 %v323, 0.0
        %v340 = vmax.f32 %v324, 0.0
        %v341 = vmax.f32 %v325, 0.0
        %v342 = vmax.f32 %v326, 0.0
        %v343 = vmax.f32 %v327, 0.0
        %v344 = vmax.f32 %v328, 0.0
        %v345 = vmax.f32 %v329, 0.0
        %v346 = vmax.f32 %v330, 0.0
        %v347 = vmax.f32 %v331, 0.0
        %v348 = vmax.f32 %v332, 0.0
        %v349 = vmax.f32 %v333, 0.0
        %v350 = vmax.f32 %v334, 0.0
        %v351 = vmax.f32 %v335, 0.0
        %v352 = vld [vmem:[%s3] sm:$0xff]
        %v353 = vld [vmem:[%s3 + $0x8] sm:$0xff]
        %v354 = vld [vmem:[%s3 + $0x10] sm:$0xff]
        %v355 = vld [vmem:[%s3 + $0x18] sm:$0xff]
        %v356 = vld [vmem:[%s3 + $0x20] sm:$0xff]
        %v357 = vld [vmem:[%s3 + $0x28] sm:$0xff]
        %v358 = vld [vmem:[%s3 + $0x30] sm:$0xff]
        %v359 = vld [vmem:[%s3 + $0x38] sm:$0xff]
        %v360 = vld [vmem:[%s3 + $0x40] sm:$0xff]
        %v361 = vld [vmem:[%s3 + $0x48] sm:$0xff]
        %v362 = vld [vmem:[%s3 + $0x50] sm:$0xff]
        %v363 = vld [vmem:[%s3 + $0x58] sm:$0xff]
        %v364 = vld [vmem:[%s3 + $0x60] sm:$0xff]
        %v365 = vld [vmem:[%s3 + $0x68] sm:$0xff]
        %v366 = vld [vmem:[%s3 + $0x70] sm:$0xff]
        %v367 = vld [vmem:[%s3 + $0x78] sm:$0xff]
        %v368 = vld [vmem:[%s4] sm:$0x1]
        %v370 = vlaneseq
        %v371 = vshrl.u32 %v370, 7
        %v372 = vsub.s32 0, %v371
        %v373 = vrot.slane %v368, %v372
        %375 = vmatprep.subr.mxu0 0.0
        %376 = vmatpush1.msra.mxu0 %v367
        %377 = vmatprep.subr.mxu0 0.0
        %378 = vmatpush1.msra.mxu0 %v366
        %379 = vmatprep.subr.mxu0 0.0
        %380 = vmatpush1.msra.mxu0 %v365
        %381 = vmatprep.subr.mxu0 0.0
        %382 = vmatpush1.msra.mxu0 %v364
        %383 = vmatprep.subr.mxu0 0.0
        %384 = vmatpush1.msra.mxu0 %v363
        %385 = vmatprep.subr.mxu0 0.0
        %386 = vmatpush1.msra.mxu0 %v362
        %387 = vmatprep.subr.mxu0 0.0
        %388 = vmatpush1.msra.mxu0 %v361
        %389 = vmatprep.subr.mxu0 0.0
        %390 = vmatpush1.msra.mxu0 %v360
        %391 = vmatprep.subr.mxu0 0.0
        %392 = vmatpush1.msra.mxu0 %v359
        %393 = vmatprep.subr.mxu0 0.0
        %394 = vmatpush1.msra.mxu0 %v358
        %395 = vmatprep.subr.mxu0 0.0
        %396 = vmatpush1.msra.mxu0 %v357
        %397 = vmatprep.subr.mxu0 0.0
        %398 = vmatpush1.msra.mxu0 %v356
        %399 = vmatprep.subr.mxu0 0.0
        %400 = vmatpush1.msra.mxu0 %v355
        %401 = vmatprep.subr.mxu0 0.0
        %402 = vmatpush1.msra.mxu0 %v354
        %403 = vmatprep.subr.mxu0 0.0
        %404 = vmatpush1.msra.mxu0 %v353
        %405 = vmatprep.subr.mxu0 0.0
        %406 = vmatpush1.msra.mxu0 %v352
        %407 = vmatprep.subr.mxu0 0.0
        %408 = vmatpush2.msra.mxu0 0.0
        %409 = vmatprep.subr.mxu0 0.0
        %410 = vmatpush2.msra.mxu0 0.0
        %411 = vmatprep.subr.mxu0 0.0
        %412 = vmatpush2.msra.mxu0 0.0
        %413 = vmatprep.subr.mxu0 0.0
        %414 = vmatpush2.msra.mxu0 0.0
        %415 = vmatprep.subr.mxu0 0.0
        %416 = vmatpush2.msra.mxu0 0.0
        %417 = vmatprep.subr.mxu0 0.0
        %418 = vmatpush2.msra.mxu0 0.0
        %419 = vmatprep.subr.mxu0 0.0
        %420 = vmatpush2.msra.mxu0 0.0
        %421 = vmatprep.subr.mxu0 0.0
        %422 = vmatpush2.msra.mxu0 0.0
        %423 = vmatprep.subr.mxu0 0.0
        %424 = vmatpush2.msra.mxu0 0.0
        %425 = vmatprep.subr.mxu0 0.0
        %426 = vmatpush2.msra.mxu0 0.0
        %427 = vmatprep.subr.mxu0 0.0
        %428 = vmatpush2.msra.mxu0 0.0
        %429 = vmatprep.subr.mxu0 0.0
        %430 = vmatpush2.msra.mxu0 0.0
        %431 = vmatprep.subr.mxu0 0.0
        %432 = vmatpush2.msra.mxu0 0.0
        %433 = vmatprep.subr.mxu0 0.0
        %434 = vmatpush2.msra.mxu0 0.0
        %435 = vmatprep.subr.mxu0 0.0
        %436 = vmatpush2.msra.mxu0 0.0
        %437 = vmatprep.subr.mxu0 0.0
        %438 = vmatpush2.msra.mxu0 0.0
        %439 = vmatprep.mubr.f32.mxu0 0.0
        %440 = vmatmul.mubr.f32.gmra.mxu0 %v336
        %v441 = vpop.f32.mrf.mxu0
        %v442 = vadd.f32 %v373, %v441
        %v443 = vpop.f32.mrf.mxu0
        %444 = vmatprep.mubr.f32.mxu0 0.0
        %445 = vmatmul.mubr.f32.gmra.mxu0 %v337
        %v446 = vpop.f32.mrf.mxu0
        %v447 = vadd.f32 %v373, %v446
        %v448 = vpop.f32.mrf.mxu0
        %449 = vmatprep.mubr.f32.mxu0 0.0
        %450 = vmatmul.mubr.f32.gmra.mxu0 %v338
        %v451 = vpop.f32.mrf.mxu0
        %v452 = vadd.f32 %v373, %v451
        %v453 = vpop.f32.mrf.mxu0
        %454 = vmatprep.mubr.f32.mxu0 0.0
        %455 = vmatmul.mubr.f32.gmra.mxu0 %v339
        %v456 = vpop.f32.mrf.mxu0
        %v457 = vadd.f32 %v373, %v456
        %v458 = vpop.f32.mrf.mxu0
        %459 = vmatprep.mubr.f32.mxu0 0.0
        %460 = vmatmul.mubr.f32.gmra.mxu0 %v340
        %v461 = vpop.f32.mrf.mxu0
        %v462 = vadd.f32 %v373, %v461
        %v463 = vpop.f32.mrf.mxu0
        %464 = vmatprep.mubr.f32.mxu0 0.0
        %465 = vmatmul.mubr.f32.gmra.mxu0 %v341
        %v466 = vpop.f32.mrf.mxu0
        %v467 = vadd.f32 %v373, %v466
        %v468 = vpop.f32.mrf.mxu0
        %469 = vmatprep.mubr.f32.mxu0 0.0
        %470 = vmatmul.mubr.f32.gmra.mxu0 %v342
        %v471 = vpop.f32.mrf.mxu0
        %v472 = vadd.f32 %v373, %v471
        %v473 = vpop.f32.mrf.mxu0
        %474 = vmatprep.mubr.f32.mxu0 0.0
        %475 = vmatmul.mubr.f32.gmra.mxu0 %v343
        %v476 = vpop.f32.mrf.mxu0
        %v477 = vadd.f32 %v373, %v476
        %v478 = vpop.f32.mrf.mxu0
        %479 = vmatprep.mubr.f32.mxu0 0.0
        %480 = vmatmul.mubr.f32.gmra.mxu0 %v344
        %v481 = vpop.f32.mrf.mxu0
        %v482 = vadd.f32 %v373, %v481
        %v483 = vpop.f32.mrf.mxu0
        %484 = vmatprep.mubr.f32.mxu0 0.0
        %485 = vmatmul.mubr.f32.gmra.mxu0 %v345
        %v486 = vpop.f32.mrf.mxu0
        %v487 = vadd.f32 %v373, %v486
        %v488 = vpop.f32.mrf.mxu0
        %489 = vmatprep.mubr.f32.mxu0 0.0
        %490 = vmatmul.mubr.f32.gmra.mxu0 %v346
        %v491 = vpop.f32.mrf.mxu0
        %v492 = vadd.f32 %v373, %v491
        %v493 = vpop.f32.mrf.mxu0
        %494 = vmatprep.mubr.f32.mxu0 0.0
        %495 = vmatmul.mubr.f32.gmra.mxu0 %v347
        %v496 = vpop.f32.mrf.mxu0
        %v497 = vadd.f32 %v373, %v496
        %v498 = vpop.f32.mrf.mxu0
        %499 = vmatprep.mubr.f32.mxu0 0.0
        %500 = vmatmul.mubr.f32.gmra.mxu0 %v348
        %v501 = vpop.f32.mrf.mxu0
        %v502 = vadd.f32 %v373, %v501
        %v503 = vpop.f32.mrf.mxu0
        %504 = vmatprep.mubr.f32.mxu0 0.0
        %505 = vmatmul.mubr.f32.gmra.mxu0 %v349
        %v506 = vpop.f32.mrf.mxu0
        %v507 = vadd.f32 %v373, %v506
        %v508 = vpop.f32.mrf.mxu0
        %509 = vmatprep.mubr.f32.mxu0 0.0
        %510 = vmatmul.mubr.f32.gmra.mxu0 %v350
        %v511 = vpop.f32.mrf.mxu0
        %v512 = vadd.f32 %v373, %v511
        %v513 = vpop.f32.mrf.mxu0
        %514 = vmatprep.mubr.f32.mxu0 0.0
        %515 = vmatmul.mubr.f32.gmra.mxu0 %v351
        %v516 = vpop.f32.mrf.mxu0
        %v517 = vadd.f32 %v373, %v516
        %v518 = vpop.f32.mrf.mxu0
        %519 = vdwg.mxu0
        %vm520 = vcmask 23552
        %521 = vst.msk [vmem:[%s250] sm:$0xff] %vm520, %v442
        %522 = vst.msk [vmem:[%s250 + $0x8] sm:$0xff] %vm520, %v447
        %523 = vst.msk [vmem:[%s250 + $0x10] sm:$0xff] %vm520, %v452
        %524 = vst.msk [vmem:[%s250 + $0x18] sm:$0xff] %vm520, %v457
        %525 = vst.msk [vmem:[%s250 + $0x20] sm:$0xff] %vm520, %v462
        %526 = vst.msk [vmem:[%s250 + $0x28] sm:$0xff] %vm520, %v467
        %527 = vst.msk [vmem:[%s250 + $0x30] sm:$0xff] %vm520, %v472
        %528 = vst.msk [vmem:[%s250 + $0x38] sm:$0xff] %vm520, %v477
        %529 = vst.msk [vmem:[%s250 + $0x40] sm:$0xff] %vm520, %v482
        %530 = vst.msk [vmem:[%s250 + $0x48] sm:$0xff] %vm520, %v487
        %531 = vst.msk [vmem:[%s250 + $0x50] sm:$0xff] %vm520, %v492
        %532 = vst.msk [vmem:[%s250 + $0x58] sm:$0xff] %vm520, %v497
        %533 = vst.msk [vmem:[%s250 + $0x60] sm:$0xff] %vm520, %v502
        %534 = vst.msk [vmem:[%s250 + $0x68] sm:$0xff] %vm520, %v507
        %535 = vst.msk [vmem:[%s250 + $0x70] sm:$0xff] %vm520, %v512
        %536 = vst.msk [vmem:[%s250 + $0x78] sm:$0xff] %vm520, %v517
        %s537 = sand.u32 %s150, 1
        %s538 = sand.u32 %s150, 1
        %s539 = smul.addr %s538, 128
        %s540 = scalar_lea.vmem [#allocation2], %s539
        // Predicated region
        $region41: #{decoder_forward.5} parent=39 // pred_check
          %p541 = pneg %p160
        $region42: #{decoder_forward.5} parent=39 // pred_check_branch
          %543 = sbr.rel (%p541) target = $region44
        $region43: #{decoder_forward.5} parent=39 // pred_region
          %s544 = smul.u32 16, %s21
          %s545 = ssub.s32 41, %s544
          %p546 = scmp.lt.s32.totalorder %s545, 16
          %s547 = scalar_select %p546, %s545, 16
          %s548 = smul.u32 128, %s547
          %p549 = scmp.ne.s32.totalorder 0, %s548
          %s550 = smul.addr %s20, 41
          %s551 = sadd.s32 %s544, %s550
          %s552 = smul.addr %s551, 8
          %s553 = scalar_lea.vmem %s5, %s552
          // Predicated region
          $region45: #{decoder_forward.5} parent=43 // pred_check
            %p554 = pneg %p549
          $region46: #{decoder_forward.5} parent=43 // pred_check_branch
            %556 = sbr.rel (%p554) target = $region48
          $region47: #{decoder_forward.5} parent=43 // pred_region
            // Predicated region
            $region49: #{decoder_forward.5} parent=47 // pred_check
              _
            $region50: #{decoder_forward.5} parent=47 // pred_check_branch
              %558 = sbr.rel (0) target = $region52
            $region51: #{decoder_forward.5} parent=47 // pred_region
              // Predicated region
              $region71: #{decoder_forward.5} parent=51 // pred_check
                _
              $region72: #{decoder_forward.5} parent=51 // pred_check_branch
                %638 = sbr.rel (0) target = $region74
              $region73: #{decoder_forward.5} parent=51 // pred_region
                %s639 = sshrl.u32 %s547, 4
                // While loop
                $region75: #{decoder_forward.5} parent=73 // loop_pre_header
                  _
                $region76: #{decoder_forward.5} parent=73 // loop_header
                  %s641 = sphi 0, %s643
                  %p642 = scmp.ge.s32.totalorder %s641, %s639
                  %s646 = sphi 0, %s683
                  %s647 = sphi %s540, %s686
                  %s648 = sphi %s553, %s687
                $region77: #{decoder_forward.5} parent=73 // loop_header_branch
                  %645 = sbr.rel (%p642) target = $region81
                $region78: #{decoder_forward.5} parent=73 // loop_body
                  %v649 = vld [vmem:[%s647] sm:$0xff]
                  %650 = vst [vmem:[%s648] sm:$0xff] %v649
                  %v651 = vld [vmem:[%s647 + $0x8] sm:$0xff]
                  %652 = vst [vmem:[%s648 + $0x8] sm:$0xff] %v651
                  %v653 = vld [vmem:[%s647 + $0x10] sm:$0xff]
                  %654 = vst [vmem:[%s648 + $0x10] sm:$0xff] %v653
                  %v655 = vld [vmem:[%s647 + $0x18] sm:$0xff]
                  %656 = vst [vmem:[%s648 + $0x18] sm:$0xff] %v655
                  %v657 = vld [vmem:[%s647 + $0x20] sm:$0xff]
                  %658 = vst [vmem:[%s648 + $0x20] sm:$0xff] %v657
                  %v659 = vld [vmem:[%s647 + $0x28] sm:$0xff]
                  %660 = vst [vmem:[%s648 + $0x28] sm:$0xff] %v659
                  %v661 = vld [vmem:[%s647 + $0x30] sm:$0xff]
                  %662 = vst [vmem:[%s648 + $0x30] sm:$0xff] %v661
                  %v663 = vld [vmem:[%s647 + $0x38] sm:$0xff]
                  %664 = vst [vmem:[%s648 + $0x38] sm:$0xff] %v663
                  %v665 = vld [vmem:[%s647 + $0x40] sm:$0xff]
                  %666 = vst [vmem:[%s648 + $0x40] sm:$0xff] %v665
                  %v667 = vld [vmem:[%s647 + $0x48] sm:$0xff]
                  %668 = vst [vmem:[%s648 + $0x48] sm:$0xff] %v667
                  %v669 = vld [vmem:[%s647 + $0x50] sm:$0xff]
                  %670 = vst [vmem:[%s648 + $0x50] sm:$0xff] %v669
                  %v671 = vld [vmem:[%s647 + $0x58] sm:$0xff]
                  %672 = vst [vmem:[%s648 + $0x58] sm:$0xff] %v671
                  %v673 = vld [vmem:[%s647 + $0x60] sm:$0xff]
                  %674 = vst [vmem:[%s648 + $0x60] sm:$0xff] %v673
                  %v675 = vld [vmem:[%s647 + $0x68] sm:$0xff]
                  %676 = vst [vmem:[%s648 + $0x68] sm:$0xff] %v675
                  %v677 = vld [vmem:[%s647 + $0x70] sm:$0xff]
                  %678 = vst [vmem:[%s648 + $0x70] sm:$0xff] %v677
                  %v679 = vld [vmem:[%s647 + $0x78] sm:$0xff]
                  %680 = vst [vmem:[%s648 + $0x78] sm:$0xff] %v679
                  %s681 = sadd.s32 1, %s646
                  %p682 = scmp.ge.s32.totalorder %s681, %s639
                  %s683 = scalar_select %p682, 0, %s681
                  %s684 = smul.u32 %s683, 128
                  %s685 = smul.u32 %s683, 128
                  %s686 = scalar_lea.vmem %s540, %s684 [#allocation2]
                  %s687 = scalar_lea.vmem %s553, %s685
                $region79: #{decoder_forward.5} parent=73 // loop_footer
                  %s643 = sadd.s32 %s641, 1
                $region80: #{decoder_forward.5} parent=73 // loop_footer_branch
                  %640 = sbr.rel target = $region76
                $region81: #{decoder_forward.5} parent=73 // loop_exit
                  _
                %s688 = sshrl.u32 %s547, 4
                %s689 = sand.u32 %s547, 15
                %s690 = smul.u32 %s688, 16
                %s691 = smul.u32 8, %s690
                %s692 = scalar_lea.vmem %s540, %s691 [#allocation2]
                %s693 = smul.u32 8, %s690
                %s694 = scalar_lea.vmem %s553, %s693
                // While loop
                $region82: #{decoder_forward.5} parent=73 // loop_pre_header
                  _
                $region83: #{decoder_forward.5} parent=73 // loop_header
                  %s696 = sphi 0, %s698
                  %p697 = scmp.ge.s32.totalorder %s696, %s689
                  %s701 = sphi 0, %s708
                  %s702 = sphi %s692, %s711
                  %s703 = sphi %s694, %s712
                $region84: #{decoder_forward.5} parent=73 // loop_header_branch
                  %700 = sbr.rel (%p697) target = $region88
                $region85: #{decoder_forward.5} parent=73 // loop_body
                  %v704 = vld [vmem:[%s702] sm:$0xff]
                  %705 = vst [vmem:[%s703] sm:$0xff] %v704
                  %s706 = sadd.s32 1, %s701
                  %p707 = scmp.ge.s32.totalorder %s706, %s689
                  %s708 = scalar_select %p707, 0, %s706
                  %s709 = smul.u32 %s708, 8
                  %s710 = smul.u32 %s708, 8
                  %s711 = scalar_lea.vmem %s692, %s709 [#allocation2]
                  %s712 = scalar_lea.vmem %s694, %s710
                $region86: #{decoder_forward.5} parent=73 // loop_footer
                  %s698 = sadd.s32 %s696, 1
                $region87: #{decoder_forward.5} parent=73 // loop_footer_branch
                  %695 = sbr.rel target = $region83
                $region88: #{decoder_forward.5} parent=73 // loop_exit
                  _
              $region74: #{decoder_forward.5} parent=51 // pred_fallthru
                _
              // Predicated region
              $region89: #{decoder_forward.5} parent=51 // pred_check
                _
              $region90: #{decoder_forward.5} parent=51 // pred_check_branch
                %714 = sbr.rel target = $region92
              $region91: #{decoder_forward.5} parent=51 // pred_region
                _
              $region92: #{decoder_forward.5} parent=51 // pred_fallthru
                _
            $region52: #{decoder_forward.5} parent=47 // pred_fallthru
              _
            // Predicated region
            $region53: #{decoder_forward.5} parent=47 // pred_check
              _
            $region54: #{decoder_forward.5} parent=47 // pred_check_branch
              %560 = sbr.rel target = $region56
            $region55: #{decoder_forward.5} parent=47 // pred_region
              %s562 = ssub.s32 256, 1
              %s563 = sshrl.u32 %s547, 4
              // While loop
              $region57: #{decoder_forward.5} parent=55 // loop_pre_header
                _
              $region58: #{decoder_forward.5} parent=55 // loop_header
                %s565 = sphi 0, %s567
                %p566 = scmp.ge.s32.totalorder %s565, %s563
                %s570 = sphi 0, %s607
                %s571 = sphi %s540, %s610
                %s572 = sphi %s553, %s611
              $region59: #{decoder_forward.5} parent=55 // loop_header_branch
                %569 = sbr.rel (%p566) target = $region63
              $region60: #{decoder_forward.5} parent=55 // loop_body
                %v573 = vld [vmem:[%s571] sm:%s562]
                %574 = vst [vmem:[%s572] sm:%s562] %v573
                %v575 = vld [vmem:[%s571 + $0x8] sm:%s562]
                %576 = vst [vmem:[%s572 + $0x8] sm:%s562] %v575
                %v577 = vld [vmem:[%s571 + $0x10] sm:%s562]
                %578 = vst [vmem:[%s572 + $0x10] sm:%s562] %v577
                %v579 = vld [vmem:[%s571 + $0x18] sm:%s562]
                %580 = vst [vmem:[%s572 + $0x18] sm:%s562] %v579
                %v581 = vld [vmem:[%s571 + $0x20] sm:%s562]
                %582 = vst [vmem:[%s572 + $0x20] sm:%s562] %v581
                %v583 = vld [vmem:[%s571 + $0x28] sm:%s562]
                %584 = vst [vmem:[%s572 + $0x28] sm:%s562] %v583
                %v585 = vld [vmem:[%s571 + $0x30] sm:%s562]
                %586 = vst [vmem:[%s572 + $0x30] sm:%s562] %v585
                %v587 = vld [vmem:[%s571 + $0x38] sm:%s562]
                %588 = vst [vmem:[%s572 + $0x38] sm:%s562] %v587
                %v589 = vld [vmem:[%s571 + $0x40] sm:%s562]
                %590 = vst [vmem:[%s572 + $0x40] sm:%s562] %v589
                %v591 = vld [vmem:[%s571 + $0x48] sm:%s562]
                %592 = vst [vmem:[%s572 + $0x48] sm:%s562] %v591
                %v593 = vld [vmem:[%s571 + $0x50] sm:%s562]
                %594 = vst [vmem:[%s572 + $0x50] sm:%s562] %v593
                %v595 = vld [vmem:[%s571 + $0x58] sm:%s562]
                %596 = vst [vmem:[%s572 + $0x58] sm:%s562] %v595
                %v597 = vld [vmem:[%s571 + $0x60] sm:%s562]
                %598 = vst [vmem:[%s572 + $0x60] sm:%s562] %v597
                %v599 = vld [vmem:[%s571 + $0x68] sm:%s562]
                %600 = vst [vmem:[%s572 + $0x68] sm:%s562] %v599
                %v601 = vld [vmem:[%s571 + $0x70] sm:%s562]
                %602 = vst [vmem:[%s572 + $0x70] sm:%s562] %v601
                %v603 = vld [vmem:[%s571 + $0x78] sm:%s562]
                %604 = vst [vmem:[%s572 + $0x78] sm:%s562] %v603
                %s605 = sadd.s32 1, %s570
                %p606 = scmp.ge.s32.totalorder %s605, %s563
                %s607 = scalar_select %p606, 0, %s605
                %s608 = smul.u32 %s607, 128
                %s609 = smul.u32 %s607, 128
                %s610 = scalar_lea.vmem %s540, %s608 [#allocation2]
                %s611 = scalar_lea.vmem %s553, %s609
              $region61: #{decoder_forward.5} parent=55 // loop_footer
                %s567 = sadd.s32 %s565, 1
              $region62: #{decoder_forward.5} parent=55 // loop_footer_branch
                %564 = sbr.rel target = $region58
              $region63: #{decoder_forward.5} parent=55 // loop_exit
                _
              %s612 = sshrl.u32 %s547, 4
              %s613 = sand.u32 %s547, 15
              %s614 = smul.u32 %s612, 16
              %s615 = smul.u32 8, %s614
              %s616 = scalar_lea.vmem %s540, %s615 [#allocation2]
              %s617 = smul.u32 8, %s614
              %s618 = scalar_lea.vmem %s553, %s617
              // While loop
              $region64: #{decoder_forward.5} parent=55 // loop_pre_header
                _
              $region65: #{decoder_forward.5} parent=55 // loop_header
                %s620 = sphi 0, %s622
                %p621 = scmp.ge.s32.totalorder %s620, %s613
                %s625 = sphi 0, %s632
                %s626 = sphi %s616, %s635
                %s627 = sphi %s618, %s636
              $region66: #{decoder_forward.5} parent=55 // loop_header_branch
                %624 = sbr.rel (%p621) target = $region70
              $region67: #{decoder_forward.5} parent=55 // loop_body
                %v628 = vld [vmem:[%s626] sm:%s562]
                %629 = vst [vmem:[%s627] sm:%s562] %v628
                %s630 = sadd.s32 1, %s625
                %p631 = scmp.ge.s32.totalorder %s630, %s613
                %s632 = scalar_select %p631, 0, %s630
                %s633 = smul.u32 %s632, 8
                %s634 = smul.u32 %s632, 8
                %s635 = scalar_lea.vmem %s616, %s633 [#allocation2]
                %s636 = scalar_lea.vmem %s618, %s634
              $region68: #{decoder_forward.5} parent=55 // loop_footer
                %s622 = sadd.s32 %s620, 1
              $region69: #{decoder_forward.5} parent=55 // loop_footer_branch
                %619 = sbr.rel target = $region65
              $region70: #{decoder_forward.5} parent=55 // loop_exit
                _
            $region56: #{decoder_forward.5} parent=47 // pred_fallthru
              _
          $region48: #{decoder_forward.5} parent=43 // pred_fallthru
            _
          %715 = vnop
        $region44: #{decoder_forward.5} parent=39 // pred_fallthru
          _
      $region40: #{decoder_forward.5} parent=5 // pred_fallthru
        _
      %p716 = scmp.le.s32.totalorder 2, %s11
      // Predicated region
      $region93: #{decoder_forward.5} parent=5 // pred_check
        %p717 = pneg %p716
      $region94: #{decoder_forward.5} parent=5 // pred_check_branch
        %719 = sbr.rel (%p717) target = $region96
      $region95: #{decoder_forward.5} parent=5 // pred_region
        %s720 = ssub.s32 %s11, 2
        // Predicated region
        $region97: #{decoder_forward.5} parent=95 // pred_check
          %p721 = pneg %p166
        $region98: #{decoder_forward.5} parent=95 // pred_check_branch
          %723 = sbr.rel (%p721) target = $region100
        $region99: #{decoder_forward.5} parent=95 // pred_region
          %s724 = sand.u32 %s151, 1
          %s725 = sand.u32 %s151, 1
          %s726 = smul.addr %s725, 128
          %s727 = scalar_lea.vmem [#allocation2], %s726
        $region100: #{decoder_forward.5} parent=95 // pred_fallthru
          _
      $region96: #{decoder_forward.5} parent=5 // pred_fallthru
        _
    $region6: #{decoder_forward.5} parent=1 // loop_footer
      %s15 = sadd.s32 1, %s11
    $region7: #{decoder_forward.5} parent=1 // loop_footer_branch
      %10 = sbr.rel target = $region3
    $region8: #{decoder_forward.5} parent=1 // loop_exit
      _

// kernel: decoder_forward.4
$region0: #{decoder_forward.4}
  #allocation0 [shape = 'u32[]', space=smem, size = 0x4, offset = 0x4, fixed_abs, tag = 'smem constant byte address 0x4 - core index']
  #allocation1 [shape = 'u32[144,128]{1,0:T(1,128)}', space=vmem, size = 0x12000, scoped, tag = 'internal scratch']
  %s0 = inlined_call_operand.vmem [shape: f32[1,324,2], index: 0, kind: input, shape index: {}]
  %s1 = inlined_call_operand.vmem [shape: f32[2,128], index: 1, kind: input, shape index: {}]
  %s2 = inlined_call_operand.vmem [shape: f32[2,1,128], index: 2, kind: input, shape index: {}]
  %s3 = inlined_call_operand.vmem [shape: f32[1,128], index: 3, kind: input, shape index: {}]
  %s4 = inlined_call_operand.vmem [shape: f32[1,128], index: 4, kind: input, shape index: {}]
  %s5 = inlined_call_operand.vmem [shape: f32[128,128], index: 5, kind: input, shape index: {}]
  %s6 = inlined_call_operand.vmem [shape: f32[2,324,128], index: 6, kind: output, shape index: {0}]
  %s7 = inlined_call_operand.vmem [shape: f32[2,3,2,128], index: 7, kind: output, shape index: {1}]
  %8 = xla_tuple %s6, %s7
  %s9 = sld [smem:[#allocation0]]
  $region113: #{decoder_forward.4} parent=0
    _
  %s11 = ssub.s32 1, %s9
  %s12 = scalar_select 0, %s11, %s9
  $region1: #{decoder_forward.4} parent=0
    #allocation2 [shape = 'u8[131072]{0}', space=vmem, size = 0x20000, scoped, tag = 'output window, operand 0']
    loop: start=0, step=1, limit=8
    $region2: #{decoder_forward.4} parent=1 // loop_pre_header
      _
    $region3: #{decoder_forward.4} parent=1 // loop_header
      %s14 = sphi 0, %s18
      %p15 = scmp.ge.s32.totalorder %s14, 8
      %s21 = sphi 0, %s33
      %s22 = sphi 0, %s29
      %s23 = sphi 0, %s21
      %s24 = sphi 0, %s22
      %s25 = sphi 0, %s23
      %s26 = sphi 0, %s24
      %s36 = sphi 0, %s38
      %s39 = sphi 0, %s36
      %s40 = sphi 0, %s39
      %s56 = sphi 0, %s40
      %s60 = sphi 0, %s60
      %s62 = sphi 0, %s60
      %s63 = sphi 0, %s62
      %s77 = sphi 0, %s63
      %s83 = sphi 0, %s85
      %s86 = sphi 0, %s83
      %s87 = sphi 0, %s86
      %s103 = sphi 0, %s87
      %s107 = sphi 0, %s107
      %s109 = sphi 0, %s107
      %s110 = sphi 0, %s109
      %s124 = sphi 0, %s110
      %s128 = sphi 0, %s128
      %s130 = sphi 0, %s128
      %s131 = sphi 0, %s130
      %s145 = sphi 0, %s131
      %s149 = sphi 0, %s149
      %s151 = sphi 0, %s149
      %s152 = sphi 0, %s151
      %s166 = sphi 0, %s152
      %s174 = sphi 0, %s176
      %s177 = sphi 0, %s174
      %s178 = sphi 0, %s177
      %s194 = sphi 0, %s178
      %s202 = sphi 0, %s204
      %s205 = sphi 0, %s202
      %s206 = sphi 0, %s205
      %s222 = sphi 0, %s206
    $region4: #{decoder_forward.4} parent=1 // loop_header_branch
      %17 = sbr.rel (%p15) target = $region8
    $region5: #{decoder_forward.4} parent=1 // loop_body
      %s19 = ssub.s32 %s14, 1
      %s20 = ssub.s32 %s14, 2
      %s27 = sadd.s32 1, %s22
      %p28 = scmp.ge.s32.totalorder %s27, 3
      %s29 = scalar_select %p28, 0, %s27
      %s30 = sadd.s32 1, %s21
      %s31 = scalar_select %p28, %s30, %s21
      %p32 = scmp.ge.s32.totalorder %s31, 2
      %s33 = scalar_select %p32, 0, %s31
      %s34 = ssub.s32 %s22, %s29
      %p35 = scmp.eq.s32.totalorder %s34, 0
      %s37 = sadd.s32 %s36, 1
      %s38 = scalar_select %p35, %s36, %s37
      %p41 = pneg %p35
      %p42 = scmp.eq.s32.totalorder %s14, 5
      %p43 = por %p41, %p42
      %p44 = scmp.ne.s32.totalorder %s36, %s39
      %p45 = scmp.eq.s32.totalorder %s14, 0
      %p46 = por %p44, %p45
      %p47 = scmp.ne.s32.totalorder %s36, %s39
      %p48 = scmp.eq.s32.totalorder %s19, 5
      %p49 = por %p47, %p48
      %p50 = scmp.ne.s32.totalorder %s39, %s40
      %p51 = scmp.eq.s32.totalorder %s19, 0
      %p52 = por %p50, %p51
      %p53 = scmp.ne.s32.totalorder %s39, %s40
      %p54 = scmp.eq.s32.totalorder %s20, 5
      %p55 = por %p53, %p54
      %p57 = scmp.ne.s32.totalorder %s40, %s56
      %p58 = scmp.eq.s32.totalorder %s20, 0
      %p59 = por %p57, %p58
      %s61 = sadd.s32 %s60, 1
      %p64 = scmp.eq.s32.totalorder %s14, 5
      %p65 = scmp.ne.s32.totalorder %s60, %s62
      %p66 = scmp.eq.s32.totalorder %s14, 0
      %p67 = por %p65, %p66
      %p68 = scmp.ne.s32.totalorder %s60, %s62
      %p69 = scmp.eq.s32.totalorder %s19, 5
      %p70 = por %p68, %p69
      %p71 = scmp.ne.s32.totalorder %s62, %s63
      %p72 = scmp.eq.s32.totalorder %s19, 0
      %p73 = por %p71, %p72
      %p74 = scmp.ne.s32.totalorder %s62, %s63
      %p75 = scmp.eq.s32.totalorder %s20, 5
      %p76 = por %p74, %p75
      %p78 = scmp.ne.s32.totalorder %s63, %s77
      %p79 = scmp.eq.s32.totalorder %s20, 0
      %p80 = por %p78, %p79
      %s81 = ssub.s32 %s21, %s33
      %p82 = scmp.eq.s32.totalorder %s81, 0
      %s84 = sadd.s32 %s83, 1
      %s85 = scalar_select %p82, %s83, %s84
      %p88 = pneg %p82
      %p89 = scmp.eq.s32.totalorder %s14, 5
      %p90 = por %p88, %p89
      %p91 = scmp.ne.s32.totalorder %s83, %s86
      %p92 = scmp.eq.s32.totalorder %s14, 0
      %p93 = por %p91, %p92
      %p94 = scmp.ne.s32.totalorder %s83, %s86
      %p95 = scmp.eq.s32.totalorder %s19, 5
      %p96 = por %p94, %p95
      %p97 = scmp.ne.s32.totalorder %s86, %s87
      %p98 = scmp.eq.s32.totalorder %s19, 0
      %p99 = por %p97, %p98
      %p100 = scmp.ne.s32.totalorder %s86, %s87
      %p101 = scmp.eq.s32.totalorder %s20, 5
      %p102 = por %p100, %p101
      %p104 = scmp.ne.s32.totalorder %s87, %s103
      %p105 = scmp.eq.s32.totalorder %s20, 0
      %p106 = por %p104, %p105
      %s108 = sadd.s32 %s107, 1
      %p111 = scmp.eq.s32.totalorder %s14, 5
      %p112 = scmp.ne.s32.totalorder %s107, %s109
      %p113 = scmp.eq.s32.totalorder %s14, 0
      %p114 = por %p112, %p113
      %p115 = scmp.ne.s32.totalorder %s107, %s109
      %p116 = scmp.eq.s32.totalorder %s19, 5
      %p117 = por %p115, %p116
      %p118 = scmp.ne.s32.totalorder %s109, %s110
      %p119 = scmp.eq.s32.totalorder %s19, 0
      %p120 = por %p118, %p119
      %p121 = scmp.ne.s32.totalorder %s109, %s110
      %p122 = scmp.eq.s32.totalorder %s20, 5
      %p123 = por %p121, %p122
      %p125 = scmp.ne.s32.totalorder %s110, %s124
      %p126 = scmp.eq.s32.totalorder %s20, 0
      %p127 = por %p125, %p126
      %s129 = sadd.s32 %s128, 1
      %p132 = scmp.eq.s32.totalorder %s14, 5
      %p133 = scmp.ne.s32.totalorder %s128, %s130
      %p134 = scmp.eq.s32.totalorder %s14, 0
      %p135 = por %p133, %p134
      %p136 = scmp.ne.s32.totalorder %s128, %s130
      %p137 = scmp.eq.s32.totalorder %s19, 5
      %p138 = por %p136, %p137
      %p139 = scmp.ne.s32.totalorder %s130, %s131
      %p140 = scmp.eq.s32.totalorder %s19, 0
      %p141 = por %p139, %p140
      %p142 = scmp.ne.s32.totalorder %s130, %s131
      %p143 = scmp.eq.s32.totalorder %s20, 5
      %p144 = por %p142, %p143
      %p146 = scmp.ne.s32.totalorder %s131, %s145
      %p147 = scmp.eq.s32.totalorder %s20, 0
      %p148 = por %p146, %p147
      %s150 = sadd.s32 %s149, 1
      %p153 = scmp.eq.s32.totalorder %s14, 5
      %p154 = scmp.ne.s32.totalorder %s149, %s151
      %p155 = scmp.eq.s32.totalorder %s14, 0
      %p156 = por %p154, %p155
      %p157 = scmp.ne.s32.totalorder %s149, %s151
      %p158 = scmp.eq.s32.totalorder %s19, 5
      %p159 = por %p157, %p158
      %p160 = scmp.ne.s32.totalorder %s151, %s152
      %p161 = scmp.eq.s32.totalorder %s19, 0
      %p162 = por %p160, %p161
      %p163 = scmp.ne.s32.totalorder %s151, %s152
      %p164 = scmp.eq.s32.totalorder %s20, 5
      %p165 = por %p163, %p164
      %p167 = scmp.ne.s32.totalorder %s152, %s166
      %p168 = scmp.eq.s32.totalorder %s20, 0
      %p169 = por %p167, %p168
      %s170 = ssub.s32 %s21, %s33
      %s171 = ssub.s32 %s22, %s29
      %s172 = sor.u32 %s170, %s171
      %p173 = scmp.eq.s32.totalorder %s172, 0
      %s175 = sadd.s32 %s174, 1
      %s176 = scalar_select %p173, %s174, %s175
      %p179 = pneg %p173
      %p180 = scmp.eq.s32.totalorder %s14, 5
      %p181 = por %p179, %p180
      %p182 = scmp.ne.s32.totalorder %s174, %s177
      %p183 = scmp.eq.s32.totalorder %s14, 0
      %p184 = por %p182, %p183
      %p185 = scmp.ne.s32.totalorder %s174, %s177
      %p186 = scmp.eq.s32.totalorder %s19, 5
      %p187 = por %p185, %p186
      %p188 = scmp.ne.s32.totalorder %s177, %s178
      %p189 = scmp.eq.s32.totalorder %s19, 0
      %p190 = por %p188, %p189
      %p191 = scmp.ne.s32.totalorder %s177, %s178
      %p192 = scmp.eq.s32.totalorder %s20, 5
      %p193 = por %p191, %p192
      %p195 = scmp.ne.s32.totalorder %s178, %s194
      %p196 = scmp.eq.s32.totalorder %s20, 0
      %p197 = por %p195, %p196
      %s198 = ssub.s32 %s21, %s33
      %s199 = ssub.s32 %s22, %s29
      %s200 = sor.u32 %s198, %s199
      %p201 = scmp.eq.s32.totalorder %s200, 0
      %s203 = sadd.s32 %s202, 1
      %s204 = scalar_select %p201, %s202, %s203
      %p207 = pneg %p201
      %p208 = scmp.eq.s32.totalorder %s14, 5
      %p209 = por %p207, %p208
      %p210 = scmp.ne.s32.totalorder %s202, %s205
      %p211 = scmp.eq.s32.totalorder %s14, 0
      %p212 = por %p210, %p211
      %p213 = scmp.ne.s32.totalorder %s202, %s205
      %p214 = scmp.eq.s32.totalorder %s19, 5
      %p215 = por %p213, %p214
      %p216 = scmp.ne.s32.totalorder %s205, %s206
      %p217 = scmp.eq.s32.totalorder %s19, 0
      %p218 = por %p216, %p217
      %p219 = scmp.ne.s32.totalorder %s205, %s206
      %p220 = scmp.eq.s32.totalorder %s20, 5
      %p221 = por %p219, %p220
      %p223 = scmp.ne.s32.totalorder %s206, %s222
      %p224 = scmp.eq.s32.totalorder %s20, 0
      %p225 = por %p223, %p224
      %p226 = scmp.le.s32.totalorder 1, %s14
      %p227 = scmp.lt.s32.totalorder %s14, 7
      %p228 = pnand %p226, %p227
      %p229 = pneg %p228
      // Predicated region
      $region9: #{decoder_forward.4} parent=5 // pred_check
        _
      $region10: #{decoder_forward.4} parent=5 // pred_check_branch
        %231 = sbr.rel (%p228) target = $region12
      $region11: #{decoder_forward.4} parent=5 // pred_region
        %s232 = ssub.s32 %s14, 1
        // Predicated region
        $region13: #{decoder_forward.4} parent=11 // pred_check
          %p233 = pneg %p73
        $region14: #{decoder_forward.4} parent=11 // pred_check_branch
          %235 = sbr.rel (%p233) target = $region16
        $region15: #{decoder_forward.4} parent=11 // pred_region
          _
        $region16: #{decoder_forward.4} parent=11 // pred_fallthru
          _
        // Predicated region
        $region17: #{decoder_forward.4} parent=11 // pred_check
          %p236 = pneg %p120
        $region18: #{decoder_forward.4} parent=11 // pred_check_branch
          %238 = sbr.rel (%p236) target = $region20
        $region19: #{decoder_forward.4} parent=11 // pred_region
          _
        $region20: #{decoder_forward.4} parent=11 // pred_fallthru
          _
        // Predicated region
        $region21: #{decoder_forward.4} parent=11 // pred_check
          %p239 = pneg %p141
        $region22: #{decoder_forward.4} parent=11 // pred_check_branch
          %241 = sbr.rel (%p239) target = $region24
        $region23: #{decoder_forward.4} parent=11 // pred_region
          _
        $region24: #{decoder_forward.4} parent=11 // pred_fallthru
          _
        // Predicated region
        $region25: #{decoder_forward.4} parent=11 // pred_check
          %p242 = pneg %p162
        $region26: #{decoder_forward.4} parent=11 // pred_check_branch
          %244 = sbr.rel (%p242) target = $region28
        $region27: #{decoder_forward.4} parent=11 // pred_region
          _
        $region28: #{decoder_forward.4} parent=11 // pred_fallthru
          _
      $region12: #{decoder_forward.4} parent=5 // pred_fallthru
        _
      %p245 = scmp.lt.s32.totalorder %s14, 6
      // Predicated region
      $region29: #{decoder_forward.4} parent=5 // pred_check
        %p246 = pneg %p245
      $region30: #{decoder_forward.4} parent=5 // pred_check_branch
        %248 = sbr.rel (%p246) target = $region32
      $region31: #{decoder_forward.4} parent=5 // pred_region
        // Predicated region
        $region33: #{decoder_forward.4} parent=31 // pred_check
          %p249 = pneg %p46
        $region34: #{decoder_forward.4} parent=31 // pred_check_branch
          %251 = sbr.rel (%p249) target = $region36
        $region35: #{decoder_forward.4} parent=31 // pred_region
          %s252 = smul.u32 16, %s22
          %s253 = ssub.s32 41, %s252
          %p254 = scmp.lt.s32.totalorder %s253, 16
          %s255 = scalar_select %p254, %s253, 16
          %s256 = smul.u32 128, %s255
          %p257 = scmp.lt.s32.totalorder %s252, 40
          %s258 = scalar_select %p257, %s252, 40
          %s259 = smul.addr %s258, 8
          %s260 = scalar_lea.vmem %s0, %s259
          %s261 = smul.u32 16, %s22
          %s262 = ssub.s32 41, %s261
          %p263 = scmp.lt.s32.totalorder %s262, 16
          %s264 = scalar_select %p263, %s262, 16
          %s265 = smul.u32 128, %s264
        $region36: #{decoder_forward.4} parent=31 // pred_fallthru
          _
        // Predicated region
        $region37: #{decoder_forward.4} parent=31 // pred_check
          %p266 = pneg %p93
        $region38: #{decoder_forward.4} parent=31 // pred_check_branch
          %268 = sbr.rel (%p266) target = $region40
        $region39: #{decoder_forward.4} parent=31 // pred_region
          %p269 = scmp.lt.s32.totalorder %s21, 1
          %s270 = scalar_select %p269, %s21, 1
          %s271 = scalar_lea.vmem %s2, %s270
        $region40: #{decoder_forward.4} parent=31 // pred_fallthru
          _
      $region32: #{decoder_forward.4} parent=5 // pred_fallthru
        _
      %p272 = scmp.le.s32.totalorder 1, %s14
      %p273 = scmp.lt.s32.totalorder %s14, 7
      %p274 = pnand %p272, %p273
      %p275 = pneg %p274
      // Predicated region
      $region41: #{decoder_forward.4} parent=5 // pred_check
        _
      $region42: #{decoder_forward.4} parent=5 // pred_check_branch
        %277 = sbr.rel (%p274) target = $region44
      $region43: #{decoder_forward.4} parent=5 // pred_region
        %s278 = ssub.s32 %s14, 1
        %s279 = smul.u32 16, %s24
        %s280 = ssub.s32 41, %s279
        %p281 = scmp.lt.s32.totalorder %s280, 16
        %s282 = scalar_select %p281, %s280, 16
        %s283 = smul.u32 128, %s282
        %p284 = scmp.lt.s32.totalorder %s279, 40
        %s285 = scalar_select %p284, %s279, 40
        %s286 = smul.addr %s285, 8
        %s287 = scalar_lea.vmem %s0, %s286
        %p288 = pneg %p52
        %p289 = pneg %p49
        %p290 = pneg %p73
        %p291 = pneg %p70
        %p292 = scmp.lt.s32.totalorder %s23, 1
        %s293 = scalar_select %p292, %s23, 1
        %s294 = scalar_lea.vmem %s2, %s293
        %p295 = pneg %p99
        %p296 = pneg %p96
        %p297 = pneg %p120
        %p298 = pneg %p117
        %p299 = pneg %p141
        %p300 = pneg %p138
        %p301 = pneg %p162
        %p302 = pneg %p159
        %p303 = pneg %p190
        %p304 = pneg %p187
        %s305 = sand.u32 %s177, 1
        %s306 = sand.u32 %s177, 1
        %s307 = smul.addr %s306, 128
        %s308 = scalar_lea.vmem [#allocation2], %s307
        %p309 = pneg %p218
        %p310 = pneg %p215
        %p311 = scmp.lt.s32.totalorder %s23, 1
        %s312 = scalar_select %p311, %s23, 1
        %p313 = scmp.lt.s32.totalorder %s24, 2
        %s314 = scalar_select %p313, %s24, 2
        %s315 = smul.addr %s312, 3
        %s316 = sadd.s32 %s314, %s315
        %s317 = smul.addr %s316, 2
        %s318 = scalar_lea.vmem %s7, %s317
        %s319 = smul.u32 16, %s24
        %s320 = ssub.s32 41, %s319
        %p321 = scmp.lt.s32.totalorder %s320, 16
        %s322 = scalar_select %p321, %s320, 16
        %s323 = smul.u32 128, %s322
        %p324 = scmp.lt.s32.totalorder %s319, 40
        %s325 = scalar_select %p324, %s319, 40
        %s326 = smul.addr %s325, 8
        %s327 = scalar_lea.vmem %s0, %s326
        %s328 = smul.u32 16, %s24
        %s329 = ssub.s32 41, %s328
        %p330 = scmp.lt.s32.totalorder %s329, 16
        %s331 = scalar_select %p330, %s329, 16
        %s332 = smul.u32 128, %s331
        %p333 = scmp.lt.s32.totalorder %s23, 1
        %s334 = scalar_select %p333, %s23, 1
        %s335 = scalar_lea.vmem %s2, %s334
        %s336 = smul.u32 16, %s24
        %s337 = ssub.s32 41, %s336
        %p338 = scmp.lt.s32.totalorder %s337, 16
        %s339 = scalar_select %p338, %s337, 16
        %s340 = smul.u32 128, %s339
        %p341 = scmp.lt.s32.totalorder %s23, 1
        %s342 = scalar_select %p341, %s23, 1
        %p343 = scmp.lt.s32.totalorder %s24, 2
        %s344 = scalar_select %p343, %s24, 2
        %s345 = smul.addr %s342, 3
        %s346 = sadd.s32 %s344, %s345
        %s347 = smul.addr %s346, 2
        %s348 = scalar_lea.vmem %s7, %s347
        %v349 = vld [vmem:[%s327] sm:$0xff]
        %v350 = vld [vmem:[%s327 + $0x8] sm:$0xff]
        %v351 = vld [vmem:[%s327 + $0x10] sm:$0xff]
        %v352 = vld [vmem:[%s327 + $0x18] sm:$0xff]
        %v353 = vld [vmem:[%s327 + $0x20] sm:$0xff]
        %v354 = vld [vmem:[%s327 + $0x28] sm:$0xff]
        %v355 = vld [vmem:[%s327 + $0x30] sm:$0xff]
        %v356 = vld [vmem:[%s327 + $0x38] sm:$0xff]
        %v357 = vld [vmem:[%s327 + $0x40] sm:$0xff]
        %v358 = vld [vmem:[%s327 + $0x48] sm:$0xff]
        %v359 = vld [vmem:[%s327 + $0x50] sm:$0xff]
        %v360 = vld [vmem:[%s327 + $0x58] sm:$0xff]
        %v361 = vld [vmem:[%s327 + $0x60] sm:$0xff]
        %v362 = vld [vmem:[%s327 + $0x68] sm:$0xff]
        %v363 = vld [vmem:[%s327 + $0x70] sm:$0xff]
        %v364 = vld [vmem:[%s327 + $0x78] sm:$0xff]
        %v365 = vld [vmem:[%s1] sm:$0x3]
        %v366 = vld [vmem:[%s335] sm:$0x1]
        %v368 = vlaneseq
        %v369 = vshrl.u32 %v368, 7
        %v370 = vsub.s32 0, %v369
        %v371 = vrot.slane %v366, %v370
        %vm373 = vcmask 15360
        %v375 = vsel %vm373, %v349, 0
        %v378 = vsel %vm373, %v350, 0
        %v381 = vsel %vm373, %v351, 0
        %v384 = vsel %vm373, %v352, 0
        %v387 = vsel %vm373, %v353, 0
        %v390 = vsel %vm373, %v354, 0
        %v393 = vsel %vm373, %v355, 0
        %v396 = vsel %vm373, %v356, 0
        %v399 = vsel %vm373, %v357, 0
        %v402 = vsel %vm373, %v358, 0
        %v405 = vsel %vm373, %v359, 0
        %v408 = vsel %vm373, %v360, 0
        %v411 = vsel %vm373, %v361, 0
        %v414 = vsel %vm373, %v362, 0
        %v417 = vsel %vm373, %v363, 0
        %v420 = vsel %vm373, %v364, 0
        %vm422 = vcmask 1041408
        %v424 = vsel %vm422, %v365, 0
        %426 = vmatprep.subr.mxu0 0.0
        %427 = vmatpush1.msra.mxu0 0.0
        %428 = vmatprep.subr.mxu0 0.0
        %429 = vmatpush1.msra.mxu0 0.0
        %430 = vmatprep.subr.mxu0 0.0
        %431 = vmatpush1.msra.mxu0 0.0
        %432 = vmatprep.subr.mxu0 0.0
        %433 = vmatpush1.msra.mxu0 0.0
        %434 = vmatprep.subr.mxu0 0.0
        %435 = vmatpush1.msra.mxu0 0.0
        %436 = vmatprep.subr.mxu0 0.0
        %437 = vmatpush1.msra.mxu0 0.0
        %438 = vmatprep.subr.mxu0 0.0
        %439 = vmatpush1.msra.mxu0 0.0
        %440 = vmatprep.subr.mxu0 0.0
        %441 = vmatpush1.msra.mxu0 0.0
        %442 = vmatprep.subr.mxu0 0.0
        %443 = vmatpush1.msra.mxu0 0.0
        %444 = vmatprep.subr.mxu0 0.0
        %445 = vmatpush1.msra.mxu0 0.0
        %446 = vmatprep.subr.mxu0 0.0
        %447 = vmatpush1.msra.mxu0 0.0
        %448 = vmatprep.subr.mxu0 0.0
        %449 = vmatpush1.msra.mxu0 0.0
        %450 = vmatprep.subr.mxu0 0.0
        %451 = vmatpush1.msra.mxu0 0.0
        %452 = vmatprep.subr.mxu0 0.0
        %453 = vmatpush1.msra.mxu0 0.0
        %454 = vmatprep.subr.mxu0 0.0
        %455 = vmatpush1.msra.mxu0 0.0
        %456 = vmatprep.subr.mxu0 0.0
        %457 = vmatpush1.msra.mxu0 %v424
        %458 = vmatprep.subr.mxu0 0.0
        %459 = vmatpush2.msra.mxu0 0.0
        %460 = vmatprep.subr.mxu0 0.0
        %461 = vmatpush2.msra.mxu0 0.0
        %462 = vmatprep.subr.mxu0 0.0
        %463 = vmatpush2.msra.mxu0 0.0
        %464 = vmatprep.subr.mxu0 0.0
        %465 = vmatpush2.msra.mxu0 0.0
        %466 = vmatprep.subr.mxu0 0.0
        %467 = vmatpush2.msra.mxu0 0.0
        %468 = vmatprep.subr.mxu0 0.0
        %469 = vmatpush2.msra.mxu0 0.0
        %470 = vmatprep.subr.mxu0 0.0
        %471 = vmatpush2.msra.mxu0 0.0
        %472 = vmatprep.subr.mxu0 0.0
        %473 = vmatpush2.msra.mxu0 0.0
        %474 = vmatprep.subr.mxu0 0.0
        %475 = vmatpush2.msra.mxu0 0.0
        %476 = vmatprep.subr.mxu0 0.0
        %477 = vmatpush2.msra.mxu0 0.0
        %478 = vmatprep.subr.mxu0 0.0
        %479 = vmatpush2.msra.mxu0 0.0
        %480 = vmatprep.subr.mxu0 0.0
        %481 = vmatpush2.msra.mxu0 0.0
        %482 = vmatprep.subr.mxu0 0.0
        %483 = vmatpush2.msra.mxu0 0.0
        %484 = vmatprep.subr.mxu0 0.0
        %485 = vmatpush2.msra.mxu0 0.0
        %486 = vmatprep.subr.mxu0 0.0
        %487 = vmatpush2.msra.mxu0 0.0
        %488 = vmatprep.subr.mxu0 0.0
        %489 = vmatpush2.msra.mxu0 0.0
        %490 = vmatprep.mubr.f32.mxu0 0.0
        %491 = vmatmul.mubr.f32.gmra.mxu0 %v375
        %v492 = vpop.f32.mrf.mxu0
        %v493 = vadd.f32 %v371, %v492
        %v494 = vpop.f32.mrf.mxu0
        %495 = vmatprep.mubr.f32.mxu0 0.0
        %496 = vmatmul.mubr.f32.gmra.mxu0 %v378
        %v497 = vpop.f32.mrf.mxu0
        %v498 = vadd.f32 %v371, %v497
        %v499 = vpop.f32.mrf.mxu0
        %500 = vmatprep.mubr.f32.mxu0 0.0
        %501 = vmatmul.mubr.f32.gmra.mxu0 %v381
        %v502 = vpop.f32.mrf.mxu0
        %v503 = vadd.f32 %v371, %v502
        %v504 = vpop.f32.mrf.mxu0
        %505 = vmatprep.mubr.f32.mxu0 0.0
        %506 = vmatmul.mubr.f32.gmra.mxu0 %v384
        %v507 = vpop.f32.mrf.mxu0
        %v508 = vadd.f32 %v371, %v507
        %v509 = vpop.f32.mrf.mxu0
        %510 = vmatprep.mubr.f32.mxu0 0.0
        %511 = vmatmul.mubr.f32.gmra.mxu0 %v387
        %v512 = vpop.f32.mrf.mxu0
        %v513 = vadd.f32 %v371, %v512
        %v514 = vpop.f32.mrf.mxu0
        %515 = vmatprep.mubr.f32.mxu0 0.0
        %516 = vmatmul.mubr.f32.gmra.mxu0 %v390
        %v517 = vpop.f32.mrf.mxu0
        %v518 = vadd.f32 %v371, %v517
        %v519 = vpop.f32.mrf.mxu0
        %520 = vmatprep.mubr.f32.mxu0 0.0
        %521 = vmatmul.mubr.f32.gmra.mxu0 %v393
        %v522 = vpop.f32.mrf.mxu0
        %v523 = vadd.f32 %v371, %v522
        %v524 = vpop.f32.mrf.mxu0
        %525 = vmatprep.mubr.f32.mxu0 0.0
        %526 = vmatmul.mubr.f32.gmra.mxu0 %v396
        %v527 = vpop.f32.mrf.mxu0
        %v528 = vadd.f32 %v371, %v527
        %v529 = vpop.f32.mrf.mxu0
        %530 = vmatprep.mubr.f32.mxu0 0.0
        %531 = vmatmul.mubr.f32.gmra.mxu0 %v399
        %v532 = vpop.f32.mrf.mxu0
        %v533 = vadd.f32 %v371, %v532
        %v534 = vpop.f32.mrf.mxu0
        %535 = vmatprep.mubr.f32.mxu0 0.0
        %536 = vmatmul.mubr.f32.gmra.mxu0 %v402
        %v537 = vpop.f32.mrf.mxu0
        %v538 = vadd.f32 %v371, %v537
        %v539 = vpop.f32.mrf.mxu0
        %540 = vmatprep.mubr.f32.mxu0 0.0
        %541 = vmatmul.mubr.f32.gmra.mxu0 %v405
        %v542 = vpop.f32.mrf.mxu0
        %v543 = vadd.f32 %v371, %v542
        %v544 = vpop.f32.mrf.mxu0
        %545 = vmatprep.mubr.f32.mxu0 0.0
        %546 = vmatmul.mubr.f32.gmra.mxu0 %v408
        %v547 = vpop.f32.mrf.mxu0
        %v548 = vadd.f32 %v371, %v547
        %v549 = vpop.f32.mrf.mxu0
        %550 = vmatprep.mubr.f32.mxu0 0.0
        %551 = vmatmul.mubr.f32.gmra.mxu0 %v411
        %v552 = vpop.f32.mrf.mxu0
        %v553 = vadd.f32 %v371, %v552
        %v554 = vpop.f32.mrf.mxu0
        %555 = vmatprep.mubr.f32.mxu0 0.0
        %556 = vmatmul.mubr.f32.gmra.mxu0 %v414
        %v557 = vpop.f32.mrf.mxu0
        %v558 = vadd.f32 %v371, %v557
        %v559 = vpop.f32.mrf.mxu0
        %560 = vmatprep.mubr.f32.mxu0 0.0
        %561 = vmatmul.mubr.f32.gmra.mxu0 %v417
        %v562 = vpop.f32.mrf.mxu0
        %v563 = vadd.f32 %v371, %v562
        %v564 = vpop.f32.mrf.mxu0
        %565 = vmatprep.mubr.f32.mxu0 0.0
        %566 = vmatmul.mubr.f32.gmra.mxu0 %v420
        %v567 = vpop.f32.mrf.mxu0
        %v568 = vadd.f32 %v371, %v567
        %v569 = vpop.f32.mrf.mxu0
        %570 = vdwg.mxu0
        %v571 = vld [vmem:[%s3] sm:$0x1]
        %v573 = vlaneseq
        %v574 = vshrl.u32 %v573, 7
        %v575 = vsub.s32 0, %v574
        %v576 = vrot.slane %v571, %v575
        %v578 = vmul.f32 %v493, %v576
        %v579 = vmul.f32 %v498, %v576
        %v580 = vmul.f32 %v503, %v576
        %v581 = vmul.f32 %v508, %v576
        %v582 = vmul.f32 %v513, %v576
        %v583 = vmul.f32 %v518, %v576
        %v584 = vmul.f32 %v523, %v576
        %v585 = vmul.f32 %v528, %v576
        %v586 = vmul.f32 %v533, %v576
        %v587 = vmul.f32 %v538, %v576
        %v588 = vmul.f32 %v543, %v576
        %v589 = vmul.f32 %v548, %v576
        %v590 = vmul.f32 %v553, %v576
        %v591 = vmul.f32 %v558, %v576
        %v592 = vmul.f32 %v563, %v576
        %v593 = vmul.f32 %v568, %v576
        %v594 = vld [vmem:[%s4] sm:$0x1]
        %v596 = vlaneseq
        %v597 = vshrl.u32 %v596, 7
        %v598 = vsub.s32 0, %v597
        %v599 = vrot.slane %v594, %v598
        %v601 = vadd.f32 %v578, %v599
        %v602 = vadd.f32 %v579, %v599
        %v603 = vadd.f32 %v580, %v599
        %v604 = vadd.f32 %v581, %v599
        %v605 = vadd.f32 %v582, %v599
        %v606 = vadd.f32 %v583, %v599
        %v607 = vadd.f32 %v584, %v599
        %v608 = vadd.f32 %v585, %v599
        %v609 = vadd.f32 %v586, %v599
        %v610 = vadd.f32 %v587, %v599
        %v611 = vadd.f32 %v588, %v599
        %v612 = vadd.f32 %v589, %v599
        %v613 = vadd.f32 %v590, %v599
        %v614 = vadd.f32 %v591, %v599
        %v615 = vadd.f32 %v592, %v599
        %v616 = vadd.f32 %v593, %v599
        %v617 = vmax.f32 %v601, 0.0
        %v618 = vmax.f32 %v602, 0.0
        %v619 = vmax.f32 %v603, 0.0
        %v620 = vmax.f32 %v604, 0.0
        %v621 = vmax.f32 %v605, 0.0
        %v622 = vmax.f32 %v606, 0.0
        %v623 = vmax.f32 %v607, 0.0
        %v624 = vmax.f32 %v608, 0.0
        %v625 = vmax.f32 %v609, 0.0
        %v626 = vmax.f32 %v610, 0.0
        %v627 = vmax.f32 %v611, 0.0
        %v628 = vmax.f32 %v612, 0.0
        %v629 = vmax.f32 %v613, 0.0
        %v630 = vmax.f32 %v614, 0.0
        %v631 = vmax.f32 %v615, 0.0
        %v632 = vmax.f32 %v616, 0.0
        %v633 = vld [vmem:[%s5] sm:$0xff]
        %v634 = vld [vmem:[%s5 + $0x8] sm:$0xff]
        %v635 = vld [vmem:[%s5 + $0x10] sm:$0xff]
        %v636 = vld [vmem:[%s5 + $0x18] sm:$0xff]
        %v637 = vld [vmem:[%s5 + $0x20] sm:$0xff]
        %v638 = vld [vmem:[%s5 + $0x28] sm:$0xff]
        %v639 = vld [vmem:[%s5 + $0x30] sm:$0xff]
        %v640 = vld [vmem:[%s5 + $0x38] sm:$0xff]
        %v641 = vld [vmem:[%s5 + $0x40] sm:$0xff]
        %v642 = vld [vmem:[%s5 + $0x48] sm:$0xff]
        %v643 = vld [vmem:[%s5 + $0x50] sm:$0xff]
        %v644 = vld [vmem:[%s5 + $0x58] sm:$0xff]
        %v645 = vld [vmem:[%s5 + $0x60] sm:$0xff]
        %v646 = vld [vmem:[%s5 + $0x68] sm:$0xff]
        %v647 = vld [vmem:[%s5 + $0x70] sm:$0xff]
        %v648 = vld [vmem:[%s5 + $0x78] sm:$0xff]
        %649 = vmatprep.subr.mxu0 0.0
        %650 = vmatpush1.msra.mxu0 %v648
        %651 = vmatprep.subr.mxu0 0.0
        %652 = vmatpush1.msra.mxu0 %v647
        %653 = vmatprep.subr.mxu0 0.0
        %654 = vmatpush1.msra.mxu0 %v646
        %655 = vmatprep.subr.mxu0 0.0
        %656 = vmatpush1.msra.mxu0 %v645
        %657 = vmatprep.subr.mxu0 0.0
        %658 = vmatpush1.msra.mxu0 %v644
        %659 = vmatprep.subr.mxu0 0.0
        %660 = vmatpush1.msra.mxu0 %v643
        %661 = vmatprep.subr.mxu0 0.0
        %662 = vmatpush1.msra.mxu0 %v642
        %663 = vmatprep.subr.mxu0 0.0
        %664 = vmatpush1.msra.mxu0 %v641
        %665 = vmatprep.subr.mxu0 0.0
        %666 = vmatpush1.msra.mxu0 %v640
        %667 = vmatprep.subr.mxu0 0.0
        %668 = vmatpush1.msra.mxu0 %v639
        %669 = vmatprep.subr.mxu0 0.0
        %670 = vmatpush1.msra.mxu0 %v638
        %671 = vmatprep.subr.mxu0 0.0
        %672 = vmatpush1.msra.mxu0 %v637
        %673 = vmatprep.subr.mxu0 0.0
        %674 = vmatpush1.msra.mxu0 %v636
        %675 = vmatprep.subr.mxu0 0.0
        %676 = vmatpush1.msra.mxu0 %v635
        %677 = vmatprep.subr.mxu0 0.0
        %678 = vmatpush1.msra.mxu0 %v634
        %679 = vmatprep.subr.mxu0 0.0
        %680 = vmatpush1.msra.mxu0 %v633
        %681 = vmatprep.subr.mxu0 0.0
        %682 = vmatpush2.msra.mxu0 0.0
        %683 = vmatprep.subr.mxu0 0.0
        %684 = vmatpush2.msra.mxu0 0.0
        %685 = vmatprep.subr.mxu0 0.0
        %686 = vmatpush2.msra.mxu0 0.0
        %687 = vmatprep.subr.mxu0 0.0
        %688 = vmatpush2.msra.mxu0 0.0
        %689 = vmatprep.subr.mxu0 0.0
        %690 = vmatpush2.msra.mxu0 0.0
        %691 = vmatprep.subr.mxu0 0.0
        %692 = vmatpush2.msra.mxu0 0.0
        %693 = vmatprep.subr.mxu0 0.0
        %694 = vmatpush2.msra.mxu0 0.0
        %695 = vmatprep.subr.mxu0 0.0
        %696 = vmatpush2.msra.mxu0 0.0
        %697 = vmatprep.subr.mxu0 0.0
        %698 = vmatpush2.msra.mxu0 0.0
        %699 = vmatprep.subr.mxu0 0.0
        %700 = vmatpush2.msra.mxu0 0.0
        %701 = vmatprep.subr.mxu0 0.0
        %702 = vmatpush2.msra.mxu0 0.0
        %703 = vmatprep.subr.mxu0 0.0
        %704 = vmatpush2.msra.mxu0 0.0
        %705 = vmatprep.subr.mxu0 0.0
        %706 = vmatpush2.msra.mxu0 0.0
        %707 = vmatprep.subr.mxu0 0.0
        %708 = vmatpush2.msra.mxu0 0.0
        %709 = vmatprep.subr.mxu0 0.0
        %710 = vmatpush2.msra.mxu0 0.0
        %711 = vmatprep.subr.mxu0 0.0
        %712 = vmatpush2.msra.mxu0 0.0
        %713 = vmatprep.mubr.f32.mxu0 0.0
        %714 = vmatmul.mubr.f32.gmra.mxu0 %v617
        %v715 = vpop.f32.mrf.mxu0
        %v716 = vadd.f32 0.0, %v715
        %v717 = vpop.f32.mrf.mxu0
        %718 = vmatprep.mubr.f32.mxu0 0.0
        %719 = vmatmul.mubr.f32.gmra.mxu0 %v618
        %v720 = vpop.f32.mrf.mxu0
        %v721 = vadd.f32 0.0, %v720
        %v722 = vpop.f32.mrf.mxu0
        %723 = vmatprep.mubr.f32.mxu0 0.0
        %724 = vmatmul.mubr.f32.gmra.mxu0 %v619
        %v725 = vpop.f32.mrf.mxu0
        %v726 = vadd.f32 0.0, %v725
        %v727 = vpop.f32.mrf.mxu0
        %728 = vmatprep.mubr.f32.mxu0 0.0
        %729 = vmatmul.mubr.f32.gmra.mxu0 %v620
        %v730 = vpop.f32.mrf.mxu0
        %v731 = vadd.f32 0.0, %v730
        %v732 = vpop.f32.mrf.mxu0
        %733 = vmatprep.mubr.f32.mxu0 0.0
        %734 = vmatmul.mubr.f32.gmra.mxu0 %v621
        %v735 = vpop.f32.mrf.mxu0
        %v736 = vadd.f32 0.0, %v735
        %v737 = vpop.f32.mrf.mxu0
        %738 = vmatprep.mubr.f32.mxu0 0.0
        %739 = vmatmul.mubr.f32.gmra.mxu0 %v622
        %v740 = vpop.f32.mrf.mxu0
        %v741 = vadd.f32 0.0, %v740
        %v742 = vpop.f32.mrf.mxu0
        %743 = vmatprep.mubr.f32.mxu0 0.0
        %744 = vmatmul.mubr.f32.gmra.mxu0 %v623
        %v745 = vpop.f32.mrf.mxu0
        %v746 = vadd.f32 0.0, %v745
        %v747 = vpop.f32.mrf.mxu0
        %748 = vmatprep.mubr.f32.mxu0 0.0
        %749 = vmatmul.mubr.f32.gmra.mxu0 %v624
        %v750 = vpop.f32.mrf.mxu0
        %v751 = vadd.f32 0.0, %v750
        %v752 = vpop.f32.mrf.mxu0
        %753 = vmatprep.mubr.f32.mxu0 0.0
        %754 = vmatmul.mubr.f32.gmra.mxu0 %v625
        %v755 = vpop.f32.mrf.mxu0
        %v756 = vadd.f32 0.0, %v755
        %v757 = vpop.f32.mrf.mxu0
        %758 = vmatprep.mubr.f32.mxu0 0.0
        %759 = vmatmul.mubr.f32.gmra.mxu0 %v626
        %v760 = vpop.f32.mrf.mxu0
        %v761 = vadd.f32 0.0, %v760
        %v762 = vpop.f32.mrf.mxu0
        %763 = vmatprep.mubr.f32.mxu0 0.0
        %764 = vmatmul.mubr.f32.gmra.mxu0 %v627
        %v765 = vpop.f32.mrf.mxu0
        %v766 = vadd.f32 0.0, %v765
        %v767 = vpop.f32.mrf.mxu0
        %768 = vmatprep.mubr.f32.mxu0 0.0
        %769 = vmatmul.mubr.f32.gmra.mxu0 %v628
        %v770 = vpop.f32.mrf.mxu0
        %v771 = vadd.f32 0.0, %v770
        %v772 = vpop.f32.mrf.mxu0
        %773 = vmatprep.mubr.f32.mxu0 0.0
        %774 = vmatmul.mubr.f32.gmra.mxu0 %v629
        %v775 = vpop.f32.mrf.mxu0
        %v776 = vadd.f32 0.0, %v775
        %v777 = vpop.f32.mrf.mxu0
        %778 = vmatprep.mubr.f32.mxu0 0.0
        %779 = vmatmul.mubr.f32.gmra.mxu0 %v630
        %v780 = vpop.f32.mrf.mxu0
        %v781 = vadd.f32 0.0, %v780
        %v782 = vpop.f32.mrf.mxu0
        %783 = vmatprep.mubr.f32.mxu0 0.0
        %784 = vmatmul.mubr.f32.gmra.mxu0 %v631
        %v785 = vpop.f32.mrf.mxu0
        %v786 = vadd.f32 0.0, %v785
        %v787 = vpop.f32.mrf.mxu0
        %788 = vmatprep.mubr.f32.mxu0 0.0
        %789 = vmatmul.mubr.f32.gmra.mxu0 %v632
        %v790 = vpop.f32.mrf.mxu0
        %v791 = vadd.f32 0.0, %v790
        %v792 = vpop.f32.mrf.mxu0
        %793 = vdwg.mxu0
        %794 = vst [vmem:[%s308] sm:$0xff] %v716
        %795 = vst [vmem:[%s308 + $0x8] sm:$0xff] %v721
        %796 = vst [vmem:[%s308 + $0x10] sm:$0xff] %v726
        %797 = vst [vmem:[%s308 + $0x18] sm:$0xff] %v731
        %798 = vst [vmem:[%s308 + $0x20] sm:$0xff] %v736
        %799 = vst [vmem:[%s308 + $0x28] sm:$0xff] %v741
        %800 = vst [vmem:[%s308 + $0x30] sm:$0xff] %v746
        %801 = vst [vmem:[%s308 + $0x38] sm:$0xff] %v751
        %802 = vst [vmem:[%s308 + $0x40] sm:$0xff] %v756
        %803 = vst [vmem:[%s308 + $0x48] sm:$0xff] %v761
        %804 = vst [vmem:[%s308 + $0x50] sm:$0xff] %v766
        %805 = vst [vmem:[%s308 + $0x58] sm:$0xff] %v771
        %806 = vst [vmem:[%s308 + $0x60] sm:$0xff] %v776
        %807 = vst [vmem:[%s308 + $0x68] sm:$0xff] %v781
        %808 = vst [vmem:[%s308 + $0x70] sm:$0xff] %v786
        %809 = vst [vmem:[%s308 + $0x78] sm:$0xff] %v791
        %s810 = smul.u32 %s24, 128
        %v811 = vlaneseq
        %v812 = vshrl.u32 %v811, 7
        %v813 = vadd.s32 %v812, 8
        %v814 = vadd.s32 %v812, 16
        %v815 = vadd.s32 %v812, 24
        %v816 = vadd.s32 %v812, 32
        %v817 = vadd.s32 %v812, 40
        %v818 = vadd.s32 %v812, 48
        %v819 = vadd.s32 %v812, 56
        %v820 = vadd.s32 %v812, 64
        %v821 = vadd.s32 %v812, 72
        %v822 = vadd.s32 %v812, 80
        %v823 = vadd.s32 %v812, 88
        %v824 = vadd.s32 %v812, 96
        %v825 = vadd.s32 %v812, 104
        %v826 = vadd.s32 %v812, 112
        %v827 = vadd.s32 %v812, 120
        %v828 = vstv %s810
        %v829 = vadd.s32 %v828, %v812
        %v830 = vadd.s32 %v828, %v813
        %v831 = vadd.s32 %v828, %v814
        %v832 = vadd.s32 %v828, %v815
        %v833 = vadd.s32 %v828, %v816
        %v834 = vadd.s32 %v828, %v817
        %v835 = vadd.s32 %v828, %v818
        %v836 = vadd.s32 %v828, %v819
        %v837 = vadd.s32 %v828, %v820
        %v838 = vadd.s32 %v828, %v821
        %v839 = vadd.s32 %v828, %v822
        %v840 = vadd.s32 %v828, %v823
        %v841 = vadd.s32 %v828, %v824
        %v842 = vadd.s32 %v828, %v825
        %v843 = vadd.s32 %v828, %v826
        %v844 = vadd.s32 %v828, %v827
        %vm845 = vcmp.lt.s32.totalorder %v829, 324
        %vm846 = vcmp.lt.s32.totalorder %v830, 324
        %vm847 = vcmp.lt.s32.totalorder %v831, 324
        %vm848 = vcmp.lt.s32.totalorder %v832, 324
        %vm849 = vcmp.lt.s32.totalorder %v833, 324
        %vm850 = vcmp.lt.s32.totalorder %v834, 324
        %vm851 = vcmp.lt.s32.totalorder %v835, 324
        %vm852 = vcmp.lt.s32.totalorder %v836, 324
        %vm853 = vcmp.lt.s32.totalorder %v837, 324
        %vm854 = vcmp.lt.s32.totalorder %v838, 324
        %vm855 = vcmp.lt.s32.totalorder %v839, 324
        %vm856 = vcmp.lt.s32.totalorder %v840, 324
        %vm857 = vcmp.lt.s32.totalorder %v841, 324
        %vm858 = vcmp.lt.s32.totalorder %v842, 324
        %vm859 = vcmp.lt.s32.totalorder %v843, 324
        %vm860 = vcmp.lt.s32.totalorder %v844, 324
        %v861 = vsel %vm845, 1, 0
        %v862 = vsel %vm846, 1, 0
        %v863 = vsel %vm847, 1, 0
        %v864 = vsel %vm848, 1, 0
        %v865 = vsel %vm849, 1, 0
        %v866 = vsel %vm850, 1, 0
        %v867 = vsel %vm851, 1, 0
        %v868 = vsel %vm852, 1, 0
        %v869 = vsel %vm853, 1, 0
        %v870 = vsel %vm854, 1, 0
        %v871 = vsel %vm855, 1, 0
        %v872 = vsel %vm856, 1, 0
        %v873 = vsel %vm857, 1, 0
        %v874 = vsel %vm858, 1, 0
        %v875 = vsel %vm859, 1, 0
        %v876 = vsel %vm860, 1, 0
        %vm877 = vcmp.eq.s32.totalorder %v861, 1
        %vm878 = vcmp.eq.s32.totalorder %v862, 1
        %vm879 = vcmp.eq.s32.totalorder %v863, 1
        %vm880 = vcmp.eq.s32.totalorder %v864, 1
        %vm881 = vcmp.eq.s32.totalorder %v865, 1
        %vm882 = vcmp.eq.s32.totalorder %v866, 1
        %vm883 = vcmp.eq.s32.totalorder %v867, 1
        %vm884 = vcmp.eq.s32.totalorder %v868, 1
        %vm885 = vcmp.eq.s32.totalorder %v869, 1
        %vm886 = vcmp.eq.s32.totalorder %v870, 1
        %vm887 = vcmp.eq.s32.totalorder %v871, 1
        %vm888 = vcmp.eq.s32.totalorder %v872, 1
        %vm889 = vcmp.eq.s32.totalorder %v873, 1
        %vm890 = vcmp.eq.s32.totalorder %v874, 1
        %vm891 = vcmp.eq.s32.totalorder %v875, 1
        %vm892 = vcmp.eq.s32.totalorder %v876, 1
        %v893 = vsel %vm877, %v716, 0.0
        %v894 = vsel %vm878, %v721, 0.0
        %v895 = vsel %vm879, %v726, 0.0
        %v896 = vsel %vm880, %v731, 0.0
        %v897 = vsel %vm881, %v736, 0.0
        %v898 = vsel %vm882, %v741, 0.0
        %v899 = vsel %vm883, %v746, 0.0
        %v900 = vsel %vm884, %v751, 0.0
        %v901 = vsel %vm885, %v756, 0.0
        %v902 = vsel %vm886, %v761, 0.0
        %v903 = vsel %vm887, %v766, 0.0
        %v904 = vsel %vm888, %v771, 0.0
        %v905 = vsel %vm889, %v776, 0.0
        %v906 = vsel %vm890, %v781, 0.0
        %v907 = vsel %vm891, %v786, 0.0
        %v908 = vsel %vm892, %v791, 0.0
        %v909 = vadd.f32 %v893, %v894
        %v910 = vadd.f32 %v909, %v895
        %v911 = vadd.f32 %v910, %v896
        %v912 = vadd.f32 %v911, %v897
        %v913 = vadd.f32 %v912, %v898
        %v914 = vadd.f32 %v913, %v899
        %v915 = vadd.f32 %v914, %v900
        %v916 = vadd.f32 %v915, %v901
        %v917 = vadd.f32 %v916, %v902
        %v918 = vadd.f32 %v917, %v903
        %v919 = vadd.f32 %v918, %v904
        %v920 = vadd.f32 %v919, %v905
        %v921 = vadd.f32 %v920, %v906
        %v922 = vadd.f32 %v921, %v907
        %v923 = vadd.f32 %v922, %v908
        %v924 = vrot.slane %v923, 4
        %v925 = vadd.f32 %v923, %v924
        %v926 = vrot.slane %v925, 2
        %v927 = vadd.f32 %v925, %v926
        %v928 = vrot.slane %v927, 1
        %v929 = vadd.f32 %v927, %v928
        %930 = vst [vmem:[%s348] sm:$0x1] %v929
        %v931 = vmul.f32 %v893, %v893
        %v932 = vmul.f32 %v894, %v894
        %v933 = vmul.f32 %v895, %v895
        %v934 = vmul.f32 %v896, %v896
        %v935 = vmul.f32 %v897, %v897
        %v936 = vmul.f32 %v898, %v898
        %v937 = vmul.f32 %v899, %v899
        %v938 = vmul.f32 %v900, %v900
        %v939 = vmul.f32 %v901, %v901
        %v940 = vmul.f32 %v902, %v902
        %v941 = vmul.f32 %v903, %v903
        %v942 = vmul.f32 %v904, %v904
        %v943 = vmul.f32 %v905, %v905
        %v944 = vmul.f32 %v906, %v906
        %v945 = vmul.f32 %v907, %v907
        %v946 = vmul.f32 %v908, %v908
        %v947 = vadd.f32 %v931, %v932
        %v948 = vadd.f32 %v947, %v933
        %v949 = vadd.f32 %v948, %v934
        %v950 = vadd.f32 %v949, %v935
        %v951 = vadd.f32 %v950, %v936
        %v952 = vadd.f32 %v951, %v937
        %v953 = vadd.f32 %v952, %v938
        %v954 = vadd.f32 %v953, %v939
        %v955 = vadd.f32 %v954, %v940
        %v956 = vadd.f32 %v955, %v941
        %v957 = vadd.f32 %v956, %v942
        %v958 = vadd.f32 %v957, %v943
        %v959 = vadd.f32 %v958, %v944
        %v960 = vadd.f32 %v959, %v945
        %v961 = vadd.f32 %v960, %v946
        %v962 = vrot.slane %v961, 4
        %v963 = vadd.f32 %v961, %v962
        %v964 = vrot.slane %v963, 2
        %v965 = vadd.f32 %v963, %v964
        %v966 = vrot.slane %v965, 1
        %v967 = vadd.f32 %v965, %v966
        %968 = vst [vmem:[%s348 + $0x1] sm:$0x1] %v967
        %s969 = sand.u32 %s177, 1
        %s970 = sand.u32 %s177, 1
        %s971 = smul.addr %s970, 128
        %s972 = scalar_lea.vmem [#allocation2], %s971
        %p973 = scmp.lt.s32.totalorder %s23, 1
        %s974 = scalar_select %p973, %s23, 1
        %p975 = scmp.lt.s32.totalorder %s24, 2
        %s976 = scalar_select %p975, %s24, 2
        %s977 = smul.addr %s974, 3
        %s978 = sadd.s32 %s976, %s977
        %s979 = smul.addr %s978, 2
        %s980 = scalar_lea.vmem %s7, %s979
        // Predicated region
        $region45: #{decoder_forward.4} parent=43 // pred_check
          %p981 = pneg %p187
        $region46: #{decoder_forward.4} parent=43 // pred_check_branch
          %983 = sbr.rel (%p981) target = $region48
        $region47: #{decoder_forward.4} parent=43 // pred_region
          %s984 = smul.u32 16, %s24
          %s985 = ssub.s32 41, %s984
          %p986 = scmp.lt.s32.totalorder %s985, 16
          %s987 = scalar_select %p986, %s985, 16
          %s988 = smul.u32 128, %s987
          %p989 = scmp.ne.s32.totalorder 0, %s988
          %s990 = smul.addr %s23, 41
          %s991 = sadd.s32 %s984, %s990
          %s992 = smul.addr %s991, 8
          %s993 = scalar_lea.vmem %s6, %s992
          // Predicated region
          $region49: #{decoder_forward.4} parent=47 // pred_check
            %p994 = pneg %p989
          $region50: #{decoder_forward.4} parent=47 // pred_check_branch
            %996 = sbr.rel (%p994) target = $region52
          $region51: #{decoder_forward.4} parent=47 // pred_region
            // Predicated region
            $region53: #{decoder_forward.4} parent=51 // pred_check
              _
            $region54: #{decoder_forward.4} parent=51 // pred_check_branch
              %998 = sbr.rel (0) target = $region56
            $region55: #{decoder_forward.4} parent=51 // pred_region
              // Predicated region
              $region75: #{decoder_forward.4} parent=55 // pred_check
                _
              $region76: #{decoder_forward.4} parent=55 // pred_check_branch
                %1078 = sbr.rel (0) target = $region78
              $region77: #{decoder_forward.4} parent=55 // pred_region
                %s1079 = sshrl.u32 %s987, 4
                // While loop
                $region79: #{decoder_forward.4} parent=77 // loop_pre_header
                  _
                $region80: #{decoder_forward.4} parent=77 // loop_header
                  %s1081 = sphi 0, %s1083
                  %p1082 = scmp.ge.s32.totalorder %s1081, %s1079
                  %s1086 = sphi 0, %s1123
                  %s1087 = sphi %s972, %s1126
                  %s1088 = sphi %s993, %s1127
                $region81: #{decoder_forward.4} parent=77 // loop_header_branch
                  %1085 = sbr.rel (%p1082) target = $region85
                $region82: #{decoder_forward.4} parent=77 // loop_body
                  %v1089 = vld [vmem:[%s1087] sm:$0xff]
                  %1090 = vst [vmem:[%s1088] sm:$0xff] %v1089
                  %v1091 = vld [vmem:[%s1087 + $0x8] sm:$0xff]
                  %1092 = vst [vmem:[%s1088 + $0x8] sm:$0xff] %v1091
                  %v1093 = vld [vmem:[%s1087 + $0x10] sm:$0xff]
                  %1094 = vst [vmem:[%s1088 + $0x10] sm:$0xff] %v1093
                  %v1095 = vld [vmem:[%s1087 + $0x18] sm:$0xff]
                  %1096 = vst [vmem:[%s1088 + $0x18] sm:$0xff] %v1095
                  %v1097 = vld [vmem:[%s1087 + $0x20] sm:$0xff]
                  %1098 = vst [vmem:[%s1088 + $0x20] sm:$0xff] %v1097
                  %v1099 = vld [vmem:[%s1087 + $0x28] sm:$0xff]
                  %1100 = vst [vmem:[%s1088 + $0x28] sm:$0xff] %v1099
                  %v1101 = vld [vmem:[%s1087 + $0x30] sm:$0xff]
                  %1102 = vst [vmem:[%s1088 + $0x30] sm:$0xff] %v1101
                  %v1103 = vld [vmem:[%s1087 + $0x38] sm:$0xff]
                  %1104 = vst [vmem:[%s1088 + $0x38] sm:$0xff] %v1103
                  %v1105 = vld [vmem:[%s1087 + $0x40] sm:$0xff]
                  %1106 = vst [vmem:[%s1088 + $0x40] sm:$0xff] %v1105
                  %v1107 = vld [vmem:[%s1087 + $0x48] sm:$0xff]
                  %1108 = vst [vmem:[%s1088 + $0x48] sm:$0xff] %v1107
                  %v1109 = vld [vmem:[%s1087 + $0x50] sm:$0xff]
                  %1110 = vst [vmem:[%s1088 + $0x50] sm:$0xff] %v1109
                  %v1111 = vld [vmem:[%s1087 + $0x58] sm:$0xff]
                  %1112 = vst [vmem:[%s1088 + $0x58] sm:$0xff] %v1111
                  %v1113 = vld [vmem:[%s1087 + $0x60] sm:$0xff]
                  %1114 = vst [vmem:[%s1088 + $0x60] sm:$0xff] %v1113
                  %v1115 = vld [vmem:[%s1087 + $0x68] sm:$0xff]
                  %1116 = vst [vmem:[%s1088 + $0x68] sm:$0xff] %v1115
                  %v1117 = vld [vmem:[%s1087 + $0x70] sm:$0xff]
                  %1118 = vst [vmem:[%s1088 + $0x70] sm:$0xff] %v1117
                  %v1119 = vld [vmem:[%s1087 + $0x78] sm:$0xff]
                  %1120 = vst [vmem:[%s1088 + $0x78] sm:$0xff] %v1119
                  %s1121 = sadd.s32 1, %s1086
                  %p1122 = scmp.ge.s32.totalorder %s1121, %s1079
                  %s1123 = scalar_select %p1122, 0, %s1121
                  %s1124 = smul.u32 %s1123, 128
                  %s1125 = smul.u32 %s1123, 128
                  %s1126 = scalar_lea.vmem %s972, %s1124 [#allocation2]
                  %s1127 = scalar_lea.vmem %s993, %s1125
                $region83: #{decoder_forward.4} parent=77 // loop_footer
                  %s1083 = sadd.s32 %s1081, 1
                $region84: #{decoder_forward.4} parent=77 // loop_footer_branch
                  %1080 = sbr.rel target = $region80
                $region85: #{decoder_forward.4} parent=77 // loop_exit
                  _
                %s1128 = sshrl.u32 %s987, 4
                %s1129 = sand.u32 %s987, 15
                %s1130 = smul.u32 %s1128, 16
                %s1131 = smul.u32 8, %s1130
                %s1132 = scalar_lea.vmem %s972, %s1131 [#allocation2]
                %s1133 = smul.u32 8, %s1130
                %s1134 = scalar_lea.vmem %s993, %s1133
                // While loop
                $region86: #{decoder_forward.4} parent=77 // loop_pre_header
                  _
                $region87: #{decoder_forward.4} parent=77 // loop_header
                  %s1136 = sphi 0, %s1138
                  %p1137 = scmp.ge.s32.totalorder %s1136, %s1129
                  %s1141 = sphi 0, %s1148
                  %s1142 = sphi %s1132, %s1151
                  %s1143 = sphi %s1134, %s1152
                $region88: #{decoder_forward.4} parent=77 // loop_header_branch
                  %1140 = sbr.rel (%p1137) target = $region92
                $region89: #{decoder_forward.4} parent=77 // loop_body
                  %v1144 = vld [vmem:[%s1142] sm:$0xff]
                  %1145 = vst [vmem:[%s1143] sm:$0xff] %v1144
                  %s1146 = sadd.s32 1, %s1141
                  %p1147 = scmp.ge.s32.totalorder %s1146, %s1129
                  %s1148 = scalar_select %p1147, 0, %s1146
                  %s1149 = smul.u32 %s1148, 8
                  %s1150 = smul.u32 %s1148, 8
                  %s1151 = scalar_lea.vmem %s1132, %s1149 [#allocation2]
                  %s1152 = scalar_lea.vmem %s1134, %s1150
                $region90: #{decoder_forward.4} parent=77 // loop_footer
                  %s1138 = sadd.s32 %s1136, 1
                $region91: #{decoder_forward.4} parent=77 // loop_footer_branch
                  %1135 = sbr.rel target = $region87
                $region92: #{decoder_forward.4} parent=77 // loop_exit
                  _
              $region78: #{decoder_forward.4} parent=55 // pred_fallthru
                _
              // Predicated region
              $region93: #{decoder_forward.4} parent=55 // pred_check
                _
              $region94: #{decoder_forward.4} parent=55 // pred_check_branch
                %1154 = sbr.rel target = $region96
              $region95: #{decoder_forward.4} parent=55 // pred_region
                _
              $region96: #{decoder_forward.4} parent=55 // pred_fallthru
                _
            $region56: #{decoder_forward.4} parent=51 // pred_fallthru
              _
            // Predicated region
            $region57: #{decoder_forward.4} parent=51 // pred_check
              _
            $region58: #{decoder_forward.4} parent=51 // pred_check_branch
              %1000 = sbr.rel target = $region60
            $region59: #{decoder_forward.4} parent=51 // pred_region
              %s1002 = ssub.s32 256, 1
              %s1003 = sshrl.u32 %s987, 4
              // While loop
              $region61: #{decoder_forward.4} parent=59 // loop_pre_header
                _
              $region62: #{decoder_forward.4} parent=59 // loop_header
                %s1005 = sphi 0, %s1007
                %p1006 = scmp.ge.s32.totalorder %s1005, %s1003
                %s1010 = sphi 0, %s1047
                %s1011 = sphi %s972, %s1050
                %s1012 = sphi %s993, %s1051
              $region63: #{decoder_forward.4} parent=59 // loop_header_branch
                %1009 = sbr.rel (%p1006) target = $region67
              $region64: #{decoder_forward.4} parent=59 // loop_body
                %v1013 = vld [vmem:[%s1011] sm:%s1002]
                %1014 = vst [vmem:[%s1012] sm:%s1002] %v1013
                %v1015 = vld [vmem:[%s1011 + $0x8] sm:%s1002]
                %1016 = vst [vmem:[%s1012 + $0x8] sm:%s1002] %v1015
                %v1017 = vld [vmem:[%s1011 + $0x10] sm:%s1002]
                %1018 = vst [vmem:[%s1012 + $0x10] sm:%s1002] %v1017
                %v1019 = vld [vmem:[%s1011 + $0x18] sm:%s1002]
                %1020 = vst [vmem:[%s1012 + $0x18] sm:%s1002] %v1019
                %v1021 = vld [vmem:[%s1011 + $0x20] sm:%s1002]
                %1022 = vst [vmem:[%s1012 + $0x20] sm:%s1002] %v1021
                %v1023 = vld [vmem:[%s1011 + $0x28] sm:%s1002]
                %1024 = vst [vmem:[%s1012 + $0x28] sm:%s1002] %v1023
                %v1025 = vld [vmem:[%s1011 + $0x30] sm:%s1002]
                %1026 = vst [vmem:[%s1012 + $0x30] sm:%s1002] %v1025
                %v1027 = vld [vmem:[%s1011 + $0x38] sm:%s1002]
                %1028 = vst [vmem:[%s1012 + $0x38] sm:%s1002] %v1027
                %v1029 = vld [vmem:[%s1011 + $0x40] sm:%s1002]
                %1030 = vst [vmem:[%s1012 + $0x40] sm:%s1002] %v1029
                %v1031 = vld [vmem:[%s1011 + $0x48] sm:%s1002]
                %1032 = vst [vmem:[%s1012 + $0x48] sm:%s1002] %v1031
                %v1033 = vld [vmem:[%s1011 + $0x50] sm:%s1002]
                %1034 = vst [vmem:[%s1012 + $0x50] sm:%s1002] %v1033
                %v1035 = vld [vmem:[%s1011 + $0x58] sm:%s1002]
                %1036 = vst [vmem:[%s1012 + $0x58] sm:%s1002] %v1035
                %v1037 = vld [vmem:[%s1011 + $0x60] sm:%s1002]
                %1038 = vst [vmem:[%s1012 + $0x60] sm:%s1002] %v1037
                %v1039 = vld [vmem:[%s1011 + $0x68] sm:%s1002]
                %1040 = vst [vmem:[%s1012 + $0x68] sm:%s1002] %v1039
                %v1041 = vld [vmem:[%s1011 + $0x70] sm:%s1002]
                %1042 = vst [vmem:[%s1012 + $0x70] sm:%s1002] %v1041
                %v1043 = vld [vmem:[%s1011 + $0x78] sm:%s1002]
                %1044 = vst [vmem:[%s1012 + $0x78] sm:%s1002] %v1043
                %s1045 = sadd.s32 1, %s1010
                %p1046 = scmp.ge.s32.totalorder %s1045, %s1003
                %s1047 = scalar_select %p1046, 0, %s1045
                %s1048 = smul.u32 %s1047, 128
                %s1049 = smul.u32 %s1047, 128
                %s1050 = scalar_lea.vmem %s972, %s1048 [#allocation2]
                %s1051 = scalar_lea.vmem %s993, %s1049
              $region65: #{decoder_forward.4} parent=59 // loop_footer
                %s1007 = sadd.s32 %s1005, 1
              $region66: #{decoder_forward.4} parent=59 // loop_footer_branch
                %1004 = sbr.rel target = $region62
              $region67: #{decoder_forward.4} parent=59 // loop_exit
                _
              %s1052 = sshrl.u32 %s987, 4
              %s1053 = sand.u32 %s987, 15
              %s1054 = smul.u32 %s1052, 16
              %s1055 = smul.u32 8, %s1054
              %s1056 = scalar_lea.vmem %s972, %s1055 [#allocation2]
              %s1057 = smul.u32 8, %s1054
              %s1058 = scalar_lea.vmem %s993, %s1057
              // While loop
              $region68: #{decoder_forward.4} parent=59 // loop_pre_header
                _
              $region69: #{decoder_forward.4} parent=59 // loop_header
                %s1060 = sphi 0, %s1062
                %p1061 = scmp.ge.s32.totalorder %s1060, %s1053
                %s1065 = sphi 0, %s1072
                %s1066 = sphi %s1056, %s1075
                %s1067 = sphi %s1058, %s1076
              $region70: #{decoder_forward.4} parent=59 // loop_header_branch
                %1064 = sbr.rel (%p1061) target = $region74
              $region71: #{decoder_forward.4} parent=59 // loop_body
                %v1068 = vld [vmem:[%s1066] sm:%s1002]
                %1069 = vst [vmem:[%s1067] sm:%s1002] %v1068
                %s1070 = sadd.s32 1, %s1065
                %p1071 = scmp.ge.s32.totalorder %s1070, %s1053
                %s1072 = scalar_select %p1071, 0, %s1070
                %s1073 = smul.u32 %s1072, 8
                %s1074 = smul.u32 %s1072, 8
                %s1075 = scalar_lea.vmem %s1056, %s1073 [#allocation2]
                %s1076 = scalar_lea.vmem %s1058, %s1074
              $region72: #{decoder_forward.4} parent=59 // loop_footer
                %s1062 = sadd.s32 %s1060, 1
              $region73: #{decoder_forward.4} parent=59 // loop_footer_branch
                %1059 = sbr.rel target = $region69
              $region74: #{decoder_forward.4} parent=59 // loop_exit
                _
            $region60: #{decoder_forward.4} parent=51 // pred_fallthru
              _
          $region52: #{decoder_forward.4} parent=47 // pred_fallthru
            _
          %1155 = vnop
        $region48: #{decoder_forward.4} parent=43 // pred_fallthru
          _
        // Predicated region
        $region97: #{decoder_forward.4} parent=43 // pred_check
          %p1156 = pneg %p215
        $region98: #{decoder_forward.4} parent=43 // pred_check_branch
          %1158 = sbr.rel (%p1156) target = $region100
        $region99: #{decoder_forward.4} parent=43 // pred_region
          _
        $region100: #{decoder_forward.4} parent=43 // pred_fallthru
          _
      $region44: #{decoder_forward.4} parent=5 // pred_fallthru
        _
      %p1159 = scmp.le.s32.totalorder 2, %s14
      // Predicated region
      $region101: #{decoder_forward.4} parent=5 // pred_check
        %p1160 = pneg %p1159
      $region102: #{decoder_forward.4} parent=5 // pred_check_branch
        %1162 = sbr.rel (%p1160) target = $region104
      $region103: #{decoder_forward.4} parent=5 // pred_region
        %s1163 = ssub.s32 %s14, 2
        // Predicated region
        $region105: #{decoder_forward.4} parent=103 // pred_check
          %p1164 = pneg %p193
        $region106: #{decoder_forward.4} parent=103 // pred_check_branch
          %1166 = sbr.rel (%p1164) target = $region108
        $region107: #{decoder_forward.4} parent=103 // pred_region
          %s1167 = sand.u32 %s178, 1
          %s1168 = sand.u32 %s178, 1
          %s1169 = smul.addr %s1168, 128
          %s1170 = scalar_lea.vmem [#allocation2], %s1169
        $region108: #{decoder_forward.4} parent=103 // pred_fallthru
          _
        // Predicated region
        $region109: #{decoder_forward.4} parent=103 // pred_check
          %p1171 = pneg %p221
        $region110: #{decoder_forward.4} parent=103 // pred_check_branch
          %1173 = sbr.rel (%p1171) target = $region112
        $region111: #{decoder_forward.4} parent=103 // pred_region
          %p1174 = scmp.lt.s32.totalorder %s25, 1
          %s1175 = scalar_select %p1174, %s25, 1
          %p1176 = scmp.lt.s32.totalorder %s26, 2
          %s1177 = scalar_select %p1176, %s26, 2
          %s1178 = smul.addr %s1175, 3
          %s1179 = sadd.s32 %s1177, %s1178
          %s1180 = smul.addr %s1179, 2
          %s1181 = scalar_lea.vmem %s7, %s1180
        $region112: #{decoder_forward.4} parent=103 // pred_fallthru
          _
      $region104: #{decoder_forward.4} parent=5 // pred_fallthru
        _
    $region6: #{decoder_forward.4} parent=1 // loop_footer
      %s18 = sadd.s32 1, %s14
    $region7: #{decoder_forward.4} parent=1 // loop_footer_branch
      %13 = sbr.rel target = $region3
    $region8: #{decoder_forward.4} parent=1 // loop_exit
      _

// kernel: decoder_forward.6
$region0: #{decoder_forward.6}
  #allocation0 [shape = 'u32[]', space=smem, size = 0x4, offset = 0x4, fixed_abs, tag = 'smem constant byte address 0x4 - core index']
  #allocation1 [shape = 'u32[144,128]{1,0:T(1,128)}', space=vmem, size = 0x12000, scoped, tag = 'internal scratch']
  %s0 = inlined_call_operand.vmem [shape: f32[2,324,3], index: 0, kind: input, shape index: {}]
  %s1 = inlined_call_operand.vmem [shape: f32[3,128], index: 1, kind: input, shape index: {}]
  %s2 = inlined_call_operand.vmem [shape: f32[2,1,128], index: 2, kind: input, shape index: {}]
  %s3 = inlined_call_operand.vmem [shape: f32[1,128], index: 3, kind: input, shape index: {}]
  %s4 = inlined_call_operand.vmem [shape: f32[1,128], index: 4, kind: input, shape index: {}]
  %s5 = inlined_call_operand.vmem [shape: f32[128,128], index: 5, kind: input, shape index: {}]
  %s6 = inlined_call_operand.vmem [shape: f32[2,324,128], index: 6, kind: output, shape index: {0}]
  %s7 = inlined_call_operand.vmem [shape: f32[2,3,2,128], index: 7, kind: output, shape index: {1}]
  %8 = xla_tuple %s6, %s7
  %s9 = sld [smem:[#allocation0]]
  $region113: #{decoder_forward.6} parent=0
    _
  %s11 = ssub.s32 1, %s9
  %s12 = scalar_select 0, %s11, %s9
  $region1: #{decoder_forward.6} parent=0
    #allocation2 [shape = 'u8[131072]{0}', space=vmem, size = 0x20000, scoped, tag = 'output window, operand 0']
    loop: start=0, step=1, limit=8
    $region2: #{decoder_forward.6} parent=1 // loop_pre_header
      _
    $region3: #{decoder_forward.6} parent=1 // loop_header
      %s14 = sphi 0, %s18
      %p15 = scmp.ge.s32.totalorder %s14, 8
      %s21 = sphi 0, %s33
      %s22 = sphi 0, %s29
      %s23 = sphi 0, %s21
      %s24 = sphi 0, %s22
      %s25 = sphi 0, %s23
      %s26 = sphi 0, %s24
      %s38 = sphi 0, %s40
      %s41 = sphi 0, %s38
      %s42 = sphi 0, %s41
      %s58 = sphi 0, %s42
      %s62 = sphi 0, %s62
      %s64 = sphi 0, %s62
      %s65 = sphi 0, %s64
      %s79 = sphi 0, %s65
      %s85 = sphi 0, %s87
      %s88 = sphi 0, %s85
      %s89 = sphi 0, %s88
      %s105 = sphi 0, %s89
      %s109 = sphi 0, %s109
      %s111 = sphi 0, %s109
      %s112 = sphi 0, %s111
      %s126 = sphi 0, %s112
      %s130 = sphi 0, %s130
      %s132 = sphi 0, %s130
      %s133 = sphi 0, %s132
      %s147 = sphi 0, %s133
      %s151 = sphi 0, %s151
      %s153 = sphi 0, %s151
      %s154 = sphi 0, %s153
      %s168 = sphi 0, %s154
      %s176 = sphi 0, %s178
      %s179 = sphi 0, %s176
      %s180 = sphi 0, %s179
      %s196 = sphi 0, %s180
      %s204 = sphi 0, %s206
      %s207 = sphi 0, %s204
      %s208 = sphi 0, %s207
      %s224 = sphi 0, %s208
    $region4: #{decoder_forward.6} parent=1 // loop_header_branch
      %17 = sbr.rel (%p15) target = $region8
    $region5: #{decoder_forward.6} parent=1 // loop_body
      %s19 = ssub.s32 %s14, 1
      %s20 = ssub.s32 %s14, 2
      %s27 = sadd.s32 1, %s22
      %p28 = scmp.ge.s32.totalorder %s27, 3
      %s29 = scalar_select %p28, 0, %s27
      %s30 = sadd.s32 1, %s21
      %s31 = scalar_select %p28, %s30, %s21
      %p32 = scmp.ge.s32.totalorder %s31, 2
      %s33 = scalar_select %p32, 0, %s31
      %s34 = ssub.s32 %s21, %s33
      %s35 = ssub.s32 %s22, %s29
      %s36 = sor.u32 %s34, %s35
      %p37 = scmp.eq.s32.totalorder %s36, 0
      %s39 = sadd.s32 %s38, 1
      %s40 = scalar_select %p37, %s38, %s39
      %p43 = pneg %p37
      %p44 = scmp.eq.s32.totalorder %s14, 5
      %p45 = por %p43, %p44
      %p46 = scmp.ne.s32.totalorder %s38, %s41
      %p47 = scmp.eq.s32.totalorder %s14, 0
      %p48 = por %p46, %p47
      %p49 = scmp.ne.s32.totalorder %s38, %s41
      %p50 = scmp.eq.s32.totalorder %s19, 5
      %p51 = por %p49, %p50
      %p52 = scmp.ne.s32.totalorder %s41, %s42
      %p53 = scmp.eq.s32.totalorder %s19, 0
      %p54 = por %p52, %p53
      %p55 = scmp.ne.s32.totalorder %s41, %s42
      %p56 = scmp.eq.s32.totalorder %s20, 5
      %p57 = por %p55, %p56
      %p59 = scmp.ne.s32.totalorder %s42, %s58
      %p60 = scmp.eq.s32.totalorder %s20, 0
      %p61 = por %p59, %p60
      %s63 = sadd.s32 %s62, 1
      %p66 = scmp.eq.s32.totalorder %s14, 5
      %p67 = scmp.ne.s32.totalorder %s62, %s64
      %p68 = scmp.eq.s32.totalorder %s14, 0
      %p69 = por %p67, %p68
      %p70 = scmp.ne.s32.totalorder %s62, %s64
      %p71 = scmp.eq.s32.totalorder %s19, 5
      %p72 = por %p70, %p71
      %p73 = scmp.ne.s32.totalorder %s64, %s65
      %p74 = scmp.eq.s32.totalorder %s19, 0
      %p75 = por %p73, %p74
      %p76 = scmp.ne.s32.totalorder %s64, %s65
      %p77 = scmp.eq.s32.totalorder %s20, 5
      %p78 = por %p76, %p77
      %p80 = scmp.ne.s32.totalorder %s65, %s79
      %p81 = scmp.eq.s32.totalorder %s20, 0
      %p82 = por %p80, %p81
      %s83 = ssub.s32 %s21, %s33
      %p84 = scmp.eq.s32.totalorder %s83, 0
      %s86 = sadd.s32 %s85, 1
      %s87 = scalar_select %p84, %s85, %s86
      %p90 = pneg %p84
      %p91 = scmp.eq.s32.totalorder %s14, 5
      %p92 = por %p90, %p91
      %p93 = scmp.ne.s32.totalorder %s85, %s88
      %p94 = scmp.eq.s32.totalorder %s14, 0
      %p95 = por %p93, %p94
      %p96 = scmp.ne.s32.totalorder %s85, %s88
      %p97 = scmp.eq.s32.totalorder %s19, 5
      %p98 = por %p96, %p97
      %p99 = scmp.ne.s32.totalorder %s88, %s89
      %p100 = scmp.eq.s32.totalorder %s19, 0
      %p101 = por %p99, %p100
      %p102 = scmp.ne.s32.totalorder %s88, %s89
      %p103 = scmp.eq.s32.totalorder %s20, 5
      %p104 = por %p102, %p103
      %p106 = scmp.ne.s32.totalorder %s89, %s105
      %p107 = scmp.eq.s32.totalorder %s20, 0
      %p108 = por %p106, %p107
      %s110 = sadd.s32 %s109, 1
      %p113 = scmp.eq.s32.totalorder %s14, 5
      %p114 = scmp.ne.s32.totalorder %s109, %s111
      %p115 = scmp.eq.s32.totalorder %s14, 0
      %p116 = por %p114, %p115
      %p117 = scmp.ne.s32.totalorder %s109, %s111
      %p118 = scmp.eq.s32.totalorder %s19, 5
      %p119 = por %p117, %p118
      %p120 = scmp.ne.s32.totalorder %s111, %s112
      %p121 = scmp.eq.s32.totalorder %s19, 0
      %p122 = por %p120, %p121
      %p123 = scmp.ne.s32.totalorder %s111, %s112
      %p124 = scmp.eq.s32.totalorder %s20, 5
      %p125 = por %p123, %p124
      %p127 = scmp.ne.s32.totalorder %s112, %s126
      %p128 = scmp.eq.s32.totalorder %s20, 0
      %p129 = por %p127, %p128
      %s131 = sadd.s32 %s130, 1
      %p134 = scmp.eq.s32.totalorder %s14, 5
      %p135 = scmp.ne.s32.totalorder %s130, %s132
      %p136 = scmp.eq.s32.totalorder %s14, 0
      %p137 = por %p135, %p136
      %p138 = scmp.ne.s32.totalorder %s130, %s132
      %p139 = scmp.eq.s32.totalorder %s19, 5
      %p140 = por %p138, %p139
      %p141 = scmp.ne.s32.totalorder %s132, %s133
      %p142 = scmp.eq.s32.totalorder %s19, 0
      %p143 = por %p141, %p142
      %p144 = scmp.ne.s32.totalorder %s132, %s133
      %p145 = scmp.eq.s32.totalorder %s20, 5
      %p146 = por %p144, %p145
      %p148 = scmp.ne.s32.totalorder %s133, %s147
      %p149 = scmp.eq.s32.totalorder %s20, 0
      %p150 = por %p148, %p149
      %s152 = sadd.s32 %s151, 1
      %p155 = scmp.eq.s32.totalorder %s14, 5
      %p156 = scmp.ne.s32.totalorder %s151, %s153
      %p157 = scmp.eq.s32.totalorder %s14, 0
      %p158 = por %p156, %p157
      %p159 = scmp.ne.s32.totalorder %s151, %s153
      %p160 = scmp.eq.s32.totalorder %s19, 5
      %p161 = por %p159, %p160
      %p162 = scmp.ne.s32.totalorder %s153, %s154
      %p163 = scmp.eq.s32.totalorder %s19, 0
      %p164 = por %p162, %p163
      %p165 = scmp.ne.s32.totalorder %s153, %s154
      %p166 = scmp.eq.s32.totalorder %s20, 5
      %p167 = por %p165, %p166
      %p169 = scmp.ne.s32.totalorder %s154, %s168
      %p170 = scmp.eq.s32.totalorder %s20, 0
      %p171 = por %p169, %p170
      %s172 = ssub.s32 %s21, %s33
      %s173 = ssub.s32 %s22, %s29
      %s174 = sor.u32 %s172, %s173
      %p175 = scmp.eq.s32.totalorder %s174, 0
      %s177 = sadd.s32 %s176, 1
      %s178 = scalar_select %p175, %s176, %s177
      %p181 = pneg %p175
      %p182 = scmp.eq.s32.totalorder %s14, 5
      %p183 = por %p181, %p182
      %p184 = scmp.ne.s32.totalorder %s176, %s179
      %p185 = scmp.eq.s32.totalorder %s14, 0
      %p186 = por %p184, %p185
      %p187 = scmp.ne.s32.totalorder %s176, %s179
      %p188 = scmp.eq.s32.totalorder %s19, 5
      %p189 = por %p187, %p188
      %p190 = scmp.ne.s32.totalorder %s179, %s180
      %p191 = scmp.eq.s32.totalorder %s19, 0
      %p192 = por %p190, %p191
      %p193 = scmp.ne.s32.totalorder %s179, %s180
      %p194 = scmp.eq.s32.totalorder %s20, 5
      %p195 = por %p193, %p194
      %p197 = scmp.ne.s32.totalorder %s180, %s196
      %p198 = scmp.eq.s32.totalorder %s20, 0
      %p199 = por %p197, %p198
      %s200 = ssub.s32 %s21, %s33
      %s201 = ssub.s32 %s22, %s29
      %s202 = sor.u32 %s200, %s201
      %p203 = scmp.eq.s32.totalorder %s202, 0
      %s205 = sadd.s32 %s204, 1
      %s206 = scalar_select %p203, %s204, %s205
      %p209 = pneg %p203
      %p210 = scmp.eq.s32.totalorder %s14, 5
      %p211 = por %p209, %p210
      %p212 = scmp.ne.s32.totalorder %s204, %s207
      %p213 = scmp.eq.s32.totalorder %s14, 0
      %p214 = por %p212, %p213
      %p215 = scmp.ne.s32.totalorder %s204, %s207
      %p216 = scmp.eq.s32.totalorder %s19, 5
      %p217 = por %p215, %p216
      %p218 = scmp.ne.s32.totalorder %s207, %s208
      %p219 = scmp.eq.s32.totalorder %s19, 0
      %p220 = por %p218, %p219
      %p221 = scmp.ne.s32.totalorder %s207, %s208
      %p222 = scmp.eq.s32.totalorder %s20, 5
      %p223 = por %p221, %p222
      %p225 = scmp.ne.s32.totalorder %s208, %s224
      %p226 = scmp.eq.s32.totalorder %s20, 0
      %p227 = por %p225, %p226
      %p228 = scmp.le.s32.totalorder 1, %s14
      %p229 = scmp.lt.s32.totalorder %s14, 7
      %p230 = pnand %p228, %p229
      %p231 = pneg %p230
      // Predicated region
      $region9: #{decoder_forward.6} parent=5 // pred_check
        _
      $region10: #{decoder_forward.6} parent=5 // pred_check_branch
        %233 = sbr.rel (%p230) target = $region12
      $region11: #{decoder_forward.6} parent=5 // pred_region
        %s234 = ssub.s32 %s14, 1
        // Predicated region
        $region13: #{decoder_forward.6} parent=11 // pred_check
          %p235 = pneg %p75
        $region14: #{decoder_forward.6} parent=11 // pred_check_branch
          %237 = sbr.rel (%p235) target = $region16
        $region15: #{decoder_forward.6} parent=11 // pred_region
          _
        $region16: #{decoder_forward.6} parent=11 // pred_fallthru
          _
        // Predicated region
        $region17: #{decoder_forward.6} parent=11 // pred_check
          %p238 = pneg %p122
        $region18: #{decoder_forward.6} parent=11 // pred_check_branch
          %240 = sbr.rel (%p238) target = $region20
        $region19: #{decoder_forward.6} parent=11 // pred_region
          _
        $region20: #{decoder_forward.6} parent=11 // pred_fallthru
          _
        // Predicated region
        $region21: #{decoder_forward.6} parent=11 // pred_check
          %p241 = pneg %p143
        $region22: #{decoder_forward.6} parent=11 // pred_check_branch
          %243 = sbr.rel (%p241) target = $region24
        $region23: #{decoder_forward.6} parent=11 // pred_region
          _
        $region24: #{decoder_forward.6} parent=11 // pred_fallthru
          _
        // Predicated region
        $region25: #{decoder_forward.6} parent=11 // pred_check
          %p244 = pneg %p164
        $region26: #{decoder_forward.6} parent=11 // pred_check_branch
          %246 = sbr.rel (%p244) target = $region28
        $region27: #{decoder_forward.6} parent=11 // pred_region
          _
        $region28: #{decoder_forward.6} parent=11 // pred_fallthru
          _
      $region12: #{decoder_forward.6} parent=5 // pred_fallthru
        _
      %p247 = scmp.lt.s32.totalorder %s14, 6
      // Predicated region
      $region29: #{decoder_forward.6} parent=5 // pred_check
        %p248 = pneg %p247
      $region30: #{decoder_forward.6} parent=5 // pred_check_branch
        %250 = sbr.rel (%p248) target = $region32
      $region31: #{decoder_forward.6} parent=5 // pred_region
        // Predicated region
        $region33: #{decoder_forward.6} parent=31 // pred_check
          %p251 = pneg %p48
        $region34: #{decoder_forward.6} parent=31 // pred_check_branch
          %253 = sbr.rel (%p251) target = $region36
        $region35: #{decoder_forward.6} parent=31 // pred_region
          %s254 = smul.u32 16, %s22
          %s255 = ssub.s32 41, %s254
          %p256 = scmp.lt.s32.totalorder %s255, 16
          %s257 = scalar_select %p256, %s255, 16
          %s258 = smul.u32 128, %s257
          %p259 = scmp.lt.s32.totalorder %s21, 1
          %s260 = scalar_select %p259, %s21, 1
          %p261 = scmp.lt.s32.totalorder %s254, 40
          %s262 = scalar_select %p261, %s254, 40
          %s263 = smul.addr %s260, 41
          %s264 = sadd.s32 %s262, %s263
          %s265 = smul.addr %s264, 8
          %s266 = scalar_lea.vmem %s0, %s265
          %s267 = smul.u32 16, %s22
          %s268 = ssub.s32 41, %s267
          %p269 = scmp.lt.s32.totalorder %s268, 16
          %s270 = scalar_select %p269, %s268, 16
          %s271 = smul.u32 128, %s270
        $region36: #{decoder_forward.6} parent=31 // pred_fallthru
          _
        // Predicated region
        $region37: #{decoder_forward.6} parent=31 // pred_check
          %p272 = pneg %p95
        $region38: #{decoder_forward.6} parent=31 // pred_check_branch
          %274 = sbr.rel (%p272) target = $region40
        $region39: #{decoder_forward.6} parent=31 // pred_region
          %p275 = scmp.lt.s32.totalorder %s21, 1
          %s276 = scalar_select %p275, %s21, 1
          %s277 = scalar_lea.vmem %s2, %s276
        $region40: #{decoder_forward.6} parent=31 // pred_fallthru
          _
      $region32: #{decoder_forward.6} parent=5 // pred_fallthru
        _
      %p278 = scmp.le.s32.totalorder 1, %s14
      %p279 = scmp.lt.s32.totalorder %s14, 7
      %p280 = pnand %p278, %p279
      %p281 = pneg %p280
      // Predicated region
      $region41: #{decoder_forward.6} parent=5 // pred_check
        _
      $region42: #{decoder_forward.6} parent=5 // pred_check_branch
        %283 = sbr.rel (%p280) target = $region44
      $region43: #{decoder_forward.6} parent=5 // pred_region
        %s284 = ssub.s32 %s14, 1
        %s285 = smul.u32 16, %s24
        %s286 = ssub.s32 41, %s285
        %p287 = scmp.lt.s32.totalorder %s286, 16
        %s288 = scalar_select %p287, %s286, 16
        %s289 = smul.u32 128, %s288
        %p290 = scmp.lt.s32.totalorder %s23, 1
        %s291 = scalar_select %p290, %s23, 1
        %p292 = scmp.lt.s32.totalorder %s285, 40
        %s293 = scalar_select %p292, %s285, 40
        %s294 = smul.addr %s291, 41
        %s295 = sadd.s32 %s293, %s294
        %s296 = smul.addr %s295, 8
        %s297 = scalar_lea.vmem %s0, %s296
        %p298 = pneg %p54
        %p299 = pneg %p51
        %p300 = pneg %p75
        %p301 = pneg %p72
        %p302 = scmp.lt.s32.totalorder %s23, 1
        %s303 = scalar_select %p302, %s23, 1
        %s304 = scalar_lea.vmem %s2, %s303
        %p305 = pneg %p101
        %p306 = pneg %p98
        %p307 = pneg %p122
        %p308 = pneg %p119
        %p309 = pneg %p143
        %p310 = pneg %p140
        %p311 = pneg %p164
        %p312 = pneg %p161
        %p313 = pneg %p192
        %p314 = pneg %p189
        %s315 = sand.u32 %s179, 1
        %s316 = sand.u32 %s179, 1
        %s317 = smul.addr %s316, 128
        %s318 = scalar_lea.vmem [#allocation2], %s317
        %p319 = pneg %p220
        %p320 = pneg %p217
        %p321 = scmp.lt.s32.totalorder %s23, 1
        %s322 = scalar_select %p321, %s23, 1
        %p323 = scmp.lt.s32.totalorder %s24, 2
        %s324 = scalar_select %p323, %s24, 2
        %s325 = smul.addr %s322, 3
        %s326 = sadd.s32 %s324, %s325
        %s327 = smul.addr %s326, 2
        %s328 = scalar_lea.vmem %s7, %s327
        %s329 = smul.u32 16, %s24
        %s330 = ssub.s32 41, %s329
        %p331 = scmp.lt.s32.totalorder %s330, 16
        %s332 = scalar_select %p331, %s330, 16
        %s333 = smul.u32 128, %s332
        %p334 = scmp.lt.s32.totalorder %s23, 1
        %s335 = scalar_select %p334, %s23, 1
        %p336 = scmp.lt.s32.totalorder %s329, 40
        %s337 = scalar_select %p336, %s329, 40
        %s338 = smul.addr %s335, 41
        %s339 = sadd.s32 %s337, %s338
        %s340 = smul.addr %s339, 8
        %s341 = scalar_lea.vmem %s0, %s340
        %s342 = smul.u32 16, %s24
        %s343 = ssub.s32 41, %s342
        %p344 = scmp.lt.s32.totalorder %s343, 16
        %s345 = scalar_select %p344, %s343, 16
        %s346 = smul.u32 128, %s345
        %p347 = scmp.lt.s32.totalorder %s23, 1
        %s348 = scalar_select %p347, %s23, 1
        %s349 = scalar_lea.vmem %s2, %s348
        %s350 = smul.u32 16, %s24
        %s351 = ssub.s32 41, %s350
        %p352 = scmp.lt.s32.totalorder %s351, 16
        %s353 = scalar_select %p352, %s351, 16
        %s354 = smul.u32 128, %s353
        %p355 = scmp.lt.s32.totalorder %s23, 1
        %s356 = scalar_select %p355, %s23, 1
        %p357 = scmp.lt.s32.totalorder %s24, 2
        %s358 = scalar_select %p357, %s24, 2
        %s359 = smul.addr %s356, 3
        %s360 = sadd.s32 %s358, %s359
        %s361 = smul.addr %s360, 2
        %s362 = scalar_lea.vmem %s7, %s361
        %v363 = vld [vmem:[%s341] sm:$0xff]
        %v364 = vld [vmem:[%s341 + $0x8] sm:$0xff]
        %v365 = vld [vmem:[%s341 + $0x10] sm:$0xff]
        %v366 = vld [vmem:[%s341 + $0x18] sm:$0xff]
        %v367 = vld [vmem:[%s341 + $0x20] sm:$0xff]
        %v368 = vld [vmem:[%s341 + $0x28] sm:$0xff]
        %v369 = vld [vmem:[%s341 + $0x30] sm:$0xff]
        %v370 = vld [vmem:[%s341 + $0x38] sm:$0xff]
        %v371 = vld [vmem:[%s341 + $0x40] sm:$0xff]
        %v372 = vld [vmem:[%s341 + $0x48] sm:$0xff]
        %v373 = vld [vmem:[%s341 + $0x50] sm:$0xff]
        %v374 = vld [vmem:[%s341 + $0x58] sm:$0xff]
        %v375 = vld [vmem:[%s341 + $0x60] sm:$0xff]
        %v376 = vld [vmem:[%s341 + $0x68] sm:$0xff]
        %v377 = vld [vmem:[%s341 + $0x70] sm:$0xff]
        %v378 = vld [vmem:[%s341 + $0x78] sm:$0xff]
        %v379 = vld [vmem:[%s1] sm:$0x7]
        %v380 = vld [vmem:[%s349] sm:$0x1]
        %v382 = vlaneseq
        %v383 = vshrl.u32 %v382, 7
        %v384 = vsub.s32 0, %v383
        %v385 = vrot.slane %v380, %v384
        %vm387 = vcmask 23552
        %v389 = vsel %vm387, %v363, 0
        %v392 = vsel %vm387, %v364, 0
        %v395 = vsel %vm387, %v365, 0
        %v398 = vsel %vm387, %v366, 0
        %v401 = vsel %vm387, %v367, 0
        %v404 = vsel %vm387, %v368, 0
        %v407 = vsel %vm387, %v369, 0
        %v410 = vsel %vm387, %v370, 0
        %v413 = vsel %vm387, %v371, 0
        %v416 = vsel %vm387, %v372, 0
        %v419 = vsel %vm387, %v373, 0
        %v422 = vsel %vm387, %v374, 0
        %v425 = vsel %vm387, %v375, 0
        %v428 = vsel %vm387, %v376, 0
        %v431 = vsel %vm387, %v377, 0
        %v434 = vsel %vm387, %v378, 0
        %vm436 = vcmask 1042432
        %v438 = vsel %vm436, %v379, 0
        %440 = vmatprep.subr.mxu0 0.0
        %441 = vmatpush1.msra.mxu0 0.0
        %442 = vmatprep.subr.mxu0 0.0
        %443 = vmatpush1.msra.mxu0 0.0
        %444 = vmatprep.subr.mxu0 0.0
        %445 = vmatpush1.msra.mxu0 0.0
        %446 = vmatprep.subr.mxu0 0.0
        %447 = vmatpush1.msra.mxu0 0.0
        %448 = vmatprep.subr.mxu0 0.0
        %449 = vmatpush1.msra.mxu0 0.0
        %450 = vmatprep.subr.mxu0 0.0
        %451 = vmatpush1.msra.mxu0 0.0
        %452 = vmatprep.subr.mxu0 0.0
        %453 = vmatpush1.msra.mxu0 0.0
        %454 = vmatprep.subr.mxu0 0.0
        %455 = vmatpush1.msra.mxu0 0.0
        %456 = vmatprep.subr.mxu0 0.0
        %457 = vmatpush1.msra.mxu0 0.0
        %458 = vmatprep.subr.mxu0 0.0
        %459 = vmatpush1.msra.mxu0 0.0
        %460 = vmatprep.subr.mxu0 0.0
        %461 = vmatpush1.msra.mxu0 0.0
        %462 = vmatprep.subr.mxu0 0.0
        %463 = vmatpush1.msra.mxu0 0.0
        %464 = vmatprep.subr.mxu0 0.0
        %465 = vmatpush1.msra.mxu0 0.0
        %466 = vmatprep.subr.mxu0 0.0
        %467 = vmatpush1.msra.mxu0 0.0
        %468 = vmatprep.subr.mxu0 0.0
        %469 = vmatpush1.msra.mxu0 0.0
        %470 = vmatprep.subr.mxu0 0.0
        %471 = vmatpush1.msra.mxu0 %v438
        %472 = vmatprep.subr.mxu0 0.0
        %473 = vmatpush2.msra.mxu0 0.0
        %474 = vmatprep.subr.mxu0 0.0
        %475 = vmatpush2.msra.mxu0 0.0
        %476 = vmatprep.subr.mxu0 0.0
        %477 = vmatpush2.msra.mxu0 0.0
        %478 = vmatprep.subr.mxu0 0.0
        %479 = vmatpush2.msra.mxu0 0.0
        %480 = vmatprep.subr.mxu0 0.0
        %481 = vmatpush2.msra.mxu0 0.0
        %482 = vmatprep.subr.mxu0 0.0
        %483 = vmatpush2.msra.mxu0 0.0
        %484 = vmatprep.subr.mxu0 0.0
        %485 = vmatpush2.msra.mxu0 0.0
        %486 = vmatprep.subr.mxu0 0.0
        %487 = vmatpush2.msra.mxu0 0.0
        %488 = vmatprep.subr.mxu0 0.0
        %489 = vmatpush2.msra.mxu0 0.0
        %490 = vmatprep.subr.mxu0 0.0
        %491 = vmatpush2.msra.mxu0 0.0
        %492 = vmatprep.subr.mxu0 0.0
        %493 = vmatpush2.msra.mxu0 0.0
        %494 = vmatprep.subr.mxu0 0.0
        %495 = vmatpush2.msra.mxu0 0.0
        %496 = vmatprep.subr.mxu0 0.0
        %497 = vmatpush2.msra.mxu0 0.0
        %498 = vmatprep.subr.mxu0 0.0
        %499 = vmatpush2.msra.mxu0 0.0
        %500 = vmatprep.subr.mxu0 0.0
        %501 = vmatpush2.msra.mxu0 0.0
        %502 = vmatprep.subr.mxu0 0.0
        %503 = vmatpush2.msra.mxu0 0.0
        %504 = vmatprep.mubr.f32.mxu0 0.0
        %505 = vmatmul.mubr.f32.gmra.mxu0 %v389
        %v506 = vpop.f32.mrf.mxu0
        %v507 = vadd.f32 %v385, %v506
        %v508 = vpop.f32.mrf.mxu0
        %509 = vmatprep.mubr.f32.mxu0 0.0
        %510 = vmatmul.mubr.f32.gmra.mxu0 %v392
        %v511 = vpop.f32.mrf.mxu0
        %v512 = vadd.f32 %v385, %v511
        %v513 = vpop.f32.mrf.mxu0
        %514 = vmatprep.mubr.f32.mxu0 0.0
        %515 = vmatmul.mubr.f32.gmra.mxu0 %v395
        %v516 = vpop.f32.mrf.mxu0
        %v517 = vadd.f32 %v385, %v516
        %v518 = vpop.f32.mrf.mxu0
        %519 = vmatprep.mubr.f32.mxu0 0.0
        %520 = vmatmul.mubr.f32.gmra.mxu0 %v398
        %v521 = vpop.f32.mrf.mxu0
        %v522 = vadd.f32 %v385, %v521
        %v523 = vpop.f32.mrf.mxu0
        %524 = vmatprep.mubr.f32.mxu0 0.0
        %525 = vmatmul.mubr.f32.gmra.mxu0 %v401
        %v526 = vpop.f32.mrf.mxu0
        %v527 = vadd.f32 %v385, %v526
        %v528 = vpop.f32.mrf.mxu0
        %529 = vmatprep.mubr.f32.mxu0 0.0
        %530 = vmatmul.mubr.f32.gmra.mxu0 %v404
        %v531 = vpop.f32.mrf.mxu0
        %v532 = vadd.f32 %v385, %v531
        %v533 = vpop.f32.mrf.mxu0
        %534 = vmatprep.mubr.f32.mxu0 0.0
        %535 = vmatmul.mubr.f32.gmra.mxu0 %v407
        %v536 = vpop.f32.mrf.mxu0
        %v537 = vadd.f32 %v385, %v536
        %v538 = vpop.f32.mrf.mxu0
        %539 = vmatprep.mubr.f32.mxu0 0.0
        %540 = vmatmul.mubr.f32.gmra.mxu0 %v410
        %v541 = vpop.f32.mrf.mxu0
        %v542 = vadd.f32 %v385, %v541
        %v543 = vpop.f32.mrf.mxu0
        %544 = vmatprep.mubr.f32.mxu0 0.0
        %545 = vmatmul.mubr.f32.gmra.mxu0 %v413
        %v546 = vpop.f32.mrf.mxu0
        %v547 = vadd.f32 %v385, %v546
        %v548 = vpop.f32.mrf.mxu0
        %549 = vmatprep.mubr.f32.mxu0 0.0
        %550 = vmatmul.mubr.f32.gmra.mxu0 %v416
        %v551 = vpop.f32.mrf.mxu0
        %v552 = vadd.f32 %v385, %v551
        %v553 = vpop.f32.mrf.mxu0
        %554 = vmatprep.mubr.f32.mxu0 0.0
        %555 = vmatmul.mubr.f32.gmra.mxu0 %v419
        %v556 = vpop.f32.mrf.mxu0
        %v557 = vadd.f32 %v385, %v556
        %v558 = vpop.f32.mrf.mxu0
        %559 = vmatprep.mubr.f32.mxu0 0.0
        %560 = vmatmul.mubr.f32.gmra.mxu0 %v422
        %v561 = vpop.f32.mrf.mxu0
        %v562 = vadd.f32 %v385, %v561
        %v563 = vpop.f32.mrf.mxu0
        %564 = vmatprep.mubr.f32.mxu0 0.0
        %565 = vmatmul.mubr.f32.gmra.mxu0 %v425
        %v566 = vpop.f32.mrf.mxu0
        %v567 = vadd.f32 %v385, %v566
        %v568 = vpop.f32.mrf.mxu0
        %569 = vmatprep.mubr.f32.mxu0 0.0
        %570 = vmatmul.mubr.f32.gmra.mxu0 %v428
        %v571 = vpop.f32.mrf.mxu0
        %v572 = vadd.f32 %v385, %v571
        %v573 = vpop.f32.mrf.mxu0
        %574 = vmatprep.mubr.f32.mxu0 0.0
        %575 = vmatmul.mubr.f32.gmra.mxu0 %v431
        %v576 = vpop.f32.mrf.mxu0
        %v577 = vadd.f32 %v385, %v576
        %v578 = vpop.f32.mrf.mxu0
        %579 = vmatprep.mubr.f32.mxu0 0.0
        %580 = vmatmul.mubr.f32.gmra.mxu0 %v434
        %v581 = vpop.f32.mrf.mxu0
        %v582 = vadd.f32 %v385, %v581
        %v583 = vpop.f32.mrf.mxu0
        %584 = vdwg.mxu0
        %v585 = vld [vmem:[%s3] sm:$0x1]
        %v587 = vlaneseq
        %v588 = vshrl.u32 %v587, 7
        %v589 = vsub.s32 0, %v588
        %v590 = vrot.slane %v585, %v589
        %v592 = vmul.f32 %v507, %v590
        %v593 = vmul.f32 %v512, %v590
        %v594 = vmul.f32 %v517, %v590
        %v595 = vmul.f32 %v522, %v590
        %v596 = vmul.f32 %v527, %v590
        %v597 = vmul.f32 %v532, %v590
        %v598 = vmul.f32 %v537, %v590
        %v599 = vmul.f32 %v542, %v590
        %v600 = vmul.f32 %v547, %v590
        %v601 = vmul.f32 %v552, %v590
        %v602 = vmul.f32 %v557, %v590
        %v603 = vmul.f32 %v562, %v590
        %v604 = vmul.f32 %v567, %v590
        %v605 = vmul.f32 %v572, %v590
        %v606 = vmul.f32 %v577, %v590
        %v607 = vmul.f32 %v582, %v590
        %v608 = vld [vmem:[%s4] sm:$0x1]
        %v610 = vlaneseq
        %v611 = vshrl.u32 %v610, 7
        %v612 = vsub.s32 0, %v611
        %v613 = vrot.slane %v608, %v612
        %v615 = vadd.f32 %v592, %v613
        %v616 = vadd.f32 %v593, %v613
        %v617 = vadd.f32 %v594, %v613
        %v618 = vadd.f32 %v595, %v613
        %v619 = vadd.f32 %v596, %v613
        %v620 = vadd.f32 %v597, %v613
        %v621 = vadd.f32 %v598, %v613
        %v622 = vadd.f32 %v599, %v613
        %v623 = vadd.f32 %v600, %v613
        %v624 = vadd.f32 %v601, %v613
        %v625 = vadd.f32 %v602, %v613
        %v626 = vadd.f32 %v603, %v613
        %v627 = vadd.f32 %v604, %v613
        %v628 = vadd.f32 %v605, %v613
        %v629 = vadd.f32 %v606, %v613
        %v630 = vadd.f32 %v607, %v613
        %v631 = vmax.f32 %v615, 0.0
        %v632 = vmax.f32 %v616, 0.0
        %v633 = vmax.f32 %v617, 0.0
        %v634 = vmax.f32 %v618, 0.0
        %v635 = vmax.f32 %v619, 0.0
        %v636 = vmax.f32 %v620, 0.0
        %v637 = vmax.f32 %v621, 0.0
        %v638 = vmax.f32 %v622, 0.0
        %v639 = vmax.f32 %v623, 0.0
        %v640 = vmax.f32 %v624, 0.0
        %v641 = vmax.f32 %v625, 0.0
        %v642 = vmax.f32 %v626, 0.0
        %v643 = vmax.f32 %v627, 0.0
        %v644 = vmax.f32 %v628, 0.0
        %v645 = vmax.f32 %v629, 0.0
        %v646 = vmax.f32 %v630, 0.0
        %v647 = vld [vmem:[%s5] sm:$0xff]
        %v648 = vld [vmem:[%s5 + $0x8] sm:$0xff]
        %v649 = vld [vmem:[%s5 + $0x10] sm:$0xff]
        %v650 = vld [vmem:[%s5 + $0x18] sm:$0xff]
        %v651 = vld [vmem:[%s5 + $0x20] sm:$0xff]
        %v652 = vld [vmem:[%s5 + $0x28] sm:$0xff]
        %v653 = vld [vmem:[%s5 + $0x30] sm:$0xff]
        %v654 = vld [vmem:[%s5 + $0x38] sm:$0xff]
        %v655 = vld [vmem:[%s5 + $0x40] sm:$0xff]
        %v656 = vld [vmem:[%s5 + $0x48] sm:$0xff]
        %v657 = vld [vmem:[%s5 + $0x50] sm:$0xff]
        %v658 = vld [vmem:[%s5 + $0x58] sm:$0xff]
        %v659 = vld [vmem:[%s5 + $0x60] sm:$0xff]
        %v660 = vld [vmem:[%s5 + $0x68] sm:$0xff]
        %v661 = vld [vmem:[%s5 + $0x70] sm:$0xff]
        %v662 = vld [vmem:[%s5 + $0x78] sm:$0xff]
        %663 = vmatprep.subr.mxu0 0.0
        %664 = vmatpush1.msra.mxu0 %v662
        %665 = vmatprep.subr.mxu0 0.0
        %666 = vmatpush1.msra.mxu0 %v661
        %667 = vmatprep.subr.mxu0 0.0
        %668 = vmatpush1.msra.mxu0 %v660
        %669 = vmatprep.subr.mxu0 0.0
        %670 = vmatpush1.msra.mxu0 %v659
        %671 = vmatprep.subr.mxu0 0.0
        %672 = vmatpush1.msra.mxu0 %v658
        %673 = vmatprep.subr.mxu0 0.0
        %674 = vmatpush1.msra.mxu0 %v657
        %675 = vmatprep.subr.mxu0 0.0
        %676 = vmatpush1.msra.mxu0 %v656
        %677 = vmatprep.subr.mxu0 0.0
        %678 = vmatpush1.msra.mxu0 %v655
        %679 = vmatprep.subr.mxu0 0.0
        %680 = vmatpush1.msra.mxu0 %v654
        %681 = vmatprep.subr.mxu0 0.0
        %682 = vmatpush1.msra.mxu0 %v653
        %683 = vmatprep.subr.mxu0 0.0
        %684 = vmatpush1.msra.mxu0 %v652
        %685 = vmatprep.subr.mxu0 0.0
        %686 = vmatpush1.msra.mxu0 %v651
        %687 = vmatprep.subr.mxu0 0.0
        %688 = vmatpush1.msra.mxu0 %v650
        %689 = vmatprep.subr.mxu0 0.0
        %690 = vmatpush1.msra.mxu0 %v649
        %691 = vmatprep.subr.mxu0 0.0
        %692 = vmatpush1.msra.mxu0 %v648
        %693 = vmatprep.subr.mxu0 0.0
        %694 = vmatpush1.msra.mxu0 %v647
        %695 = vmatprep.subr.mxu0 0.0
        %696 = vmatpush2.msra.mxu0 0.0
        %697 = vmatprep.subr.mxu0 0.0
        %698 = vmatpush2.msra.mxu0 0.0
        %699 = vmatprep.subr.mxu0 0.0
        %700 = vmatpush2.msra.mxu0 0.0
        %701 = vmatprep.subr.mxu0 0.0
        %702 = vmatpush2.msra.mxu0 0.0
        %703 = vmatprep.subr.mxu0 0.0
        %704 = vmatpush2.msra.mxu0 0.0
        %705 = vmatprep.subr.mxu0 0.0
        %706 = vmatpush2.msra.mxu0 0.0
        %707 = vmatprep.subr.mxu0 0.0
        %708 = vmatpush2.msra.mxu0 0.0
        %709 = vmatprep.subr.mxu0 0.0
        %710 = vmatpush2.msra.mxu0 0.0
        %711 = vmatprep.subr.mxu0 0.0
        %712 = vmatpush2.msra.mxu0 0.0
        %713 = vmatprep.subr.mxu0 0.0
        %714 = vmatpush2.msra.mxu0 0.0
        %715 = vmatprep.subr.mxu0 0.0
        %716 = vmatpush2.msra.mxu0 0.0
        %717 = vmatprep.subr.mxu0 0.0
        %718 = vmatpush2.msra.mxu0 0.0
        %719 = vmatprep.subr.mxu0 0.0
        %720 = vmatpush2.msra.mxu0 0.0
        %721 = vmatprep.subr.mxu0 0.0
        %722 = vmatpush2.msra.mxu0 0.0
        %723 = vmatprep.subr.mxu0 0.0
        %724 = vmatpush2.msra.mxu0 0.0
        %725 = vmatprep.subr.mxu0 0.0
        %726 = vmatpush2.msra.mxu0 0.0
        %727 = vmatprep.mubr.f32.mxu0 0.0
        %728 = vmatmul.mubr.f32.gmra.mxu0 %v631
        %v729 = vpop.f32.mrf.mxu0
        %v730 = vadd.f32 0.0, %v729
        %v731 = vpop.f32.mrf.mxu0
        %732 = vmatprep.mubr.f32.mxu0 0.0
        %733 = vmatmul.mubr.f32.gmra.mxu0 %v632
        %v734 = vpop.f32.mrf.mxu0
        %v735 = vadd.f32 0.0, %v734
        %v736 = vpop.f32.mrf.mxu0
        %737 = vmatprep.mubr.f32.mxu0 0.0
        %738 = vmatmul.mubr.f32.gmra.mxu0 %v633
        %v739 = vpop.f32.mrf.mxu0
        %v740 = vadd.f32 0.0, %v739
        %v741 = vpop.f32.mrf.mxu0
        %742 = vmatprep.mubr.f32.mxu0 0.0
        %743 = vmatmul.mubr.f32.gmra.mxu0 %v634
        %v744 = vpop.f32.mrf.mxu0
        %v745 = vadd.f32 0.0, %v744
        %v746 = vpop.f32.mrf.mxu0
        %747 = vmatprep.mubr.f32.mxu0 0.0
        %748 = vmatmul.mubr.f32.gmra.mxu0 %v635
        %v749 = vpop.f32.mrf.mxu0
        %v750 = vadd.f32 0.0, %v749
        %v751 = vpop.f32.mrf.mxu0
        %752 = vmatprep.mubr.f32.mxu0 0.0
        %753 = vmatmul.mubr.f32.gmra.mxu0 %v636
        %v754 = vpop.f32.mrf.mxu0
        %v755 = vadd.f32 0.0, %v754
        %v756 = vpop.f32.mrf.mxu0
        %757 = vmatprep.mubr.f32.mxu0 0.0
        %758 = vmatmul.mubr.f32.gmra.mxu0 %v637
        %v759 = vpop.f32.mrf.mxu0
        %v760 = vadd.f32 0.0, %v759
        %v761 = vpop.f32.mrf.mxu0
        %762 = vmatprep.mubr.f32.mxu0 0.0
        %763 = vmatmul.mubr.f32.gmra.mxu0 %v638
        %v764 = vpop.f32.mrf.mxu0
        %v765 = vadd.f32 0.0, %v764
        %v766 = vpop.f32.mrf.mxu0
        %767 = vmatprep.mubr.f32.mxu0 0.0
        %768 = vmatmul.mubr.f32.gmra.mxu0 %v639
        %v769 = vpop.f32.mrf.mxu0
        %v770 = vadd.f32 0.0, %v769
        %v771 = vpop.f32.mrf.mxu0
        %772 = vmatprep.mubr.f32.mxu0 0.0
        %773 = vmatmul.mubr.f32.gmra.mxu0 %v640
        %v774 = vpop.f32.mrf.mxu0
        %v775 = vadd.f32 0.0, %v774
        %v776 = vpop.f32.mrf.mxu0
        %777 = vmatprep.mubr.f32.mxu0 0.0
        %778 = vmatmul.mubr.f32.gmra.mxu0 %v641
        %v779 = vpop.f32.mrf.mxu0
        %v780 = vadd.f32 0.0, %v779
        %v781 = vpop.f32.mrf.mxu0
        %782 = vmatprep.mubr.f32.mxu0 0.0
        %783 = vmatmul.mubr.f32.gmra.mxu0 %v642
        %v784 = vpop.f32.mrf.mxu0
        %v785 = vadd.f32 0.0, %v784
        %v786 = vpop.f32.mrf.mxu0
        %787 = vmatprep.mubr.f32.mxu0 0.0
        %788 = vmatmul.mubr.f32.gmra.mxu0 %v643
        %v789 = vpop.f32.mrf.mxu0
        %v790 = vadd.f32 0.0, %v789
        %v791 = vpop.f32.mrf.mxu0
        %792 = vmatprep.mubr.f32.mxu0 0.0
        %793 = vmatmul.mubr.f32.gmra.mxu0 %v644
        %v794 = vpop.f32.mrf.mxu0
        %v795 = vadd.f32 0.0, %v794
        %v796 = vpop.f32.mrf.mxu0
        %797 = vmatprep.mubr.f32.mxu0 0.0
        %798 = vmatmul.mubr.f32.gmra.mxu0 %v645
        %v799 = vpop.f32.mrf.mxu0
        %v800 = vadd.f32 0.0, %v799
        %v801 = vpop.f32.mrf.mxu0
        %802 = vmatprep.mubr.f32.mxu0 0.0
        %803 = vmatmul.mubr.f32.gmra.mxu0 %v646
        %v804 = vpop.f32.mrf.mxu0
        %v805 = vadd.f32 0.0, %v804
        %v806 = vpop.f32.mrf.mxu0
        %807 = vdwg.mxu0
        %808 = vst [vmem:[%s318] sm:$0xff] %v730
        %809 = vst [vmem:[%s318 + $0x8] sm:$0xff] %v735
        %810 = vst [vmem:[%s318 + $0x10] sm:$0xff] %v740
        %811 = vst [vmem:[%s318 + $0x18] sm:$0xff] %v745
        %812 = vst [vmem:[%s318 + $0x20] sm:$0xff] %v750
        %813 = vst [vmem:[%s318 + $0x28] sm:$0xff] %v755
        %814 = vst [vmem:[%s318 + $0x30] sm:$0xff] %v760
        %815 = vst [vmem:[%s318 + $0x38] sm:$0xff] %v765
        %816 = vst [vmem:[%s318 + $0x40] sm:$0xff] %v770
        %817 = vst [vmem:[%s318 + $0x48] sm:$0xff] %v775
        %818 = vst [vmem:[%s318 + $0x50] sm:$0xff] %v780
        %819 = vst [vmem:[%s318 + $0x58] sm:$0xff] %v785
        %820 = vst [vmem:[%s318 + $0x60] sm:$0xff] %v790
        %821 = vst [vmem:[%s318 + $0x68] sm:$0xff] %v795
        %822 = vst [vmem:[%s318 + $0x70] sm:$0xff] %v800
        %823 = vst [vmem:[%s318 + $0x78] sm:$0xff] %v805
        %s824 = smul.u32 %s24, 128
        %v825 = vlaneseq
        %v826 = vshrl.u32 %v825, 7
        %v827 = vadd.s32 %v826, 8
        %v828 = vadd.s32 %v826, 16
        %v829 = vadd.s32 %v826, 24
        %v830 = vadd.s32 %v826, 32
        %v831 = vadd.s32 %v826, 40
        %v832 = vadd.s32 %v826, 48
        %v833 = vadd.s32 %v826, 56
        %v834 = vadd.s32 %v826, 64
        %v835 = vadd.s32 %v826, 72
        %v836 = vadd.s32 %v826, 80
        %v837 = vadd.s32 %v826, 88
        %v838 = vadd.s32 %v826, 96
        %v839 = vadd.s32 %v826, 104
        %v840 = vadd.s32 %v826, 112
        %v841 = vadd.s32 %v826, 120
        %v842 = vstv %s824
        %v843 = vadd.s32 %v842, %v826
        %v844 = vadd.s32 %v842, %v827
        %v845 = vadd.s32 %v842, %v828
        %v846 = vadd.s32 %v842, %v829
        %v847 = vadd.s32 %v842, %v830
        %v848 = vadd.s32 %v842, %v831
        %v849 = vadd.s32 %v842, %v832
        %v850 = vadd.s32 %v842, %v833
        %v851 = vadd.s32 %v842, %v834
        %v852 = vadd.s32 %v842, %v835
        %v853 = vadd.s32 %v842, %v836
        %v854 = vadd.s32 %v842, %v837
        %v855 = vadd.s32 %v842, %v838
        %v856 = vadd.s32 %v842, %v839
        %v857 = vadd.s32 %v842, %v840
        %v858 = vadd.s32 %v842, %v841
        %vm859 = vcmp.lt.s32.totalorder %v843, 324
        %vm860 = vcmp.lt.s32.totalorder %v844, 324
        %vm861 = vcmp.lt.s32.totalorder %v845, 324
        %vm862 = vcmp.lt.s32.totalorder %v846, 324
        %vm863 = vcmp.lt.s32.totalorder %v847, 324
        %vm864 = vcmp.lt.s32.totalorder %v848, 324
        %vm865 = vcmp.lt.s32.totalorder %v849, 324
        %vm866 = vcmp.lt.s32.totalorder %v850, 324
        %vm867 = vcmp.lt.s32.totalorder %v851, 324
        %vm868 = vcmp.lt.s32.totalorder %v852, 324
        %vm869 = vcmp.lt.s32.totalorder %v853, 324
        %vm870 = vcmp.lt.s32.totalorder %v854, 324
        %vm871 = vcmp.lt.s32.totalorder %v855, 324
        %vm872 = vcmp.lt.s32.totalorder %v856, 324
        %vm873 = vcmp.lt.s32.totalorder %v857, 324
        %vm874 = vcmp.lt.s32.totalorder %v858, 324
        %v875 = vsel %vm859, 1, 0
        %v876 = vsel %vm860, 1, 0
        %v877 = vsel %vm861, 1, 0
        %v878 = vsel %vm862, 1, 0
        %v879 = vsel %vm863, 1, 0
        %v880 = vsel %vm864, 1, 0
        %v881 = vsel %vm865, 1, 0
        %v882 = vsel %vm866, 1, 0
        %v883 = vsel %vm867, 1, 0
        %v884 = vsel %vm868, 1, 0
        %v885 = vsel %vm869, 1, 0
        %v886 = vsel %vm870, 1, 0
        %v887 = vsel %vm871, 1, 0
        %v888 = vsel %vm872, 1, 0
        %v889 = vsel %vm873, 1, 0
        %v890 = vsel %vm874, 1, 0
        %vm891 = vcmp.eq.s32.totalorder %v875, 1
        %vm892 = vcmp.eq.s32.totalorder %v876, 1
        %vm893 = vcmp.eq.s32.totalorder %v877, 1
        %vm894 = vcmp.eq.s32.totalorder %v878, 1
        %vm895 = vcmp.eq.s32.totalorder %v879, 1
        %vm896 = vcmp.eq.s32.totalorder %v880, 1
        %vm897 = vcmp.eq.s32.totalorder %v881, 1
        %vm898 = vcmp.eq.s32.totalorder %v882, 1
        %vm899 = vcmp.eq.s32.totalorder %v883, 1
        %vm900 = vcmp.eq.s32.totalorder %v884, 1
        %vm901 = vcmp.eq.s32.totalorder %v885, 1
        %vm902 = vcmp.eq.s32.totalorder %v886, 1
        %vm903 = vcmp.eq.s32.totalorder %v887, 1
        %vm904 = vcmp.eq.s32.totalorder %v888, 1
        %vm905 = vcmp.eq.s32.totalorder %v889, 1
        %vm906 = vcmp.eq.s32.totalorder %v890, 1
        %v907 = vsel %vm891, %v730, 0.0
        %v908 = vsel %vm892, %v735, 0.0
        %v909 = vsel %vm893, %v740, 0.0
        %v910 = vsel %vm894, %v745, 0.0
        %v911 = vsel %vm895, %v750, 0.0
        %v912 = vsel %vm896, %v755, 0.0
        %v913 = vsel %vm897, %v760, 0.0
        %v914 = vsel %vm898, %v765, 0.0
        %v915 = vsel %vm899, %v770, 0.0
        %v916 = vsel %vm900, %v775, 0.0
        %v917 = vsel %vm901, %v780, 0.0
        %v918 = vsel %vm902, %v785, 0.0
        %v919 = vsel %vm903, %v790, 0.0
        %v920 = vsel %vm904, %v795, 0.0
        %v921 = vsel %vm905, %v800, 0.0
        %v922 = vsel %vm906, %v805, 0.0
        %v923 = vadd.f32 %v907, %v908
        %v924 = vadd.f32 %v923, %v909
        %v925 = vadd.f32 %v924, %v910
        %v926 = vadd.f32 %v925, %v911
        %v927 = vadd.f32 %v926, %v912
        %v928 = vadd.f32 %v927, %v913
        %v929 = vadd.f32 %v928, %v914
        %v930 = vadd.f32 %v929, %v915
        %v931 = vadd.f32 %v930, %v916
        %v932 = vadd.f32 %v931, %v917
        %v933 = vadd.f32 %v932, %v918
        %v934 = vadd.f32 %v933, %v919
        %v935 = vadd.f32 %v934, %v920
        %v936 = vadd.f32 %v935, %v921
        %v937 = vadd.f32 %v936, %v922
        %v938 = vrot.slane %v937, 4
        %v939 = vadd.f32 %v937, %v938
        %v940 = vrot.slane %v939, 2
        %v941 = vadd.f32 %v939, %v940
        %v942 = vrot.slane %v941, 1
        %v943 = vadd.f32 %v941, %v942
        %944 = vst [vmem:[%s362] sm:$0x1] %v943
        %v945 = vmul.f32 %v907, %v907
        %v946 = vmul.f32 %v908, %v908
        %v947 = vmul.f32 %v909, %v909
        %v948 = vmul.f32 %v910, %v910
        %v949 = vmul.f32 %v911, %v911
        %v950 = vmul.f32 %v912, %v912
        %v951 = vmul.f32 %v913, %v913
        %v952 = vmul.f32 %v914, %v914
        %v953 = vmul.f32 %v915, %v915
        %v954 = vmul.f32 %v916, %v916
        %v955 = vmul.f32 %v917, %v917
        %v956 = vmul.f32 %v918, %v918
        %v957 = vmul.f32 %v919, %v919
        %v958 = vmul.f32 %v920, %v920
        %v959 = vmul.f32 %v921, %v921
        %v960 = vmul.f32 %v922, %v922
        %v961 = vadd.f32 %v945, %v946
        %v962 = vadd.f32 %v961, %v947
        %v963 = vadd.f32 %v962, %v948
        %v964 = vadd.f32 %v963, %v949
        %v965 = vadd.f32 %v964, %v950
        %v966 = vadd.f32 %v965, %v951
        %v967 = vadd.f32 %v966, %v952
        %v968 = vadd.f32 %v967, %v953
        %v969 = vadd.f32 %v968, %v954
        %v970 = vadd.f32 %v969, %v955
        %v971 = vadd.f32 %v970, %v956
        %v972 = vadd.f32 %v971, %v957
        %v973 = vadd.f32 %v972, %v958
        %v974 = vadd.f32 %v973, %v959
        %v975 = vadd.f32 %v974, %v960
        %v976 = vrot.slane %v975, 4
        %v977 = vadd.f32 %v975, %v976
        %v978 = vrot.slane %v977, 2
        %v979 = vadd.f32 %v977, %v978
        %v980 = vrot.slane %v979, 1
        %v981 = vadd.f32 %v979, %v980
        %982 = vst [vmem:[%s362 + $0x1] sm:$0x1] %v981
        %s983 = sand.u32 %s179, 1
        %s984 = sand.u32 %s179, 1
        %s985 = smul.addr %s984, 128
        %s986 = scalar_lea.vmem [#allocation2], %s985
        %p987 = scmp.lt.s32.totalorder %s23, 1
        %s988 = scalar_select %p987, %s23, 1
        %p989 = scmp.lt.s32.totalorder %s24, 2
        %s990 = scalar_select %p989, %s24, 2
        %s991 = smul.addr %s988, 3
        %s992 = sadd.s32 %s990, %s991
        %s993 = smul.addr %s992, 2
        %s994 = scalar_lea.vmem %s7, %s993
        // Predicated region
        $region45: #{decoder_forward.6} parent=43 // pred_check
          %p995 = pneg %p189
        $region46: #{decoder_forward.6} parent=43 // pred_check_branch
          %997 = sbr.rel (%p995) target = $region48
        $region47: #{decoder_forward.6} parent=43 // pred_region
          %s998 = smul.u32 16, %s24
          %s999 = ssub.s32 41, %s998
          %p1000 = scmp.lt.s32.totalorder %s999, 16
          %s1001 = scalar_select %p1000, %s999, 16
          %s1002 = smul.u32 128, %s1001
          %p1003 = scmp.ne.s32.totalorder 0, %s1002
          %s1004 = smul.addr %s23, 41
          %s1005 = sadd.s32 %s998, %s1004
          %s1006 = smul.addr %s1005, 8
          %s1007 = scalar_lea.vmem %s6, %s1006
          // Predicated region
          $region49: #{decoder_forward.6} parent=47 // pred_check
            %p1008 = pneg %p1003
          $region50: #{decoder_forward.6} parent=47 // pred_check_branch
            %1010 = sbr.rel (%p1008) target = $region52
          $region51: #{decoder_forward.6} parent=47 // pred_region
            // Predicated region
            $region53: #{decoder_forward.6} parent=51 // pred_check
              _
            $region54: #{decoder_forward.6} parent=51 // pred_check_branch
              %1012 = sbr.rel (0) target = $region56
            $region55: #{decoder_forward.6} parent=51 // pred_region
              // Predicated region
              $region75: #{decoder_forward.6} parent=55 // pred_check
                _
              $region76: #{decoder_forward.6} parent=55 // pred_check_branch
                %1092 = sbr.rel (0) target = $region78
              $region77: #{decoder_forward.6} parent=55 // pred_region
                %s1093 = sshrl.u32 %s1001, 4
                // While loop
                $region79: #{decoder_forward.6} parent=77 // loop_pre_header
                  _
                $region80: #{decoder_forward.6} parent=77 // loop_header
                  %s1095 = sphi 0, %s1097
                  %p1096 = scmp.ge.s32.totalorder %s1095, %s1093
                  %s1100 = sphi 0, %s1137
                  %s1101 = sphi %s986, %s1140
                  %s1102 = sphi %s1007, %s1141
                $region81: #{decoder_forward.6} parent=77 // loop_header_branch
                  %1099 = sbr.rel (%p1096) target = $region85
                $region82: #{decoder_forward.6} parent=77 // loop_body
                  %v1103 = vld [vmem:[%s1101] sm:$0xff]
                  %1104 = vst [vmem:[%s1102] sm:$0xff] %v1103
                  %v1105 = vld [vmem:[%s1101 + $0x8] sm:$0xff]
                  %1106 = vst [vmem:[%s1102 + $0x8] sm:$0xff] %v1105
                  %v1107 = vld [vmem:[%s1101 + $0x10] sm:$0xff]
                  %1108 = vst [vmem:[%s1102 + $0x10] sm:$0xff] %v1107
                  %v1109 = vld [vmem:[%s1101 + $0x18] sm:$0xff]
                  %1110 = vst [vmem:[%s1102 + $0x18] sm:$0xff] %v1109
                  %v1111 = vld [vmem:[%s1101 + $0x20] sm:$0xff]
                  %1112 = vst [vmem:[%s1102 + $0x20] sm:$0xff] %v1111
                  %v1113 = vld [vmem:[%s1101 + $0x28] sm:$0xff]
                  %1114 = vst [vmem:[%s1102 + $0x28] sm:$0xff] %v1113
                  %v1115 = vld [vmem:[%s1101 + $0x30] sm:$0xff]
                  %1116 = vst [vmem:[%s1102 + $0x30] sm:$0xff] %v1115
                  %v1117 = vld [vmem:[%s1101 + $0x38] sm:$0xff]
                  %1118 = vst [vmem:[%s1102 + $0x38] sm:$0xff] %v1117
                  %v1119 = vld [vmem:[%s1101 + $0x40] sm:$0xff]
                  %1120 = vst [vmem:[%s1102 + $0x40] sm:$0xff] %v1119
                  %v1121 = vld [vmem:[%s1101 + $0x48] sm:$0xff]
                  %1122 = vst [vmem:[%s1102 + $0x48] sm:$0xff] %v1121
                  %v1123 = vld [vmem:[%s1101 + $0x50] sm:$0xff]
                  %1124 = vst [vmem:[%s1102 + $0x50] sm:$0xff] %v1123
                  %v1125 = vld [vmem:[%s1101 + $0x58] sm:$0xff]
                  %1126 = vst [vmem:[%s1102 + $0x58] sm:$0xff] %v1125
                  %v1127 = vld [vmem:[%s1101 + $0x60] sm:$0xff]
                  %1128 = vst [vmem:[%s1102 + $0x60] sm:$0xff] %v1127
                  %v1129 = vld [vmem:[%s1101 + $0x68] sm:$0xff]
                  %1130 = vst [vmem:[%s1102 + $0x68] sm:$0xff] %v1129
                  %v1131 = vld [vmem:[%s1101 + $0x70] sm:$0xff]
                  %1132 = vst [vmem:[%s1102 + $0x70] sm:$0xff] %v1131
                  %v1133 = vld [vmem:[%s1101 + $0x78] sm:$0xff]
                  %1134 = vst [vmem:[%s1102 + $0x78] sm:$0xff] %v1133
                  %s1135 = sadd.s32 1, %s1100
                  %p1136 = scmp.ge.s32.totalorder %s1135, %s1093
                  %s1137 = scalar_select %p1136, 0, %s1135
                  %s1138 = smul.u32 %s1137, 128
                  %s1139 = smul.u32 %s1137, 128
                  %s1140 = scalar_lea.vmem %s986, %s1138 [#allocation2]
                  %s1141 = scalar_lea.vmem %s1007, %s1139
                $region83: #{decoder_forward.6} parent=77 // loop_footer
                  %s1097 = sadd.s32 %s1095, 1
                $region84: #{decoder_forward.6} parent=77 // loop_footer_branch
                  %1094 = sbr.rel target = $region80
                $region85: #{decoder_forward.6} parent=77 // loop_exit
                  _
                %s1142 = sshrl.u32 %s1001, 4
                %s1143 = sand.u32 %s1001, 15
                %s1144 = smul.u32 %s1142, 16
                %s1145 = smul.u32 8, %s1144
                %s1146 = scalar_lea.vmem %s986, %s1145 [#allocation2]
                %s1147 = smul.u32 8, %s1144
                %s1148 = scalar_lea.vmem %s1007, %s1147
                // While loop
                $region86: #{decoder_forward.6} parent=77 // loop_pre_header
                  _
                $region87: #{decoder_forward.6} parent=77 // loop_header
                  %s1150 = sphi 0, %s1152
                  %p1151 = scmp.ge.s32.totalorder %s1150, %s1143
                  %s1155 = sphi 0, %s1162
                  %s1156 = sphi %s1146, %s1165
                  %s1157 = sphi %s1148, %s1166
                $region88: #{decoder_forward.6} parent=77 // loop_header_branch
                  %1154 = sbr.rel (%p1151) target = $region92
                $region89: #{decoder_forward.6} parent=77 // loop_body
                  %v1158 = vld [vmem:[%s1156] sm:$0xff]
                  %1159 = vst [vmem:[%s1157] sm:$0xff] %v1158
                  %s1160 = sadd.s32 1, %s1155
                  %p1161 = scmp.ge.s32.totalorder %s1160, %s1143
                  %s1162 = scalar_select %p1161, 0, %s1160
                  %s1163 = smul.u32 %s1162, 8
                  %s1164 = smul.u32 %s1162, 8
                  %s1165 = scalar_lea.vmem %s1146, %s1163 [#allocation2]
                  %s1166 = scalar_lea.vmem %s1148, %s1164
                $region90: #{decoder_forward.6} parent=77 // loop_footer
                  %s1152 = sadd.s32 %s1150, 1
                $region91: #{decoder_forward.6} parent=77 // loop_footer_branch
                  %1149 = sbr.rel target = $region87
                $region92: #{decoder_forward.6} parent=77 // loop_exit
                  _
              $region78: #{decoder_forward.6} parent=55 // pred_fallthru
                _
              // Predicated region
              $region93: #{decoder_forward.6} parent=55 // pred_check
                _
              $region94: #{decoder_forward.6} parent=55 // pred_check_branch
                %1168 = sbr.rel target = $region96
              $region95: #{decoder_forward.6} parent=55 // pred_region
                _
              $region96: #{decoder_forward.6} parent=55 // pred_fallthru
                _
            $region56: #{decoder_forward.6} parent=51 // pred_fallthru
              _
            // Predicated region
            $region57: #{decoder_forward.6} parent=51 // pred_check
              _
            $region58: #{decoder_forward.6} parent=51 // pred_check_branch
              %1014 = sbr.rel target = $region60
            $region59: #{decoder_forward.6} parent=51 // pred_region
              %s1016 = ssub.s32 256, 1
              %s1017 = sshrl.u32 %s1001, 4
              // While loop
              $region61: #{decoder_forward.6} parent=59 // loop_pre_header
                _
              $region62: #{decoder_forward.6} parent=59 // loop_header
                %s1019 = sphi 0, %s1021
                %p1020 = scmp.ge.s32.totalorder %s1019, %s1017
                %s1024 = sphi 0, %s1061
                %s1025 = sphi %s986, %s1064
                %s1026 = sphi %s1007, %s1065
              $region63: #{decoder_forward.6} parent=59 // loop_header_branch
                %1023 = sbr.rel (%p1020) target = $region67
              $region64: #{decoder_forward.6} parent=59 // loop_body
                %v1027 = vld [vmem:[%s1025] sm:%s1016]
                %1028 = vst [vmem:[%s1026] sm:%s1016] %v1027
                %v1029 = vld [vmem:[%s1025 + $0x8] sm:%s1016]
                %1030 = vst [vmem:[%s1026 + $0x8] sm:%s1016] %v1029
                %v1031 = vld [vmem:[%s1025 + $0x10] sm:%s1016]
                %1032 = vst [vmem:[%s1026 + $0x10] sm:%s1016] %v1031
                %v1033 = vld [vmem:[%s1025 + $0x18] sm:%s1016]
                %1034 = vst [vmem:[%s1026 + $0x18] sm:%s1016] %v1033
                %v1035 = vld [vmem:[%s1025 + $0x20] sm:%s1016]
                %1036 = vst [vmem:[%s1026 + $0x20] sm:%s1016] %v1035
                %v1037 = vld [vmem:[%s1025 + $0x28] sm:%s1016]
                %1038 = vst [vmem:[%s1026 + $0x28] sm:%s1016] %v1037
                %v1039 = vld [vmem:[%s1025 + $0x30] sm:%s1016]
                %1040 = vst [vmem:[%s1026 + $0x30] sm:%s1016] %v1039
                %v1041 = vld [vmem:[%s1025 + $0x38] sm:%s1016]
                %1042 = vst [vmem:[%s1026 + $0x38] sm:%s1016] %v1041
                %v1043 = vld [vmem:[%s1025 + $0x40] sm:%s1016]
                %1044 = vst [vmem:[%s1026 + $0x40] sm:%s1016] %v1043
                %v1045 = vld [vmem:[%s1025 + $0x48] sm:%s1016]
                %1046 = vst [vmem:[%s1026 + $0x48] sm:%s1016] %v1045
                %v1047 = vld [vmem:[%s1025 + $0x50] sm:%s1016]
                %1048 = vst [vmem:[%s1026 + $0x50] sm:%s1016] %v1047
                %v1049 = vld [vmem:[%s1025 + $0x58] sm:%s1016]
                %1050 = vst [vmem:[%s1026 + $0x58] sm:%s1016] %v1049
                %v1051 = vld [vmem:[%s1025 + $0x60] sm:%s1016]
                %1052 = vst [vmem:[%s1026 + $0x60] sm:%s1016] %v1051
                %v1053 = vld [vmem:[%s1025 + $0x68] sm:%s1016]
                %1054 = vst [vmem:[%s1026 + $0x68] sm:%s1016] %v1053
                %v1055 = vld [vmem:[%s1025 + $0x70] sm:%s1016]
                %1056 = vst [vmem:[%s1026 + $0x70] sm:%s1016] %v1055
                %v1057 = vld [vmem:[%s1025 + $0x78] sm:%s1016]
                %1058 = vst [vmem:[%s1026 + $0x78] sm:%s1016] %v1057
                %s1059 = sadd.s32 1, %s1024
                %p1060 = scmp.ge.s32.totalorder %s1059, %s1017
                %s1061 = scalar_select %p1060, 0, %s1059
                %s1062 = smul.u32 %s1061, 128
                %s1063 = smul.u32 %s1061, 128
                %s1064 = scalar_lea.vmem %s986, %s1062 [#allocation2]
                %s1065 = scalar_lea.vmem %s1007, %s1063
              $region65: #{decoder_forward.6} parent=59 // loop_footer
                %s1021 = sadd.s32 %s1019, 1
              $region66: #{decoder_forward.6} parent=59 // loop_footer_branch
                %1018 = sbr.rel target = $region62
              $region67: #{decoder_forward.6} parent=59 // loop_exit
                _
              %s1066 = sshrl.u32 %s1001, 4
              %s1067 = sand.u32 %s1001, 15
              %s1068 = smul.u32 %s1066, 16
              %s1069 = smul.u32 8, %s1068
              %s1070 = scalar_lea.vmem %s986, %s1069 [#allocation2]
              %s1071 = smul.u32 8, %s1068
              %s1072 = scalar_lea.vmem %s1007, %s1071
              // While loop
              $region68: #{decoder_forward.6} parent=59 // loop_pre_header
                _
              $region69: #{decoder_forward.6} parent=59 // loop_header
                %s1074 = sphi 0, %s1076
                %p1075 = scmp.ge.s32.totalorder %s1074, %s1067
                %s1079 = sphi 0, %s1086
                %s1080 = sphi %s1070, %s1089
                %s1081 = sphi %s1072, %s1090
              $region70: #{decoder_forward.6} parent=59 // loop_header_branch
                %1078 = sbr.rel (%p1075) target = $region74
              $region71: #{decoder_forward.6} parent=59 // loop_body
                %v1082 = vld [vmem:[%s1080] sm:%s1016]
                %1083 = vst [vmem:[%s1081] sm:%s1016] %v1082
                %s1084 = sadd.s32 1, %s1079
                %p1085 = scmp.ge.s32.totalorder %s1084, %s1067
                %s1086 = scalar_select %p1085, 0, %s1084
                %s1087 = smul.u32 %s1086, 8
                %s1088 = smul.u32 %s1086, 8
                %s1089 = scalar_lea.vmem %s1070, %s1087 [#allocation2]
                %s1090 = scalar_lea.vmem %s1072, %s1088
              $region72: #{decoder_forward.6} parent=59 // loop_footer
                %s1076 = sadd.s32 %s1074, 1
              $region73: #{decoder_forward.6} parent=59 // loop_footer_branch
                %1073 = sbr.rel target = $region69
              $region74: #{decoder_forward.6} parent=59 // loop_exit
                _
            $region60: #{decoder_forward.6} parent=51 // pred_fallthru
              _
          $region52: #{decoder_forward.6} parent=47 // pred_fallthru
            _
          %1169 = vnop
        $region48: #{decoder_forward.6} parent=43 // pred_fallthru
          _
        // Predicated region
        $region97: #{decoder_forward.6} parent=43 // pred_check
          %p1170 = pneg %p217
        $region98: #{decoder_forward.6} parent=43 // pred_check_branch
          %1172 = sbr.rel (%p1170) target = $region100
        $region99: #{decoder_forward.6} parent=43 // pred_region
          _
        $region100: #{decoder_forward.6} parent=43 // pred_fallthru
          _
      $region44: #{decoder_forward.6} parent=5 // pred_fallthru
        _
      %p1173 = scmp.le.s32.totalorder 2, %s14
      // Predicated region
      $region101: #{decoder_forward.6} parent=5 // pred_check
        %p1174 = pneg %p1173
      $region102: #{decoder_forward.6} parent=5 // pred_check_branch
        %1176 = sbr.rel (%p1174) target = $region104
      $region103: #{decoder_forward.6} parent=5 // pred_region
        %s1177 = ssub.s32 %s14, 2
        // Predicated region
        $region105: #{decoder_forward.6} parent=103 // pred_check
          %p1178 = pneg %p195
        $region106: #{decoder_forward.6} parent=103 // pred_check_branch
          %1180 = sbr.rel (%p1178) target = $region108
        $region107: #{decoder_forward.6} parent=103 // pred_region
          %s1181 = sand.u32 %s180, 1
          %s1182 = sand.u32 %s180, 1
          %s1183 = smul.addr %s1182, 128
          %s1184 = scalar_lea.vmem [#allocation2], %s1183
        $region108: #{decoder_forward.6} parent=103 // pred_fallthru
          _
        // Predicated region
        $region109: #{decoder_forward.6} parent=103 // pred_check
          %p1185 = pneg %p223
        $region110: #{decoder_forward.6} parent=103 // pred_check_branch
          %1187 = sbr.rel (%p1185) target = $region112
        $region111: #{decoder_forward.6} parent=103 // pred_region
          %p1188 = scmp.lt.s32.totalorder %s25, 1
          %s1189 = scalar_select %p1188, %s25, 1
          %p1190 = scmp.lt.s32.totalorder %s26, 2
          %s1191 = scalar_select %p1190, %s26, 2
          %s1192 = smul.addr %s1189, 3
          %s1193 = sadd.s32 %s1191, %s1192
          %s1194 = smul.addr %s1193, 2
          %s1195 = scalar_lea.vmem %s7, %s1194
        $region112: #{decoder_forward.6} parent=103 // pred_fallthru
          _
      $region104: #{decoder_forward.6} parent=5 // pred_fallthru
        _
    $region6: #{decoder_forward.6} parent=1 // loop_footer
      %s18 = sadd.s32 1, %s14
    $region7: #{decoder_forward.6} parent=1 // loop_footer_branch
      %13 = sbr.rel target = $region3
    $region8: #{decoder_forward.6} parent=1 // loop_exit
      _

</llo_original>
